<compile_context>
chip_gen: v6e
topology: v6e:2x2x1
jax: 0.10.0
libtpu: 0.0.40
codegen_flags: <defaults>
</compile_context>

<pallas_src>
import jax
import jax.numpy as jnp
from jax import lax
from jax.experimental import pallas as pl
from jax.experimental.pallas import tpu as pltpu

EPS = 1e-5
NEG_SLOPE = 0.2


def _reflect_pad_hwc(img, H, W):
    """1-pixel reflect pad of an (H, W, C) image, PyTorch 'reflect' convention."""
    left = img[:, 1:2, :]
    right = img[:, W - 2:W - 1, :]
    img = jnp.concatenate([left, img, right], axis=1)        # (H, W+2, C)
    top = img[1:2, :, :]
    bot = img[H - 2:H - 1, :, :]
    return jnp.concatenate([top, img, bot], axis=0)           # (H+2, W+2, C)


def _im2col_3x3(img, H, W):
    """(H, W, C) -> (H*W, 9*C) shifted-patch slab for one K=9*C MXU matmul."""
    C = img.shape[-1]
    xp = _reflect_pad_hwc(img, H, W)
    taps = [xp[dy:dy + H, dx:dx + W, :] for dy in range(3) for dx in range(3)]
    return jnp.concatenate(taps, axis=-1).reshape(H * W, 9 * C)


def _double_conv_kernel(x_ref, w1_ref, w2_ref, g1_ref, be1_ref, g2_ref, be2_ref,
                        out_ref, c1_ref, stats1_ref, bn1_ref, stats2_ref):
    """Fused DoubleConv.

    grid = (phase, batch):
      phase 0, step b : stage-1 conv of sample b -> c1 scratch, accumulate BN1 stats
      phase 1, step 0 : finalize BN1 scale/shift, zero BN2 stats
      phase 1, step b : BN1+LReLU(sample b), stage-2 conv -> out block, BN2 stats
      phase 1, last   : finalize BN2 + LReLU over the VMEM-resident out block
    """
    p = pl.program_id(0)
    b = pl.program_id(1)
    nb = pl.num_programs(1)
    _, H, W, _ = x_ref.shape
    HW = H * W
    cnt = float(out_ref.shape[0])            # N*H*W : BN reduction count
    row0 = pl.multiple_of(b * HW, HW)        # rows of this sample in flat slabs

    # ---- phase 0, first step: zero BN1 accumulators -------------------------
    @pl.when((p == 0) & (b == 0))
    def _init_stats1():
        stats1_ref[...] = jnp.zeros_like(stats1_ref)

    # ---- phase 0: stage-1 conv of sample b; accumulate BN1 stats ------------
    @pl.when(p == 0)
    def _stage1():
        slab = _im2col_3x3(x_ref[0].astype(jnp.float32), H, W)      # (HW, 9*Cin)
        acc = jnp.dot(slab, w1_ref[...], preferred_element_type=jnp.float32)
        c1_ref[pl.ds(row0, HW), :] = acc                            # raw conv1
        stats1_ref[0:1, :] += jnp.sum(acc, axis=0, keepdims=True)
        stats1_ref[1:2, :] += jnp.sum(acc * acc, axis=0, keepdims=True)

    # ---- phase 1, first step: finalize BN1 -> scale/shift; zero BN2 stats ---
    @pl.when((p == 1) & (b == 0))
    def _finalize_bn1():
        mean = stats1_ref[0:1, :] * (1.0 / cnt)
        var = stats1_ref[1:2, :] * (1.0 / cnt) - mean * mean        # E[x^2]-m^2
        scale = g1_ref[...] * lax.rsqrt(var + EPS)
        bn1_ref[0:1, :] = scale
        bn1_ref[1:2, :] = be1_ref[...] - mean * scale
        stats2_ref[...] = jnp.zeros_like(stats2_ref)

    # ---- phase 1: BN1 + LReLU on sample b, stage-2 conv, BN2 stats ----------
    @pl.when(p == 1)
    def _stage2():
        Cmid = c1_ref.shape[-1]
        y1 = c1_ref[pl.ds(row0, HW), :] * bn1_ref[0:1, :] + bn1_ref[1:2, :]
        y1 = jnp.where(y1 >= 0, y1, NEG_SLOPE * y1)
        slab = _im2col_3x3(y1.reshape(H, W, Cmid), H, W)            # (HW, 9*Cmid)
        acc = jnp.dot(slab, w2_ref[...], preferred_element_type=jnp.float32)
        out_ref[pl.ds(row0, HW), :] = acc                           # raw conv2
        stats2_ref[0:1, :] += jnp.sum(acc, axis=0, keepdims=True)
        stats2_ref[1:2, :] += jnp.sum(acc * acc, axis=0, keepdims=True)

    # ---- last step: finalize BN2 + LReLU over the resident output block -----
    @pl.when((p == 1) & (b == nb - 1))
    def _finalize_out():
        mean = stats2_ref[0:1, :] * (1.0 / cnt)
        var = stats2_ref[1:2, :] * (1.0 / cnt) - mean * mean
        scale = g2_ref[...] * lax.rsqrt(var + EPS)
        shift = be2_ref[...] - mean * scale
        y2 = out_ref[...] * scale + shift
        out_ref[...] = jnp.where(y2 >= 0, y2, NEG_SLOPE * y2)


def double_conv(x_nchw, params):
    """DoubleConv forward. Input/output in PyTorch NCHW convention."""
    x = jnp.transpose(x_nchw, (0, 2, 3, 1)).astype(jnp.float32)     # NCHW -> NHWC
    N, H, W, Cin = x.shape
    Cmid = params["w1"].shape[-1]
    Cout = params["w2"].shape[-1]
    # HWIO -> (9*Cin, Cout): tap-major flatten matches the im2col column order.
    w1 = params["w1"].reshape(9 * Cin, Cmid).astype(jnp.float32)
    w2 = params["w2"].reshape(9 * Cmid, Cout).astype(jnp.float32)
    # NOTE: conv biases b1/b2 cancel exactly under train-mode BatchNorm, so they
    # are intentionally not passed to the kernel.

    const2d = lambda p_, b_: (0, 0)                                  # resident
    # input: sample b during phase 0; frozen on the last block during phase 1
    # (no extra DMA, the input is unused in phase 1).
    x_map = lambda p_, b_: (b_ * (1 - p_) + (N - 1) * p_, 0, 0, 0)

    out_flat = pl.pallas_call(
        _double_conv_kernel,
        out_shape=jax.ShapeDtypeStruct((N * H * W, Cout), jnp.float32),
        grid_spec=pltpu.PrefetchScalarGridSpec(
            num_scalar_prefetch=0,
            grid=(2, N),                          # (phase, batch sample)
            in_specs=[
                pl.BlockSpec((1, H, W, Cin), x_map),
                pl.BlockSpec((9 * Cin, Cmid), const2d),
                pl.BlockSpec((9 * Cmid, Cout), const2d),
                pl.BlockSpec((1, Cmid), const2d),
                pl.BlockSpec((1, Cmid), const2d),
                pl.BlockSpec((1, Cout), const2d),
                pl.BlockSpec((1, Cout), const2d),
            ],
            out_specs=pl.BlockSpec((N * H * W, Cout), const2d),      # accumulator
            scratch_shapes=[
                pltpu.VMEM((N * H * W, Cmid), jnp.float32),  # raw conv1 (whole batch)
                pltpu.VMEM((2, Cmid), jnp.float32),          # BN1 sum / sumsq
                pltpu.VMEM((2, Cmid), jnp.float32),          # BN1 scale / shift
                pltpu.VMEM((2, Cout), jnp.float32),          # BN2 sum / sumsq
            ]),
        compiler_params=pltpu.CompilerParams(
            # both axes carry accumulator state -> sequential
            dimension_semantics=("arbitrary", "arbitrary"),
            vmem_limit_bytes=32 * 1024 * 1024),
    )(x, w1, w2,
      params["g1"].reshape(1, Cmid), params["be1"].reshape(1, Cmid),
      params["g2"].reshape(1, Cout), params["be2"].reshape(1, Cout))

    y = out_flat.reshape(N, H, W, Cout)            # free wrapper-side reshape
    return jnp.transpose(y, (0, 3, 1, 2))          # NHWC -> NCHW


# ----------------------- pure-JAX reference (for checking) -------------------
def _stage_ref(x, w, b, gamma, beta):
    xp = jnp.pad(x, ((0, 0), (1, 1), (1, 1), (0, 0)), mode="reflect")
    y = lax.conv_general_dilated(
        xp, w, window_strides=(1, 1), padding="VALID",
        dimension_numbers=("NHWC", "HWIO", "NHWC"))
    y = y + b
    mean = y.mean(axis=(0, 1, 2))
    var = y.var(axis=(0, 1, 2))
    y = (y - mean) * lax.rsqrt(var + EPS) * gamma + beta
    return jnp.where(y >= 0, y, NEG_SLOPE * y)


def double_conv_ref(x_nchw, p):
    x = jnp.transpose(x_nchw, (0, 2, 3, 1))
    y = _stage_ref(x, p["w1"], p["b1"], p["g1"], p["be1"])
    y = _stage_ref(y, p["w2"], p["b2"], p["g2"], p["be2"])
    return jnp.transpose(y, (0, 3, 1, 2))


# --------------------------------- main --------------------------------------
if __name__ == "__main__":
    N, Cin, H, W = 2, 4, 16, 16
    Cmid, Cout = 8, 8          # mid_channels defaults to out_channels

    key = jax.random.PRNGKey(0)
    k = jax.random.split(key, 9)

    # Deterministic synthetic parameters (PyTorch shapes, stored as HWIO).
    params = {
        "w1": 0.2 * jax.random.normal(k[0], (3, 3, Cin, Cmid), jnp.float32),
        "b1": 0.1 * jax.random.normal(k[1], (Cmid,), jnp.float32),
        "g1": 1.0 + 0.1 * jax.random.normal(k[2], (Cmid,), jnp.float32),
        "be1": 0.1 * jax.random.normal(k[3], (Cmid,), jnp.float32),
        "w2": 0.2 * jax.random.normal(k[4], (3, 3, Cmid, Cout), jnp.float32),
        "b2": 0.1 * jax.random.normal(k[5], (Cout,), jnp.float32),
        "g2": 1.0 + 0.1 * jax.random.normal(k[6], (Cout,), jnp.float32),
        "be2": 0.1 * jax.random.normal(k[7], (Cout,), jnp.float32),
    }

    x = jax.random.normal(k[8], (N, Cin, H, W), jnp.float32)   # NCHW like PyTorch

    out = jax.block_until_ready(double_conv(x, params))
    ref = jax.block_until_ready(double_conv_ref(x, params))

    assert out.shape == (N, Cout, H, W), out.shape
    assert jnp.allclose(out, ref, atol=1e-4, rtol=1e-4), (
        float(jnp.max(jnp.abs(out - ref))))

    print("KERNEL_OK")
</pallas_src>

<mosaic_0001>
module attributes {stable_mosaic.version = 11 : i64} {
  func.func @_double_conv_kernel(%arg0: i32, %arg1: i32, %arg2: memref<1x16x16x4xf32, #tpu.memory_space<vmem>>, %arg3: memref<36x8xf32, #tpu.memory_space<vmem>>, %arg4: memref<72x8xf32, #tpu.memory_space<vmem>>, %arg5: memref<1x8xf32, #tpu.memory_space<vmem>>, %arg6: memref<1x8xf32, #tpu.memory_space<vmem>>, %arg7: memref<1x8xf32, #tpu.memory_space<vmem>>, %arg8: memref<1x8xf32, #tpu.memory_space<vmem>>, %arg9: memref<512x8xf32, #tpu.memory_space<vmem>>, %arg10: memref<512x8xf32, #tpu.memory_space<vmem>>, %arg11: memref<2x8xf32, #tpu.memory_space<vmem>>, %arg12: memref<2x8xf32, #tpu.memory_space<vmem>>, %arg13: memref<2x8xf32, #tpu.memory_space<vmem>>) attributes {dimension_semantics = [#tpu.dimension_semantics<arbitrary>, #tpu.dimension_semantics<arbitrary>], iteration_bounds = array<i64: 2, 2>, scalar_prefetch = 0 : i64, scratch_operands = 4 : i64, tpu.core_type = #tpu.core_type<tc>, window_params = [{transform_indices = @transform_0, window_bounds = array<i64: 1, 16, 16, 4>}, {pipeline_mode = #tpu.pipeline_mode<synchronous>, transform_indices = @transform_1, window_bounds = array<i64: 36, 8>}, {pipeline_mode = #tpu.pipeline_mode<synchronous>, transform_indices = @transform_2, window_bounds = array<i64: 72, 8>}, {pipeline_mode = #tpu.pipeline_mode<synchronous>, transform_indices = @transform_3, window_bounds = array<i64: 1, 8>}, {pipeline_mode = #tpu.pipeline_mode<synchronous>, transform_indices = @transform_4, window_bounds = array<i64: 1, 8>}, {pipeline_mode = #tpu.pipeline_mode<synchronous>, transform_indices = @transform_5, window_bounds = array<i64: 1, 8>}, {pipeline_mode = #tpu.pipeline_mode<synchronous>, transform_indices = @transform_6, window_bounds = array<i64: 1, 8>}, {pipeline_mode = #tpu.pipeline_mode<synchronous>, transform_indices = @transform_7, window_bounds = array<i64: 512, 8>}]} {
    %c256_i32 = arith.constant 256 : i32
    %0 = arith.muli %arg1, %c256_i32 : i32
    %1 = tpu.assume_multiple %0, 256 : i32
    %c0_i32 = arith.constant 0 : i32
    %2 = arith.cmpi eq, %arg0, %c0_i32 : i32
    %c0_i32_0 = arith.constant 0 : i32
    %3 = arith.cmpi eq, %arg1, %c0_i32_0 : i32
    %4 = arith.andi %2, %3 : i1
    %5 = arith.extui %4 : i1 to i32
    %c0_i32_1 = arith.constant 0 : i32
    %6 = arith.cmpi ne, %5, %c0_i32_1 : i32
    scf.if %6 {
      %cst = arith.constant 0.000000e+00 : f32
      %23 = vector.broadcast %cst : f32 to vector<2x8xf32>
      %c0 = arith.constant 0 : index
      %c0_11 = arith.constant 0 : index
      %24 = vector.load %arg11[%c0, %c0_11] : memref<2x8xf32, #tpu.memory_space<vmem>>, vector<2x8xf32>
      tpu.vector_store %arg11[%c0, %c0_11], %23 {strides = array<i32>} : memref<2x8xf32, #tpu.memory_space<vmem>>, vector<2x8xf32>,
    } else {
    }
    %c0_i32_2 = arith.constant 0 : i32
    %7 = arith.cmpi eq, %arg0, %c0_i32_2 : i32
    %8 = arith.extui %7 : i1 to i32
    %c0_i32_3 = arith.constant 0 : i32
    %9 = arith.cmpi ne, %8, %c0_i32_3 : i32
    scf.if %9 {
      %c0 = arith.constant 0 : index
      %c0_11 = arith.constant 0 : index
      %c0_12 = arith.constant 0 : index
      %c0_13 = arith.constant 0 : index
      %23 = vector.load %arg2[%c0, %c0_11, %c0_12, %c0_13] : memref<1x16x16x4xf32, #tpu.memory_space<vmem>>, vector<1x16x16x4xf32>
      %24 = vector.shape_cast %23 : vector<1x16x16x4xf32> to vector<16x16x4xf32>
      %25 = vector.extract_strided_slice %24 {offsets = [0, 1, 0], sizes = [16, 1, 4], strides = [1, 1, 1]} : vector<16x16x4xf32> to vector<16x1x4xf32>
      %26 = vector.extract_strided_slice %24 {offsets = [0, 14, 0], sizes = [16, 1, 4], strides = [1, 1, 1]} : vector<16x16x4xf32> to vector<16x1x4xf32>
      %27 = tpu.concatenate %25, %24, %26 in 1 : vector<16x1x4xf32>, vector<16x16x4xf32>, vector<16x1x4xf32> -> vector<16x18x4xf32>
      %28 = vector.extract_strided_slice %27 {offsets = [1, 0, 0], sizes = [1, 18, 4], strides = [1, 1, 1]} : vector<16x18x4xf32> to vector<1x18x4xf32>
      %29 = vector.extract_strided_slice %27 {offsets = [14, 0, 0], sizes = [1, 18, 4], strides = [1, 1, 1]} : vector<16x18x4xf32> to vector<1x18x4xf32>
      %30 = tpu.concatenate %28, %27, %29 in 0 : vector<1x18x4xf32>, vector<16x18x4xf32>, vector<1x18x4xf32> -> vector<18x18x4xf32>
      %31 = vector.extract_strided_slice %30 {offsets = [0, 0, 0], sizes = [16, 16, 4], strides = [1, 1, 1]} : vector<18x18x4xf32> to vector<16x16x4xf32>
      %32 = vector.extract_strided_slice %30 {offsets = [0, 1, 0], sizes = [16, 16, 4], strides = [1, 1, 1]} : vector<18x18x4xf32> to vector<16x16x4xf32>
      %33 = vector.extract_strided_slice %30 {offsets = [0, 2, 0], sizes = [16, 16, 4], strides = [1, 1, 1]} : vector<18x18x4xf32> to vector<16x16x4xf32>
      %34 = vector.extract_strided_slice %30 {offsets = [1, 0, 0], sizes = [16, 16, 4], strides = [1, 1, 1]} : vector<18x18x4xf32> to vector<16x16x4xf32>
      %35 = vector.extract_strided_slice %30 {offsets = [1, 1, 0], sizes = [16, 16, 4], strides = [1, 1, 1]} : vector<18x18x4xf32> to vector<16x16x4xf32>
      %36 = vector.extract_strided_slice %30 {offsets = [1, 2, 0], sizes = [16, 16, 4], strides = [1, 1, 1]} : vector<18x18x4xf32> to vector<16x16x4xf32>
      %37 = vector.extract_strided_slice %30 {offsets = [2, 0, 0], sizes = [16, 16, 4], strides = [1, 1, 1]} : vector<18x18x4xf32> to vector<16x16x4xf32>
      %38 = vector.extract_strided_slice %30 {offsets = [2, 1, 0], sizes = [16, 16, 4], strides = [1, 1, 1]} : vector<18x18x4xf32> to vector<16x16x4xf32>
      %39 = vector.extract_strided_slice %30 {offsets = [2, 2, 0], sizes = [16, 16, 4], strides = [1, 1, 1]} : vector<18x18x4xf32> to vector<16x16x4xf32>
      %40 = tpu.concatenate %31, %32, %33, %34, %35, %36, %37, %38, %39 in 2 : vector<16x16x4xf32>, vector<16x16x4xf32>, vector<16x16x4xf32>, vector<16x16x4xf32>, vector<16x16x4xf32>, vector<16x16x4xf32>, vector<16x16x4xf32>, vector<16x16x4xf32>, vector<16x16x4xf32> -> vector<16x16x36xf32>
      %41 = vector.shape_cast %40 : vector<16x16x36xf32> to vector<256x36xf32>
      %c0_14 = arith.constant 0 : index
      %c0_15 = arith.constant 0 : index
      %42 = vector.load %arg3[%c0_14, %c0_15] : memref<36x8xf32, #tpu.memory_space<vmem>>, vector<36x8xf32>
      %cst = arith.constant dense<0.000000e+00> : vector<256x8xf32>
      %43 = tpu.matmul %41, %42, %cst {dimension_numbers = #tpu.dot_dimension_numbers<[1], [0], [0], [1], [0, 0, 1, 1], [], []>} : vector<256x36xf32>, vector<36x8xf32>, vector<256x8xf32> -> vector<256x8xf32>
      %44 = arith.index_cast %1 : i32 to index
      %c0_16 = arith.constant 0 : index
      %45 = vector.load %arg10[%44, %c0_16] : memref<512x8xf32, #tpu.memory_space<vmem>>, vector<256x8xf32>
      tpu.vector_store %arg10[%44, %c0_16], %43 {strides = array<i32>} : memref<512x8xf32, #tpu.memory_space<vmem>>, vector<256x8xf32>,
      %c0_17 = arith.constant 0 : index
      %c0_18 = arith.constant 0 : index
      %46 = vector.load %arg11[%c0_17, %c0_18] : memref<2x8xf32, #tpu.memory_space<vmem>>, vector<1x8xf32>
      %cst_19 = arith.constant dense<0.000000e+00> : vector<8xf32>
      %47 = vector.multi_reduction <add>, %43, %cst_19 [0] : vector<256x8xf32> to vector<8xf32>
      %48 = vector.shape_cast %47 : vector<8xf32> to vector<1x8xf32>
      %49 = arith.addf %46, %48 : vector<1x8xf32>
      %c0_20 = arith.constant 0 : index
      %c0_21 = arith.constant 0 : index
      %50 = vector.load %arg11[%c0_20, %c0_21] : memref<2x8xf32, #tpu.memory_space<vmem>>, vector<1x8xf32>
      tpu.vector_store %arg11[%c0_20, %c0_21], %49 {strides = array<i32>} : memref<2x8xf32, #tpu.memory_space<vmem>>, vector<1x8xf32>,
      %c1 = arith.constant 1 : index
      %c0_22 = arith.constant 0 : index
      %51 = vector.load %arg11[%c1, %c0_22] : memref<2x8xf32, #tpu.memory_space<vmem>>, vector<1x8xf32>
      %52 = arith.mulf %43, %43 : vector<256x8xf32>
      %cst_23 = arith.constant dense<0.000000e+00> : vector<8xf32>
      %53 = vector.multi_reduction <add>, %52, %cst_23 [0] : vector<256x8xf32> to vector<8xf32>
      %54 = vector.shape_cast %53 : vector<8xf32> to vector<1x8xf32>
      %55 = arith.addf %51, %54 : vector<1x8xf32>
      %c1_24 = arith.constant 1 : index
      %c0_25 = arith.constant 0 : index
      %56 = vector.load %arg11[%c1_24, %c0_25] : memref<2x8xf32, #tpu.memory_space<vmem>>, vector<1x8xf32>
      tpu.vector_store %arg11[%c1_24, %c0_25], %55 {strides = array<i32>} : memref<2x8xf32, #tpu.memory_space<vmem>>, vector<1x8xf32>,
    } else {
    }
    %c1_i32 = arith.constant 1 : i32
    %10 = arith.cmpi eq, %arg0, %c1_i32 : i32
    %c0_i32_4 = arith.constant 0 : i32
    %11 = arith.cmpi eq, %arg1, %c0_i32_4 : i32
    %12 = arith.andi %10, %11 : i1
    %13 = arith.extui %12 : i1 to i32
    %c0_i32_5 = arith.constant 0 : i32
    %14 = arith.cmpi ne, %13, %c0_i32_5 : i32
    scf.if %14 {
      %c0 = arith.constant 0 : index
      %c0_11 = arith.constant 0 : index
      %23 = vector.load %arg11[%c0, %c0_11] : memref<2x8xf32, #tpu.memory_space<vmem>>, vector<1x8xf32>
      %cst = arith.constant 0.001953125 : f32
      %24 = vector.broadcast %cst : f32 to vector<1x8xf32>
      %25 = arith.mulf %23, %24 : vector<1x8xf32>
      %c1 = arith.constant 1 : index
      %c0_12 = arith.constant 0 : index
      %26 = vector.load %arg11[%c1, %c0_12] : memref<2x8xf32, #tpu.memory_space<vmem>>, vector<1x8xf32>
      %cst_13 = arith.constant 0.001953125 : f32
      %27 = vector.broadcast %cst_13 : f32 to vector<1x8xf32>
      %28 = arith.mulf %26, %27 : vector<1x8xf32>
      %29 = arith.mulf %25, %25 : vector<1x8xf32>
      %30 = arith.subf %28, %29 : vector<1x8xf32>
      %c0_14 = arith.constant 0 : index
      %c0_15 = arith.constant 0 : index
      %31 = vector.load %arg5[%c0_14, %c0_15] : memref<1x8xf32, #tpu.memory_space<vmem>>, vector<1x8xf32>
      %cst_16 = arith.constant 9.99999974E-6 : f32
      %32 = vector.broadcast %cst_16 : f32 to vector<1x8xf32>
      %33 = arith.addf %30, %32 : vector<1x8xf32>
      %34 = math.rsqrt %33 : vector<1x8xf32>
      %35 = arith.mulf %31, %34 : vector<1x8xf32>
      %c0_17 = arith.constant 0 : index
      %c0_18 = arith.constant 0 : index
      %36 = vector.load %arg12[%c0_17, %c0_18] : memref<2x8xf32, #tpu.memory_space<vmem>>, vector<1x8xf32>
      tpu.vector_store %arg12[%c0_17, %c0_18], %35 {strides = array<i32>} : memref<2x8xf32, #tpu.memory_space<vmem>>, vector<1x8xf32>,
      %c0_19 = arith.constant 0 : index
      %c0_20 = arith.constant 0 : index
      %37 = vector.load %arg6[%c0_19, %c0_20] : memref<1x8xf32, #tpu.memory_space<vmem>>, vector<1x8xf32>
      %38 = arith.mulf %25, %35 : vector<1x8xf32>
      %39 = arith.subf %37, %38 : vector<1x8xf32>
      %c1_21 = arith.constant 1 : index
      %c0_22 = arith.constant 0 : index
      %40 = vector.load %arg12[%c1_21, %c0_22] : memref<2x8xf32, #tpu.memory_space<vmem>>, vector<1x8xf32>
      tpu.vector_store %arg12[%c1_21, %c0_22], %39 {strides = array<i32>} : memref<2x8xf32, #tpu.memory_space<vmem>>, vector<1x8xf32>,
      %cst_23 = arith.constant 0.000000e+00 : f32
      %41 = vector.broadcast %cst_23 : f32 to vector<2x8xf32>
      %c0_24 = arith.constant 0 : index
      %c0_25 = arith.constant 0 : index
      %42 = vector.load %arg13[%c0_24, %c0_25] : memref<2x8xf32, #tpu.memory_space<vmem>>, vector<2x8xf32>
      tpu.vector_store %arg13[%c0_24, %c0_25], %41 {strides = array<i32>} : memref<2x8xf32, #tpu.memory_space<vmem>>, vector<2x8xf32>,
    } else {
    }
    %c1_i32_6 = arith.constant 1 : i32
    %15 = arith.cmpi eq, %arg0, %c1_i32_6 : i32
    %16 = arith.extui %15 : i1 to i32
    %c0_i32_7 = arith.constant 0 : i32
    %17 = arith.cmpi ne, %16, %c0_i32_7 : i32
    scf.if %17 {
      %23 = arith.index_cast %1 : i32 to index
      %c0 = arith.constant 0 : index
      %24 = vector.load %arg10[%23, %c0] : memref<512x8xf32, #tpu.memory_space<vmem>>, vector<256x8xf32>
      %c0_11 = arith.constant 0 : index
      %c0_12 = arith.constant 0 : index
      %25 = vector.load %arg12[%c0_11, %c0_12] : memref<2x8xf32, #tpu.memory_space<vmem>>, vector<1x8xf32>
      %26 = vector.broadcast %25 : vector<1x8xf32> to vector<256x8xf32>
      %27 = arith.mulf %24, %26 : vector<256x8xf32>
      %c1 = arith.constant 1 : index
      %c0_13 = arith.constant 0 : index
      %28 = vector.load %arg12[%c1, %c0_13] : memref<2x8xf32, #tpu.memory_space<vmem>>, vector<1x8xf32>
      %29 = vector.broadcast %28 : vector<1x8xf32> to vector<256x8xf32>
      %30 = arith.addf %27, %29 : vector<256x8xf32>
      %cst = arith.constant 0.000000e+00 : f32
      %31 = vector.broadcast %cst : f32 to vector<256x8xf32>
      %32 = arith.cmpf oge, %30, %31 : vector<256x8xf32>
      %cst_14 = arith.constant 2.000000e-01 : f32
      %33 = vector.broadcast %cst_14 : f32 to vector<256x8xf32>
      %34 = arith.mulf %33, %30 : vector<256x8xf32>
      %35 = arith.select %32, %30, %34 : vector<256x8xi1>, vector<256x8xf32>
      %36 = vector.shape_cast %35 : vector<256x8xf32> to vector<16x16x8xf32>
      %37 = vector.extract_strided_slice %36 {offsets = [0, 1, 0], sizes = [16, 1, 8], strides = [1, 1, 1]} : vector<16x16x8xf32> to vector<16x1x8xf32>
      %38 = vector.extract_strided_slice %36 {offsets = [0, 14, 0], sizes = [16, 1, 8], strides = [1, 1, 1]} : vector<16x16x8xf32> to vector<16x1x8xf32>
      %39 = tpu.concatenate %37, %36, %38 in 1 : vector<16x1x8xf32>, vector<16x16x8xf32>, vector<16x1x8xf32> -> vector<16x18x8xf32>
      %40 = vector.extract_strided_slice %39 {offsets = [1, 0, 0], sizes = [1, 18, 8], strides = [1, 1, 1]} : vector<16x18x8xf32> to vector<1x18x8xf32>
      %41 = vector.extract_strided_slice %39 {offsets = [14, 0, 0], sizes = [1, 18, 8], strides = [1, 1, 1]} : vector<16x18x8xf32> to vector<1x18x8xf32>
      %42 = tpu.concatenate %40, %39, %41 in 0 : vector<1x18x8xf32>, vector<16x18x8xf32>, vector<1x18x8xf32> -> vector<18x18x8xf32>
      %43 = vector.extract_strided_slice %42 {offsets = [0, 0, 0], sizes = [16, 16, 8], strides = [1, 1, 1]} : vector<18x18x8xf32> to vector<16x16x8xf32>
      %44 = vector.extract_strided_slice %42 {offsets = [0, 1, 0], sizes = [16, 16, 8], strides = [1, 1, 1]} : vector<18x18x8xf32> to vector<16x16x8xf32>
      %45 = vector.extract_strided_slice %42 {offsets = [0, 2, 0], sizes = [16, 16, 8], strides = [1, 1, 1]} : vector<18x18x8xf32> to vector<16x16x8xf32>
      %46 = vector.extract_strided_slice %42 {offsets = [1, 0, 0], sizes = [16, 16, 8], strides = [1, 1, 1]} : vector<18x18x8xf32> to vector<16x16x8xf32>
      %47 = vector.extract_strided_slice %42 {offsets = [1, 1, 0], sizes = [16, 16, 8], strides = [1, 1, 1]} : vector<18x18x8xf32> to vector<16x16x8xf32>
      %48 = vector.extract_strided_slice %42 {offsets = [1, 2, 0], sizes = [16, 16, 8], strides = [1, 1, 1]} : vector<18x18x8xf32> to vector<16x16x8xf32>
      %49 = vector.extract_strided_slice %42 {offsets = [2, 0, 0], sizes = [16, 16, 8], strides = [1, 1, 1]} : vector<18x18x8xf32> to vector<16x16x8xf32>
      %50 = vector.extract_strided_slice %42 {offsets = [2, 1, 0], sizes = [16, 16, 8], strides = [1, 1, 1]} : vector<18x18x8xf32> to vector<16x16x8xf32>
      %51 = vector.extract_strided_slice %42 {offsets = [2, 2, 0], sizes = [16, 16, 8], strides = [1, 1, 1]} : vector<18x18x8xf32> to vector<16x16x8xf32>
      %52 = tpu.concatenate %43, %44, %45, %46, %47, %48, %49, %50, %51 in 2 : vector<16x16x8xf32>, vector<16x16x8xf32>, vector<16x16x8xf32>, vector<16x16x8xf32>, vector<16x16x8xf32>, vector<16x16x8xf32>, vector<16x16x8xf32>, vector<16x16x8xf32>, vector<16x16x8xf32> -> vector<16x16x72xf32>
      %53 = vector.shape_cast %52 : vector<16x16x72xf32> to vector<256x72xf32>
      %c0_15 = arith.constant 0 : index
      %c0_16 = arith.constant 0 : index
      %54 = vector.load %arg4[%c0_15, %c0_16] : memref<72x8xf32, #tpu.memory_space<vmem>>, vector<72x8xf32>
      %cst_17 = arith.constant dense<0.000000e+00> : vector<256x8xf32>
      %55 = tpu.matmul %53, %54, %cst_17 {dimension_numbers = #tpu.dot_dimension_numbers<[1], [0], [0], [1], [0, 0, 1, 1], [], []>} : vector<256x72xf32>, vector<72x8xf32>, vector<256x8xf32> -> vector<256x8xf32>
      %56 = arith.index_cast %1 : i32 to index
      %c0_18 = arith.constant 0 : index
      %57 = vector.load %arg9[%56, %c0_18] : memref<512x8xf32, #tpu.memory_space<vmem>>, vector<256x8xf32>
      tpu.vector_store %arg9[%56, %c0_18], %55 {strides = array<i32>} : memref<512x8xf32, #tpu.memory_space<vmem>>, vector<256x8xf32>,
      %c0_19 = arith.constant 0 : index
      %c0_20 = arith.constant 0 : index
      %58 = vector.load %arg13[%c0_19, %c0_20] : memref<2x8xf32, #tpu.memory_space<vmem>>, vector<1x8xf32>
      %cst_21 = arith.constant dense<0.000000e+00> : vector<8xf32>
      %59 = vector.multi_reduction <add>, %55, %cst_21 [0] : vector<256x8xf32> to vector<8xf32>
      %60 = vector.shape_cast %59 : vector<8xf32> to vector<1x8xf32>
      %61 = arith.addf %58, %60 : vector<1x8xf32>
      %c0_22 = arith.constant 0 : index
      %c0_23 = arith.constant 0 : index
      %62 = vector.load %arg13[%c0_22, %c0_23] : memref<2x8xf32, #tpu.memory_space<vmem>>, vector<1x8xf32>
      tpu.vector_store %arg13[%c0_22, %c0_23], %61 {strides = array<i32>} : memref<2x8xf32, #tpu.memory_space<vmem>>, vector<1x8xf32>,
      %c1_24 = arith.constant 1 : index
      %c0_25 = arith.constant 0 : index
      %63 = vector.load %arg13[%c1_24, %c0_25] : memref<2x8xf32, #tpu.memory_space<vmem>>, vector<1x8xf32>
      %64 = arith.mulf %55, %55 : vector<256x8xf32>
      %cst_26 = arith.constant dense<0.000000e+00> : vector<8xf32>
      %65 = vector.multi_reduction <add>, %64, %cst_26 [0] : vector<256x8xf32> to vector<8xf32>
      %66 = vector.shape_cast %65 : vector<8xf32> to vector<1x8xf32>
      %67 = arith.addf %63, %66 : vector<1x8xf32>
      %c1_27 = arith.constant 1 : index
      %c0_28 = arith.constant 0 : index
      %68 = vector.load %arg13[%c1_27, %c0_28] : memref<2x8xf32, #tpu.memory_space<vmem>>, vector<1x8xf32>
      tpu.vector_store %arg13[%c1_27, %c0_28], %67 {strides = array<i32>} : memref<2x8xf32, #tpu.memory_space<vmem>>, vector<1x8xf32>,
    } else {
    }
    %c1_i32_8 = arith.constant 1 : i32
    %18 = arith.cmpi eq, %arg0, %c1_i32_8 : i32
    %c1_i32_9 = arith.constant 1 : i32
    %19 = arith.cmpi eq, %arg1, %c1_i32_9 : i32
    %20 = arith.andi %18, %19 : i1
    %21 = arith.extui %20 : i1 to i32
    %c0_i32_10 = arith.constant 0 : i32
    %22 = arith.cmpi ne, %21, %c0_i32_10 : i32
    scf.if %22 {
      %c0 = arith.constant 0 : index
      %c0_11 = arith.constant 0 : index
      %23 = vector.load %arg13[%c0, %c0_11] : memref<2x8xf32, #tpu.memory_space<vmem>>, vector<1x8xf32>
      %cst = arith.constant 0.001953125 : f32
      %24 = vector.broadcast %cst : f32 to vector<1x8xf32>
      %25 = arith.mulf %23, %24 : vector<1x8xf32>
      %c1 = arith.constant 1 : index
      %c0_12 = arith.constant 0 : index
      %26 = vector.load %arg13[%c1, %c0_12] : memref<2x8xf32, #tpu.memory_space<vmem>>, vector<1x8xf32>
      %cst_13 = arith.constant 0.001953125 : f32
      %27 = vector.broadcast %cst_13 : f32 to vector<1x8xf32>
      %28 = arith.mulf %26, %27 : vector<1x8xf32>
      %29 = arith.mulf %25, %25 : vector<1x8xf32>
      %30 = arith.subf %28, %29 : vector<1x8xf32>
      %c0_14 = arith.constant 0 : index
      %c0_15 = arith.constant 0 : index
      %31 = vector.load %arg7[%c0_14, %c0_15] : memref<1x8xf32, #tpu.memory_space<vmem>>, vector<1x8xf32>
      %cst_16 = arith.constant 9.99999974E-6 : f32
      %32 = vector.broadcast %cst_16 : f32 to vector<1x8xf32>
      %33 = arith.addf %30, %32 : vector<1x8xf32>
      %34 = math.rsqrt %33 : vector<1x8xf32>
      %35 = arith.mulf %31, %34 : vector<1x8xf32>
      %c0_17 = arith.constant 0 : index
      %c0_18 = arith.constant 0 : index
      %36 = vector.load %arg8[%c0_17, %c0_18] : memref<1x8xf32, #tpu.memory_space<vmem>>, vector<1x8xf32>
      %37 = arith.mulf %25, %35 : vector<1x8xf32>
      %38 = arith.subf %36, %37 : vector<1x8xf32>
      %c0_19 = arith.constant 0 : index
      %c0_20 = arith.constant 0 : index
      %39 = vector.load %arg9[%c0_19, %c0_20] : memref<512x8xf32, #tpu.memory_space<vmem>>, vector<512x8xf32>
      %40 = vector.broadcast %35 : vector<1x8xf32> to vector<512x8xf32>
      %41 = arith.mulf %39, %40 : vector<512x8xf32>
      %42 = vector.broadcast %38 : vector<1x8xf32> to vector<512x8xf32>
      %43 = arith.addf %41, %42 : vector<512x8xf32>
      %cst_21 = arith.constant 0.000000e+00 : f32
      %44 = vector.broadcast %cst_21 : f32 to vector<512x8xf32>
      %45 = arith.cmpf oge, %43, %44 : vector<512x8xf32>
      %cst_22 = arith.constant 2.000000e-01 : f32
      %46 = vector.broadcast %cst_22 : f32 to vector<512x8xf32>
      %47 = arith.mulf %46, %43 : vector<512x8xf32>
      %48 = arith.select %45, %43, %47 : vector<512x8xi1>, vector<512x8xf32>
      %c0_23 = arith.constant 0 : index
      %c0_24 = arith.constant 0 : index
      %49 = vector.load %arg9[%c0_23, %c0_24] : memref<512x8xf32, #tpu.memory_space<vmem>>, vector<512x8xf32>
      tpu.vector_store %arg9[%c0_23, %c0_24], %48 {strides = array<i32>} : memref<512x8xf32, #tpu.memory_space<vmem>>, vector<512x8xf32>,
    } else {
    }
    return
  }
  func.func @transform_0(%arg0: i32, %arg1: i32) -> (i32, i32, i32, i32) {
    %c1_i32 = arith.constant 1 : i32
    %0 = arith.subi %c1_i32, %arg0 : i32
    %1 = arith.muli %arg1, %0 : i32
    %c1_i32_0 = arith.constant 1 : i32
    %2 = arith.muli %c1_i32_0, %arg0 : i32
    %3 = arith.addi %1, %2 : i32
    %c0_i32 = arith.constant 0 : i32
    %c0_i32_1 = arith.constant 0 : i32
    %c0_i32_2 = arith.constant 0 : i32
    %c0_i32_3 = arith.constant 0 : i32
    return %3, %c0_i32, %c0_i32_1, %c0_i32_2 : i32, i32, i32, i32
  }
  func.func @transform_1(%arg0: i32, %arg1: i32) -> (i32, i32) {
    %c0_i32 = arith.constant 0 : i32
    %c0_i32_0 = arith.constant 0 : i32
    %c0_i32_1 = arith.constant 0 : i32
    return %c0_i32, %c0_i32_0 : i32, i32
  }
  func.func @transform_2(%arg0: i32, %arg1: i32) -> (i32, i32) {
    %c0_i32 = arith.constant 0 : i32
    %c0_i32_0 = arith.constant 0 : i32
    %c0_i32_1 = arith.constant 0 : i32
    return %c0_i32, %c0_i32_0 : i32, i32
  }
  func.func @transform_3(%arg0: i32, %arg1: i32) -> (i32, i32) {
    %c0_i32 = arith.constant 0 : i32
    %c0_i32_0 = arith.constant 0 : i32
    %c0_i32_1 = arith.constant 0 : i32
    return %c0_i32, %c0_i32_0 : i32, i32
  }
  func.func @transform_4(%arg0: i32, %arg1: i32) -> (i32, i32) {
    %c0_i32 = arith.constant 0 : i32
    %c0_i32_0 = arith.constant 0 : i32
    %c0_i32_1 = arith.constant 0 : i32
    return %c0_i32, %c0_i32_0 : i32, i32
  }
  func.func @transform_5(%arg0: i32, %arg1: i32) -> (i32, i32) {
    %c0_i32 = arith.constant 0 : i32
    %c0_i32_0 = arith.constant 0 : i32
    %c0_i32_1 = arith.constant 0 : i32
    return %c0_i32, %c0_i32_0 : i32, i32
  }
  func.func @transform_6(%arg0: i32, %arg1: i32) -> (i32, i32) {
    %c0_i32 = arith.constant 0 : i32
    %c0_i32_0 = arith.constant 0 : i32
    %c0_i32_1 = arith.constant 0 : i32
    return %c0_i32, %c0_i32_0 : i32, i32
  }
  func.func @transform_7(%arg0: i32, %arg1: i32) -> (i32, i32) {
    %c0_i32 = arith.constant 0 : i32
    %c0_i32_0 = arith.constant 0 : i32
    %c0_i32_1 = arith.constant 0 : i32
    return %c0_i32, %c0_i32_0 : i32, i32
  }
}

</mosaic_0001>

<llo_original>
// kernel: tpu_custom_call.1
$region0: #{tpu_custom_call.1}
  #allocation0 [shape = 'u32[]', space=smem, size = 0x4, offset = 0x4, fixed_abs, tag = 'smem constant byte address 0x4 - core index']
  #allocation1 [shape = 'u32[144,128]{1,0:T(1,128)}', space=vmem, size = 0x12000, scoped, tag = 'internal scratch']
  #allocation2 [shape = 'f32[512,8]{1,0:T(8,128)}', space=vmem, size = 0x40000, scoped, tag = 'scratch operand']
  #allocation3 [shape = 'f32[2,8]{1,0:T(2,128)}', space=vmem, size = 0x400, scoped, tag = 'scratch operand']
  #allocation4 [shape = 'f32[2,8]{1,0:T(2,128)}', space=vmem, size = 0x400, scoped, tag = 'scratch operand']
  #allocation5 [shape = 'f32[2,8]{1,0:T(2,128)}', space=vmem, size = 0x400, scoped, tag = 'scratch operand']
  %s0 = inlined_call_operand.vmem [shape: f32[2,16,16,4], index: 0, kind: input, shape index: {}]
  %s1 = inlined_call_operand.vmem [shape: f32[36,8], index: 1, kind: input, shape index: {}]
  %s2 = inlined_call_operand.vmem [shape: f32[72,8], index: 2, kind: input, shape index: {}]
  %s3 = inlined_call_operand.vmem [shape: f32[1,8], index: 3, kind: input, shape index: {}]
  %s4 = inlined_call_operand.vmem [shape: f32[1,8], index: 4, kind: input, shape index: {}]
  %s5 = inlined_call_operand.vmem [shape: f32[1,8], index: 5, kind: input, shape index: {}]
  %s6 = inlined_call_operand.vmem [shape: f32[1,8], index: 6, kind: input, shape index: {}]
  %s7 = inlined_call_operand.vmem [shape: f32[512,8], index: 7, kind: output, shape index: {}]
  %s8 = sld [smem:[#allocation0]]
  $region81: #{tpu_custom_call.1} parent=0
    _
  %s10 = ssub.s32 1, %s8
  %s11 = scalar_select 0, %s10, %s8
  loop: start=0, step=1, limit=6
  $region2: #{tpu_custom_call.1} parent=0 // loop_pre_header
    _
  $region3: #{tpu_custom_call.1} parent=0 // loop_header
    %s13 = sphi 0, %s17
    %p14 = scmp.ge.s32.totalorder %s13, 6
    %s20 = sphi 0, %s32
    %s21 = sphi 0, %s28
    %s22 = sphi 0, %s20
    %s23 = sphi 0, %s21
    %s24 = sphi 0, %s22
    %s25 = sphi 0, %s23
    %s41 = sphi 0, %s43
    %s44 = sphi 0, %s41
    %s45 = sphi 0, %s44
    %s61 = sphi 0, %s45
    %s65 = sphi 0, %s65
    %s67 = sphi 0, %s65
    %s68 = sphi 0, %s67
    %s82 = sphi 0, %s68
    %s86 = sphi 0, %s86
    %s88 = sphi 0, %s86
    %s89 = sphi 0, %s88
    %s103 = sphi 0, %s89
    %s107 = sphi 0, %s107
    %s109 = sphi 0, %s107
    %s110 = sphi 0, %s109
    %s124 = sphi 0, %s110
    %s128 = sphi 0, %s128
    %s130 = sphi 0, %s128
    %s131 = sphi 0, %s130
    %s145 = sphi 0, %s131
    %s149 = sphi 0, %s149
    %s151 = sphi 0, %s149
    %s152 = sphi 0, %s151
    %s166 = sphi 0, %s152
    %s170 = sphi 0, %s170
    %s172 = sphi 0, %s170
    %s173 = sphi 0, %s172
    %s187 = sphi 0, %s173
    %s191 = sphi 0, %s191
    %s193 = sphi 0, %s191
    %s194 = sphi 0, %s193
    %s208 = sphi 0, %s194
  $region4: #{tpu_custom_call.1} parent=0 // loop_header_branch
    %16 = sbr.rel (%p14) target = $region8
  $region5: #{tpu_custom_call.1} parent=0 // loop_body
    %s18 = ssub.s32 %s13, 1
    %s19 = ssub.s32 %s13, 2
    %s26 = sadd.s32 1, %s21
    %p27 = scmp.ge.s32.totalorder %s26, 2
    %s28 = scalar_select %p27, 0, %s26
    %s29 = sadd.s32 1, %s20
    %s30 = scalar_select %p27, %s29, %s20
    %p31 = scmp.ge.s32.totalorder %s30, 2
    %s32 = scalar_select %p31, 0, %s30
    %s33 = ssub.s32 1, %s20
    %s34 = smul.u32 %s21, %s33
    %s35 = sadd.s32 %s34, %s20
    %s36 = ssub.s32 1, %s32
    %s37 = smul.u32 %s28, %s36
    %s38 = sadd.s32 %s37, %s32
    %s39 = ssub.s32 %s35, %s38
    %p40 = scmp.eq.s32.totalorder %s39, 0
    %s42 = sadd.s32 %s41, 1
    %s43 = scalar_select %p40, %s41, %s42
    %p46 = pneg %p40
    %p47 = scmp.eq.s32.totalorder %s13, 3
    %p48 = por %p46, %p47
    %p49 = scmp.ne.s32.totalorder %s41, %s44
    %p50 = scmp.eq.s32.totalorder %s13, 0
    %p51 = por %p49, %p50
    %p52 = scmp.ne.s32.totalorder %s41, %s44
    %p53 = scmp.eq.s32.totalorder %s18, 3
    %p54 = por %p52, %p53
    %p55 = scmp.ne.s32.totalorder %s44, %s45
    %p56 = scmp.eq.s32.totalorder %s18, 0
    %p57 = por %p55, %p56
    %p58 = scmp.ne.s32.totalorder %s44, %s45
    %p59 = scmp.eq.s32.totalorder %s19, 3
    %p60 = por %p58, %p59
    %p62 = scmp.ne.s32.totalorder %s45, %s61
    %p63 = scmp.eq.s32.totalorder %s19, 0
    %p64 = por %p62, %p63
    %s66 = sadd.s32 %s65, 1
    %p69 = scmp.eq.s32.totalorder %s13, 3
    %p70 = scmp.ne.s32.totalorder %s65, %s67
    %p71 = scmp.eq.s32.totalorder %s13, 0
    %p72 = por %p70, %p71
    %p73 = scmp.ne.s32.totalorder %s65, %s67
    %p74 = scmp.eq.s32.totalorder %s18, 3
    %p75 = por %p73, %p74
    %p76 = scmp.ne.s32.totalorder %s67, %s68
    %p77 = scmp.eq.s32.totalorder %s18, 0
    %p78 = por %p76, %p77
    %p79 = scmp.ne.s32.totalorder %s67, %s68
    %p80 = scmp.eq.s32.totalorder %s19, 3
    %p81 = por %p79, %p80
    %p83 = scmp.ne.s32.totalorder %s68, %s82
    %p84 = scmp.eq.s32.totalorder %s19, 0
    %p85 = por %p83, %p84
    %s87 = sadd.s32 %s86, 1
    %p90 = scmp.eq.s32.totalorder %s13, 3
    %p91 = scmp.ne.s32.totalorder %s86, %s88
    %p92 = scmp.eq.s32.totalorder %s13, 0
    %p93 = por %p91, %p92
    %p94 = scmp.ne.s32.totalorder %s86, %s88
    %p95 = scmp.eq.s32.totalorder %s18, 3
    %p96 = por %p94, %p95
    %p97 = scmp.ne.s32.totalorder %s88, %s89
    %p98 = scmp.eq.s32.totalorder %s18, 0
    %p99 = por %p97, %p98
    %p100 = scmp.ne.s32.totalorder %s88, %s89
    %p101 = scmp.eq.s32.totalorder %s19, 3
    %p102 = por %p100, %p101
    %p104 = scmp.ne.s32.totalorder %s89, %s103
    %p105 = scmp.eq.s32.totalorder %s19, 0
    %p106 = por %p104, %p105
    %s108 = sadd.s32 %s107, 1
    %p111 = scmp.eq.s32.totalorder %s13, 3
    %p112 = scmp.ne.s32.totalorder %s107, %s109
    %p113 = scmp.eq.s32.totalorder %s13, 0
    %p114 = por %p112, %p113
    %p115 = scmp.ne.s32.totalorder %s107, %s109
    %p116 = scmp.eq.s32.totalorder %s18, 3
    %p117 = por %p115, %p116
    %p118 = scmp.ne.s32.totalorder %s109, %s110
    %p119 = scmp.eq.s32.totalorder %s18, 0
    %p120 = por %p118, %p119
    %p121 = scmp.ne.s32.totalorder %s109, %s110
    %p122 = scmp.eq.s32.totalorder %s19, 3
    %p123 = por %p121, %p122
    %p125 = scmp.ne.s32.totalorder %s110, %s124
    %p126 = scmp.eq.s32.totalorder %s19, 0
    %p127 = por %p125, %p126
    %s129 = sadd.s32 %s128, 1
    %p132 = scmp.eq.s32.totalorder %s13, 3
    %p133 = scmp.ne.s32.totalorder %s128, %s130
    %p134 = scmp.eq.s32.totalorder %s13, 0
    %p135 = por %p133, %p134
    %p136 = scmp.ne.s32.totalorder %s128, %s130
    %p137 = scmp.eq.s32.totalorder %s18, 3
    %p138 = por %p136, %p137
    %p139 = scmp.ne.s32.totalorder %s130, %s131
    %p140 = scmp.eq.s32.totalorder %s18, 0
    %p141 = por %p139, %p140
    %p142 = scmp.ne.s32.totalorder %s130, %s131
    %p143 = scmp.eq.s32.totalorder %s19, 3
    %p144 = por %p142, %p143
    %p146 = scmp.ne.s32.totalorder %s131, %s145
    %p147 = scmp.eq.s32.totalorder %s19, 0
    %p148 = por %p146, %p147
    %s150 = sadd.s32 %s149, 1
    %p153 = scmp.eq.s32.totalorder %s13, 3
    %p154 = scmp.ne.s32.totalorder %s149, %s151
    %p155 = scmp.eq.s32.totalorder %s13, 0
    %p156 = por %p154, %p155
    %p157 = scmp.ne.s32.totalorder %s149, %s151
    %p158 = scmp.eq.s32.totalorder %s18, 3
    %p159 = por %p157, %p158
    %p160 = scmp.ne.s32.totalorder %s151, %s152
    %p161 = scmp.eq.s32.totalorder %s18, 0
    %p162 = por %p160, %p161
    %p163 = scmp.ne.s32.totalorder %s151, %s152
    %p164 = scmp.eq.s32.totalorder %s19, 3
    %p165 = por %p163, %p164
    %p167 = scmp.ne.s32.totalorder %s152, %s166
    %p168 = scmp.eq.s32.totalorder %s19, 0
    %p169 = por %p167, %p168
    %s171 = sadd.s32 %s170, 1
    %p174 = scmp.eq.s32.totalorder %s13, 3
    %p175 = scmp.ne.s32.totalorder %s170, %s172
    %p176 = scmp.eq.s32.totalorder %s13, 0
    %p177 = por %p175, %p176
    %p178 = scmp.ne.s32.totalorder %s170, %s172
    %p179 = scmp.eq.s32.totalorder %s18, 3
    %p180 = por %p178, %p179
    %p181 = scmp.ne.s32.totalorder %s172, %s173
    %p182 = scmp.eq.s32.totalorder %s18, 0
    %p183 = por %p181, %p182
    %p184 = scmp.ne.s32.totalorder %s172, %s173
    %p185 = scmp.eq.s32.totalorder %s19, 3
    %p186 = por %p184, %p185
    %p188 = scmp.ne.s32.totalorder %s173, %s187
    %p189 = scmp.eq.s32.totalorder %s19, 0
    %p190 = por %p188, %p189
    %s192 = sadd.s32 %s191, 1
    %p195 = scmp.eq.s32.totalorder %s13, 3
    %p196 = scmp.ne.s32.totalorder %s191, %s193
    %p197 = scmp.eq.s32.totalorder %s13, 0
    %p198 = por %p196, %p197
    %p199 = scmp.ne.s32.totalorder %s191, %s193
    %p200 = scmp.eq.s32.totalorder %s18, 3
    %p201 = por %p199, %p200
    %p202 = scmp.ne.s32.totalorder %s193, %s194
    %p203 = scmp.eq.s32.totalorder %s18, 0
    %p204 = por %p202, %p203
    %p205 = scmp.ne.s32.totalorder %s193, %s194
    %p206 = scmp.eq.s32.totalorder %s19, 3
    %p207 = por %p205, %p206
    %p209 = scmp.ne.s32.totalorder %s194, %s208
    %p210 = scmp.eq.s32.totalorder %s19, 0
    %p211 = por %p209, %p210
    %p212 = scmp.le.s32.totalorder 1, %s13
    %p213 = scmp.lt.s32.totalorder %s13, 5
    %p214 = pnand %p212, %p213
    %p215 = pneg %p214
    // Predicated region
    $region9: #{tpu_custom_call.1} parent=5 // pred_check
      _
    $region10: #{tpu_custom_call.1} parent=5 // pred_check_branch
      %217 = sbr.rel (%p214) target = $region12
    $region11: #{tpu_custom_call.1} parent=5 // pred_region
      %s218 = ssub.s32 %s13, 1
      // Predicated region
      $region13: #{tpu_custom_call.1} parent=11 // pred_check
        %p219 = pneg %p78
      $region14: #{tpu_custom_call.1} parent=11 // pred_check_branch
        %221 = sbr.rel (%p219) target = $region16
      $region15: #{tpu_custom_call.1} parent=11 // pred_region
        _
      $region16: #{tpu_custom_call.1} parent=11 // pred_fallthru
        _
      // Predicated region
      $region17: #{tpu_custom_call.1} parent=11 // pred_check
        %p222 = pneg %p99
      $region18: #{tpu_custom_call.1} parent=11 // pred_check_branch
        %224 = sbr.rel (%p222) target = $region20
      $region19: #{tpu_custom_call.1} parent=11 // pred_region
        _
      $region20: #{tpu_custom_call.1} parent=11 // pred_fallthru
        _
      // Predicated region
      $region21: #{tpu_custom_call.1} parent=11 // pred_check
        %p225 = pneg %p120
      $region22: #{tpu_custom_call.1} parent=11 // pred_check_branch
        %227 = sbr.rel (%p225) target = $region24
      $region23: #{tpu_custom_call.1} parent=11 // pred_region
        _
      $region24: #{tpu_custom_call.1} parent=11 // pred_fallthru
        _
      // Predicated region
      $region25: #{tpu_custom_call.1} parent=11 // pred_check
        %p228 = pneg %p141
      $region26: #{tpu_custom_call.1} parent=11 // pred_check_branch
        %230 = sbr.rel (%p228) target = $region28
      $region27: #{tpu_custom_call.1} parent=11 // pred_region
        _
      $region28: #{tpu_custom_call.1} parent=11 // pred_fallthru
        _
      // Predicated region
      $region29: #{tpu_custom_call.1} parent=11 // pred_check
        %p231 = pneg %p162
      $region30: #{tpu_custom_call.1} parent=11 // pred_check_branch
        %233 = sbr.rel (%p231) target = $region32
      $region31: #{tpu_custom_call.1} parent=11 // pred_region
        _
      $region32: #{tpu_custom_call.1} parent=11 // pred_fallthru
        _
      // Predicated region
      $region33: #{tpu_custom_call.1} parent=11 // pred_check
        %p234 = pneg %p183
      $region34: #{tpu_custom_call.1} parent=11 // pred_check_branch
        %236 = sbr.rel (%p234) target = $region36
      $region35: #{tpu_custom_call.1} parent=11 // pred_region
        _
      $region36: #{tpu_custom_call.1} parent=11 // pred_fallthru
        _
    $region12: #{tpu_custom_call.1} parent=5 // pred_fallthru
      _
    %p237 = scmp.lt.s32.totalorder %s13, 4
    // Predicated region
    $region37: #{tpu_custom_call.1} parent=5 // pred_check
      %p238 = pneg %p237
    $region38: #{tpu_custom_call.1} parent=5 // pred_check_branch
      %240 = sbr.rel (%p238) target = $region40
    $region39: #{tpu_custom_call.1} parent=5 // pred_region
      // Predicated region
      $region41: #{tpu_custom_call.1} parent=39 // pred_check
        %p241 = pneg %p51
      $region42: #{tpu_custom_call.1} parent=39 // pred_check_branch
        %243 = sbr.rel (%p241) target = $region44
      $region43: #{tpu_custom_call.1} parent=39 // pred_region
        %s244 = ssub.s32 1, %s20
        %s245 = smul.u32 %s21, %s244
        %s246 = sadd.s32 %s245, %s20
        %p247 = scmp.lt.s32.totalorder %s246, 1
        %s248 = scalar_select %p247, %s246, 1
        %s249 = smul.addr %s248, 32
        %s250 = smul.addr %s249, 8
        %s251 = scalar_lea.vmem %s0, %s250
        %s252 = ssub.s32 1, %s20
        %s253 = smul.u32 %s21, %s252
        %s254 = sadd.s32 %s253, %s20
      $region44: #{tpu_custom_call.1} parent=39 // pred_fallthru
        _
    $region40: #{tpu_custom_call.1} parent=5 // pred_fallthru
      _
    %p255 = scmp.le.s32.totalorder 1, %s13
    %p256 = scmp.lt.s32.totalorder %s13, 5
    %p257 = pnand %p255, %p256
    %p258 = pneg %p257
    // Predicated region
    $region45: #{tpu_custom_call.1} parent=5 // pred_check
      _
    $region46: #{tpu_custom_call.1} parent=5 // pred_check_branch
      %260 = sbr.rel (%p257) target = $region48
    $region47: #{tpu_custom_call.1} parent=5 // pred_region
      %s261 = ssub.s32 %s13, 1
      %s262 = ssub.s32 1, %s22
      %s263 = smul.u32 %s23, %s262
      %s264 = sadd.s32 %s263, %s22
      %p265 = scmp.lt.s32.totalorder %s264, 1
      %s266 = scalar_select %p265, %s264, 1
      %s267 = smul.addr %s266, 32
      %s268 = smul.addr %s267, 8
      %s269 = scalar_lea.vmem %s0, %s268
      %p270 = pneg %p57
      %p271 = pneg %p54
      %p272 = pneg %p78
      %p273 = pneg %p75
      %p274 = pneg %p99
      %p275 = pneg %p96
      %p276 = pneg %p120
      %p277 = pneg %p117
      %p278 = pneg %p141
      %p279 = pneg %p138
      %p280 = pneg %p162
      %p281 = pneg %p159
      %p282 = pneg %p183
      %p283 = pneg %p180
      %p284 = pneg %p204
      %p285 = pneg %p201
      %s286 = ssub.s32 1, %s22
      %s287 = smul.u32 %s23, %s286
      %s288 = sadd.s32 %s287, %s22
      %p289 = scmp.lt.s32.totalorder %s288, 1
      %s290 = scalar_select %p289, %s288, 1
      %s291 = smul.addr %s290, 32
      %s292 = smul.addr %s291, 8
      %s293 = scalar_lea.vmem %s0, %s292
      %s294 = ssub.s32 1, %s22
      %s295 = smul.u32 %s23, %s294
      %s296 = sadd.s32 %s295, %s22
      %s297 = smul.u32 %s23, 256
      %p298 = scmp.eq.s32.totalorder %s22, 0
      %p299 = scmp.eq.s32.totalorder %s23, 0
      %p300 = pnand %p298, %p299
      %p301 = pneg %p300
      // Predicated region
      $region49: #{tpu_custom_call.1} parent=47 // pred_check
        _
      $region50: #{tpu_custom_call.1} parent=47 // pred_check_branch
        %303 = sbr.rel (%p300) target = $region52
      $region51: #{tpu_custom_call.1} parent=47 // pred_region
        %vm304 = vcmask 58368
        %305 = vst.msk [vmem:[#allocation3] sm:$0x3] %vm304, 0.0
      $region52: #{tpu_custom_call.1} parent=47 // pred_fallthru
        _
      // Predicated region
      $region53: #{tpu_custom_call.1} parent=47 // pred_check
        %p306 = pneg %p298
      $region54: #{tpu_custom_call.1} parent=47 // pred_check_branch
        %308 = sbr.rel (%p306) target = $region56
      $region55: #{tpu_custom_call.1} parent=47 // pred_region
        %v309 = vld [vmem:[%s293] sm:$0xff]
        %v310 = vld [vmem:[%s293 + $0x8] sm:$0xff]
        %v311 = vld [vmem:[%s293 + $0x10] sm:$0xff]
        %v312 = vld [vmem:[%s293 + $0x18] sm:$0xff]
        %v313 = vld [vmem:[%s293 + $0x20] sm:$0xff]
        %v314 = vld [vmem:[%s293 + $0x28] sm:$0xff]
        %v315 = vld [vmem:[%s293 + $0x30] sm:$0xff]
        %v316 = vld [vmem:[%s293 + $0x38] sm:$0xff]
        %v317 = vld [vmem:[%s293 + $0x40] sm:$0xff]
        %v318 = vld [vmem:[%s293 + $0x48] sm:$0xff]
        %v319 = vld [vmem:[%s293 + $0x50] sm:$0xff]
        %v320 = vld [vmem:[%s293 + $0x58] sm:$0xff]
        %v321 = vld [vmem:[%s293 + $0x60] sm:$0xff]
        %v322 = vld [vmem:[%s293 + $0x68] sm:$0xff]
        %v323 = vld [vmem:[%s293 + $0x70] sm:$0xff]
        %v324 = vld [vmem:[%s293 + $0x78] sm:$0xff]
        %v325 = vld [vmem:[%s293 + $0x80] sm:$0xff]
        %v326 = vld [vmem:[%s293 + $0x88] sm:$0xff]
        %v327 = vld [vmem:[%s293 + $0x90] sm:$0xff]
        %v328 = vld [vmem:[%s293 + $0x98] sm:$0xff]
        %v329 = vld [vmem:[%s293 + $0xa0] sm:$0xff]
        %v330 = vld [vmem:[%s293 + $0xa8] sm:$0xff]
        %v331 = vld [vmem:[%s293 + $0xb0] sm:$0xff]
        %v332 = vld [vmem:[%s293 + $0xb8] sm:$0xff]
        %v333 = vld [vmem:[%s293 + $0xc0] sm:$0xff]
        %v334 = vld [vmem:[%s293 + $0xc8] sm:$0xff]
        %v335 = vld [vmem:[%s293 + $0xd0] sm:$0xff]
        %v336 = vld [vmem:[%s293 + $0xd8] sm:$0xff]
        %v337 = vld [vmem:[%s293 + $0xe0] sm:$0xff]
        %v338 = vld [vmem:[%s293 + $0xe8] sm:$0xff]
        %v339 = vld [vmem:[%s293 + $0xf0] sm:$0xff]
        %v340 = vld [vmem:[%s293 + $0xf8] sm:$0xff]
        %v357 = vrot.slane %v309, 1
        %v358 = vrot.slane %v311, 1
        %v359 = vrot.slane %v313, 1
        %v360 = vrot.slane %v315, 1
        %v361 = vrot.slane %v317, 1
        %v362 = vrot.slane %v319, 1
        %v363 = vrot.slane %v321, 1
        %v364 = vrot.slane %v323, 1
        %v365 = vrot.slane %v325, 1
        %v366 = vrot.slane %v327, 1
        %v367 = vrot.slane %v329, 1
        %v368 = vrot.slane %v331, 1
        %v369 = vrot.slane %v333, 1
        %v370 = vrot.slane %v335, 1
        %v371 = vrot.slane %v337, 1
        %v372 = vrot.slane %v339, 1
        %vm405 = vcmask 1040384
        %v406 = vrot.slane %v309, 7
        %v407 = vrot.slane %v310, 7
        %v408 = vsel %vm405, %v406, %v407
        %v409 = vrot.slane %v311, 7
        %v410 = vrot.slane %v312, 7
        %v411 = vsel %vm405, %v409, %v410
        %v412 = vrot.slane %v313, 7
        %v413 = vrot.slane %v314, 7
        %v414 = vsel %vm405, %v412, %v413
        %v415 = vrot.slane %v315, 7
        %v416 = vrot.slane %v316, 7
        %v417 = vsel %vm405, %v415, %v416
        %v418 = vrot.slane %v317, 7
        %v419 = vrot.slane %v318, 7
        %v420 = vsel %vm405, %v418, %v419
        %v421 = vrot.slane %v319, 7
        %v422 = vrot.slane %v320, 7
        %v423 = vsel %vm405, %v421, %v422
        %v424 = vrot.slane %v321, 7
        %v425 = vrot.slane %v322, 7
        %v426 = vsel %vm405, %v424, %v425
        %v427 = vrot.slane %v323, 7
        %v428 = vrot.slane %v324, 7
        %v429 = vsel %vm405, %v427, %v428
        %v430 = vrot.slane %v325, 7
        %v431 = vrot.slane %v326, 7
        %v432 = vsel %vm405, %v430, %v431
        %v433 = vrot.slane %v327, 7
        %v434 = vrot.slane %v328, 7
        %v435 = vsel %vm405, %v433, %v434
        %v436 = vrot.slane %v329, 7
        %v437 = vrot.slane %v330, 7
        %v438 = vsel %vm405, %v436, %v437
        %v439 = vrot.slane %v331, 7
        %v440 = vrot.slane %v332, 7
        %v441 = vsel %vm405, %v439, %v440
        %v442 = vrot.slane %v333, 7
        %v443 = vrot.slane %v334, 7
        %v444 = vsel %vm405, %v442, %v443
        %v445 = vrot.slane %v335, 7
        %v446 = vrot.slane %v336, 7
        %v447 = vsel %vm405, %v445, %v446
        %v448 = vrot.slane %v337, 7
        %v449 = vrot.slane %v338, 7
        %v450 = vsel %vm405, %v448, %v449
        %v451 = vrot.slane %v339, 7
        %v452 = vrot.slane %v340, 7
        %v453 = vsel %vm405, %v451, %v452
        %v501 = vrot.slane %v310, 5
        %v502 = vrot.slane %v312, 5
        %v503 = vrot.slane %v314, 5
        %v504 = vrot.slane %v316, 5
        %v505 = vrot.slane %v318, 5
        %v506 = vrot.slane %v320, 5
        %v507 = vrot.slane %v322, 5
        %v508 = vrot.slane %v324, 5
        %v509 = vrot.slane %v326, 5
        %v510 = vrot.slane %v328, 5
        %v511 = vrot.slane %v330, 5
        %v512 = vrot.slane %v332, 5
        %v513 = vrot.slane %v334, 5
        %v514 = vrot.slane %v336, 5
        %v515 = vrot.slane %v338, 5
        %v516 = vrot.slane %v340, 5
        %v533 = vsel %vm405, %v357, %v406
        %v534 = vsel %vm405, %v358, %v409
        %v535 = vsel %vm405, %v359, %v412
        %v536 = vsel %vm405, %v360, %v415
        %v537 = vsel %vm405, %v361, %v418
        %v538 = vsel %vm405, %v362, %v421
        %v539 = vsel %vm405, %v363, %v424
        %v540 = vsel %vm405, %v364, %v427
        %v541 = vsel %vm405, %v365, %v430
        %v542 = vsel %vm405, %v366, %v433
        %v543 = vsel %vm405, %v367, %v436
        %v544 = vsel %vm405, %v368, %v439
        %v545 = vsel %vm405, %v369, %v442
        %v546 = vsel %vm405, %v370, %v445
        %v547 = vsel %vm405, %v371, %v448
        %v548 = vsel %vm405, %v372, %v451
        %v549 = vsel %vm405, %v407, %v501
        %v550 = vsel %vm405, %v410, %v502
        %v551 = vsel %vm405, %v413, %v503
        %v552 = vsel %vm405, %v416, %v504
        %v553 = vsel %vm405, %v419, %v505
        %v554 = vsel %vm405, %v422, %v506
        %v555 = vsel %vm405, %v425, %v507
        %v556 = vsel %vm405, %v428, %v508
        %v557 = vsel %vm405, %v431, %v509
        %v558 = vsel %vm405, %v434, %v510
        %v559 = vsel %vm405, %v437, %v511
        %v560 = vsel %vm405, %v440, %v512
        %v561 = vsel %vm405, %v443, %v513
        %v562 = vsel %vm405, %v446, %v514
        %v563 = vsel %vm405, %v449, %v515
        %v564 = vsel %vm405, %v452, %v516
        %vm595 = vcmask 1046528
        %v596 = vrot.slane %v534, 1
        %v597 = vrot.slane %v411, 1
        %v598 = vsel %vm595, %v596, %v597
        %v599 = vrot.slane %v550, 1
        %v600 = vsel %vm595, %v597, %v599
        %v601 = vrot.slane %v533, 1
        %v602 = vrot.slane %v408, 1
        %v603 = vsel %vm595, %v601, %v602
        %v604 = vrot.slane %v549, 1
        %v605 = vsel %vm595, %v602, %v604
        %v606 = vrot.slane %v535, 1
        %v607 = vrot.slane %v414, 1
        %v608 = vsel %vm595, %v606, %v607
        %v609 = vrot.slane %v551, 1
        %v610 = vsel %vm595, %v607, %v609
        %v611 = vrot.slane %v536, 1
        %v612 = vrot.slane %v417, 1
        %v613 = vsel %vm595, %v611, %v612
        %v614 = vrot.slane %v552, 1
        %v615 = vsel %vm595, %v612, %v614
        %v616 = vrot.slane %v537, 1
        %v617 = vrot.slane %v420, 1
        %v618 = vsel %vm595, %v616, %v617
        %v619 = vrot.slane %v553, 1
        %v620 = vsel %vm595, %v617, %v619
        %v621 = vrot.slane %v538, 1
        %v622 = vrot.slane %v423, 1
        %v623 = vsel %vm595, %v621, %v622
        %v624 = vrot.slane %v554, 1
        %v625 = vsel %vm595, %v622, %v624
        %v626 = vrot.slane %v539, 1
        %v627 = vrot.slane %v426, 1
        %v628 = vsel %vm595, %v626, %v627
        %v629 = vrot.slane %v555, 1
        %v630 = vsel %vm595, %v627, %v629
        %v631 = vrot.slane %v540, 1
        %v632 = vrot.slane %v429, 1
        %v633 = vsel %vm595, %v631, %v632
        %v634 = vrot.slane %v556, 1
        %v635 = vsel %vm595, %v632, %v634
        %v636 = vrot.slane %v541, 1
        %v637 = vrot.slane %v432, 1
        %v638 = vsel %vm595, %v636, %v637
        %v639 = vrot.slane %v557, 1
        %v640 = vsel %vm595, %v637, %v639
        %v641 = vrot.slane %v542, 1
        %v642 = vrot.slane %v435, 1
        %v643 = vsel %vm595, %v641, %v642
        %v644 = vrot.slane %v558, 1
        %v645 = vsel %vm595, %v642, %v644
        %v646 = vrot.slane %v543, 1
        %v647 = vrot.slane %v438, 1
        %v648 = vsel %vm595, %v646, %v647
        %v649 = vrot.slane %v559, 1
        %v650 = vsel %vm595, %v647, %v649
        %v651 = vrot.slane %v544, 1
        %v652 = vrot.slane %v441, 1
        %v653 = vsel %vm595, %v651, %v652
        %v654 = vrot.slane %v560, 1
        %v655 = vsel %vm595, %v652, %v654
        %v656 = vrot.slane %v545, 1
        %v657 = vrot.slane %v444, 1
        %v658 = vsel %vm595, %v656, %v657
        %v659 = vrot.slane %v561, 1
        %v660 = vsel %vm595, %v657, %v659
        %v661 = vrot.slane %v546, 1
        %v662 = vrot.slane %v447, 1
        %v663 = vsel %vm595, %v661, %v662
        %v664 = vrot.slane %v562, 1
        %v665 = vsel %vm595, %v662, %v664
        %v666 = vrot.slane %v547, 1
        %v667 = vrot.slane %v450, 1
        %v668 = vsel %vm595, %v666, %v667
        %v669 = vrot.slane %v563, 1
        %v670 = vsel %vm595, %v667, %v669
        %671 = vrot.lane.b32.xlu0 %v598, 4
        %v672 = vpop.permute.xlu0 %671
        %673 = vrot.lane.b32.xlu0 %v600, 4
        %v674 = vpop.permute.xlu0 %673
        %675 = vrot.lane.b32.xlu0 %v603, 4
        %v676 = vpop.permute.xlu0 %675
        %677 = vrot.lane.b32.xlu0 %v605, 4
        %v678 = vpop.permute.xlu0 %677
        %679 = vrot.lane.b32.xlu0 %v608, 4
        %v680 = vpop.permute.xlu0 %679
        %681 = vrot.lane.b32.xlu0 %v610, 4
        %v682 = vpop.permute.xlu0 %681
        %683 = vrot.lane.b32.xlu0 %v613, 4
        %v684 = vpop.permute.xlu0 %683
        %685 = vrot.lane.b32.xlu0 %v615, 4
        %v686 = vpop.permute.xlu0 %685
        %687 = vrot.lane.b32.xlu0 %v618, 4
        %v688 = vpop.permute.xlu0 %687
        %689 = vrot.lane.b32.xlu0 %v620, 4
        %v690 = vpop.permute.xlu0 %689
        %691 = vrot.lane.b32.xlu0 %v623, 4
        %v692 = vpop.permute.xlu0 %691
        %693 = vrot.lane.b32.xlu0 %v625, 4
        %v694 = vpop.permute.xlu0 %693
        %695 = vrot.lane.b32.xlu0 %v628, 4
        %v696 = vpop.permute.xlu0 %695
        %697 = vrot.lane.b32.xlu0 %v630, 4
        %v698 = vpop.permute.xlu0 %697
        %699 = vrot.lane.b32.xlu0 %v633, 4
        %v700 = vpop.permute.xlu0 %699
        %701 = vrot.lane.b32.xlu0 %v635, 4
        %v702 = vpop.permute.xlu0 %701
        %703 = vrot.lane.b32.xlu0 %v638, 4
        %v704 = vpop.permute.xlu0 %703
        %705 = vrot.lane.b32.xlu0 %v640, 4
        %v706 = vpop.permute.xlu0 %705
        %707 = vrot.lane.b32.xlu0 %v643, 4
        %v708 = vpop.permute.xlu0 %707
        %709 = vrot.lane.b32.xlu0 %v645, 4
        %v710 = vpop.permute.xlu0 %709
        %711 = vrot.lane.b32.xlu0 %v648, 4
        %v712 = vpop.permute.xlu0 %711
        %713 = vrot.lane.b32.xlu0 %v650, 4
        %v714 = vpop.permute.xlu0 %713
        %715 = vrot.lane.b32.xlu0 %v653, 4
        %v716 = vpop.permute.xlu0 %715
        %717 = vrot.lane.b32.xlu0 %v655, 4
        %v718 = vpop.permute.xlu0 %717
        %719 = vrot.lane.b32.xlu0 %v658, 4
        %v720 = vpop.permute.xlu0 %719
        %721 = vrot.lane.b32.xlu0 %v660, 4
        %v722 = vpop.permute.xlu0 %721
        %723 = vrot.lane.b32.xlu0 %v663, 4
        %v724 = vpop.permute.xlu0 %723
        %725 = vrot.lane.b32.xlu0 %v665, 4
        %v726 = vpop.permute.xlu0 %725
        %727 = vrot.lane.b32.xlu0 %v668, 4
        %v728 = vpop.permute.xlu0 %727
        %729 = vrot.lane.b32.xlu0 %v670, 4
        %v730 = vpop.permute.xlu0 %729
        %vm761 = vcmask 1045504
        %v762 = vrot.slane %v534, 2
        %v763 = vrot.slane %v411, 2
        %v764 = vsel %vm761, %v762, %v763
        %v765 = vrot.slane %v550, 2
        %v766 = vsel %vm761, %v763, %v765
        %v767 = vrot.slane %v533, 2
        %v768 = vrot.slane %v408, 2
        %v769 = vsel %vm761, %v767, %v768
        %v770 = vrot.slane %v549, 2
        %v771 = vsel %vm761, %v768, %v770
        %v772 = vrot.slane %v535, 2
        %v773 = vrot.slane %v414, 2
        %v774 = vsel %vm761, %v772, %v773
        %v775 = vrot.slane %v551, 2
        %v776 = vsel %vm761, %v773, %v775
        %v777 = vrot.slane %v536, 2
        %v778 = vrot.slane %v417, 2
        %v779 = vsel %vm761, %v777, %v778
        %v780 = vrot.slane %v552, 2
        %v781 = vsel %vm761, %v778, %v780
        %v782 = vrot.slane %v537, 2
        %v783 = vrot.slane %v420, 2
        %v784 = vsel %vm761, %v782, %v783
        %v785 = vrot.slane %v553, 2
        %v786 = vsel %vm761, %v783, %v785
        %v787 = vrot.slane %v538, 2
        %v788 = vrot.slane %v423, 2
        %v789 = vsel %vm761, %v787, %v788
        %v790 = vrot.slane %v554, 2
        %v791 = vsel %vm761, %v788, %v790
        %v792 = vrot.slane %v539, 2
        %v793 = vrot.slane %v426, 2
        %v794 = vsel %vm761, %v792, %v793
        %v795 = vrot.slane %v555, 2
        %v796 = vsel %vm761, %v793, %v795
        %v797 = vrot.slane %v540, 2
        %v798 = vrot.slane %v429, 2
        %v799 = vsel %vm761, %v797, %v798
        %v800 = vrot.slane %v556, 2
        %v801 = vsel %vm761, %v798, %v800
        %v802 = vrot.slane %v541, 2
        %v803 = vrot.slane %v432, 2
        %v804 = vsel %vm761, %v802, %v803
        %v805 = vrot.slane %v557, 2
        %v806 = vsel %vm761, %v803, %v805
        %v807 = vrot.slane %v542, 2
        %v808 = vrot.slane %v435, 2
        %v809 = vsel %vm761, %v807, %v808
        %v810 = vrot.slane %v558, 2
        %v811 = vsel %vm761, %v808, %v810
        %v812 = vrot.slane %v543, 2
        %v813 = vrot.slane %v438, 2
        %v814 = vsel %vm761, %v812, %v813
        %v815 = vrot.slane %v559, 2
        %v816 = vsel %vm761, %v813, %v815
        %v817 = vrot.slane %v544, 2
        %v818 = vrot.slane %v441, 2
        %v819 = vsel %vm761, %v817, %v818
        %v820 = vrot.slane %v560, 2
        %v821 = vsel %vm761, %v818, %v820
        %v822 = vrot.slane %v545, 2
        %v823 = vrot.slane %v444, 2
        %v824 = vsel %vm761, %v822, %v823
        %v825 = vrot.slane %v561, 2
        %v826 = vsel %vm761, %v823, %v825
        %v827 = vrot.slane %v546, 2
        %v828 = vrot.slane %v447, 2
        %v829 = vsel %vm761, %v827, %v828
        %v830 = vrot.slane %v562, 2
        %v831 = vsel %vm761, %v828, %v830
        %v832 = vrot.slane %v547, 2
        %v833 = vrot.slane %v450, 2
        %v834 = vsel %vm761, %v832, %v833
        %v835 = vrot.slane %v563, 2
        %v836 = vsel %vm761, %v833, %v835
        %837 = vrot.lane.b32.xlu0 %v764, 8
        %v838 = vpop.permute.xlu0 %837
        %839 = vrot.lane.b32.xlu0 %v766, 8
        %v840 = vpop.permute.xlu0 %839
        %841 = vrot.lane.b32.xlu0 %v769, 8
        %v842 = vpop.permute.xlu0 %841
        %843 = vrot.lane.b32.xlu0 %v771, 8
        %v844 = vpop.permute.xlu0 %843
        %845 = vrot.lane.b32.xlu0 %v774, 8
        %v846 = vpop.permute.xlu0 %845
        %847 = vrot.lane.b32.xlu0 %v776, 8
        %v848 = vpop.permute.xlu0 %847
        %849 = vrot.lane.b32.xlu0 %v779, 8
        %v850 = vpop.permute.xlu0 %849
        %851 = vrot.lane.b32.xlu0 %v781, 8
        %v852 = vpop.permute.xlu0 %851
        %853 = vrot.lane.b32.xlu0 %v784, 8
        %v854 = vpop.permute.xlu0 %853
        %855 = vrot.lane.b32.xlu0 %v786, 8
        %v856 = vpop.permute.xlu0 %855
        %857 = vrot.lane.b32.xlu0 %v789, 8
        %v858 = vpop.permute.xlu0 %857
        %859 = vrot.lane.b32.xlu0 %v791, 8
        %v860 = vpop.permute.xlu0 %859
        %861 = vrot.lane.b32.xlu0 %v794, 8
        %v862 = vpop.permute.xlu0 %861
        %863 = vrot.lane.b32.xlu0 %v796, 8
        %v864 = vpop.permute.xlu0 %863
        %865 = vrot.lane.b32.xlu0 %v799, 8
        %v866 = vpop.permute.xlu0 %865
        %867 = vrot.lane.b32.xlu0 %v801, 8
        %v868 = vpop.permute.xlu0 %867
        %869 = vrot.lane.b32.xlu0 %v804, 8
        %v870 = vpop.permute.xlu0 %869
        %871 = vrot.lane.b32.xlu0 %v806, 8
        %v872 = vpop.permute.xlu0 %871
        %873 = vrot.lane.b32.xlu0 %v809, 8
        %v874 = vpop.permute.xlu0 %873
        %875 = vrot.lane.b32.xlu0 %v811, 8
        %v876 = vpop.permute.xlu0 %875
        %877 = vrot.lane.b32.xlu0 %v814, 8
        %v878 = vpop.permute.xlu0 %877
        %879 = vrot.lane.b32.xlu0 %v816, 8
        %v880 = vpop.permute.xlu0 %879
        %881 = vrot.lane.b32.xlu0 %v819, 8
        %v882 = vpop.permute.xlu0 %881
        %883 = vrot.lane.b32.xlu0 %v821, 8
        %v884 = vpop.permute.xlu0 %883
        %885 = vrot.lane.b32.xlu0 %v824, 8
        %v886 = vpop.permute.xlu0 %885
        %887 = vrot.lane.b32.xlu0 %v826, 8
        %v888 = vpop.permute.xlu0 %887
        %889 = vrot.lane.b32.xlu0 %v829, 8
        %v890 = vpop.permute.xlu0 %889
        %891 = vrot.lane.b32.xlu0 %v831, 8
        %v892 = vpop.permute.xlu0 %891
        %893 = vrot.lane.b32.xlu0 %v834, 8
        %v894 = vpop.permute.xlu0 %893
        %895 = vrot.lane.b32.xlu0 %v836, 8
        %v896 = vpop.permute.xlu0 %895
        %928 = vrot.lane.b32.xlu0 %v533, 12
        %v929 = vpop.permute.xlu0 %928
        %930 = vrot.lane.b32.xlu0 %v408, 12
        %v931 = vpop.permute.xlu0 %930
        %932 = vrot.lane.b32.xlu0 %v534, 12
        %v933 = vpop.permute.xlu0 %932
        %934 = vrot.lane.b32.xlu0 %v411, 12
        %v935 = vpop.permute.xlu0 %934
        %936 = vrot.lane.b32.xlu0 %v535, 12
        %v937 = vpop.permute.xlu0 %936
        %938 = vrot.lane.b32.xlu0 %v414, 12
        %v939 = vpop.permute.xlu0 %938
        %940 = vrot.lane.b32.xlu0 %v536, 12
        %v941 = vpop.permute.xlu0 %940
        %942 = vrot.lane.b32.xlu0 %v417, 12
        %v943 = vpop.permute.xlu0 %942
        %944 = vrot.lane.b32.xlu0 %v537, 12
        %v945 = vpop.permute.xlu0 %944
        %946 = vrot.lane.b32.xlu0 %v420, 12
        %v947 = vpop.permute.xlu0 %946
        %948 = vrot.lane.b32.xlu0 %v538, 12
        %v949 = vpop.permute.xlu0 %948
        %950 = vrot.lane.b32.xlu0 %v423, 12
        %v951 = vpop.permute.xlu0 %950
        %952 = vrot.lane.b32.xlu0 %v539, 12
        %v953 = vpop.permute.xlu0 %952
        %954 = vrot.lane.b32.xlu0 %v426, 12
        %v955 = vpop.permute.xlu0 %954
        %956 = vrot.lane.b32.xlu0 %v540, 12
        %v957 = vpop.permute.xlu0 %956
        %958 = vrot.lane.b32.xlu0 %v429, 12
        %v959 = vpop.permute.xlu0 %958
        %960 = vrot.lane.b32.xlu0 %v541, 12
        %v961 = vpop.permute.xlu0 %960
        %962 = vrot.lane.b32.xlu0 %v432, 12
        %v963 = vpop.permute.xlu0 %962
        %964 = vrot.lane.b32.xlu0 %v542, 12
        %v965 = vpop.permute.xlu0 %964
        %966 = vrot.lane.b32.xlu0 %v435, 12
        %v967 = vpop.permute.xlu0 %966
        %968 = vrot.lane.b32.xlu0 %v543, 12
        %v969 = vpop.permute.xlu0 %968
        %970 = vrot.lane.b32.xlu0 %v438, 12
        %v971 = vpop.permute.xlu0 %970
        %972 = vrot.lane.b32.xlu0 %v544, 12
        %v973 = vpop.permute.xlu0 %972
        %974 = vrot.lane.b32.xlu0 %v441, 12
        %v975 = vpop.permute.xlu0 %974
        %976 = vrot.lane.b32.xlu0 %v545, 12
        %v977 = vpop.permute.xlu0 %976
        %978 = vrot.lane.b32.xlu0 %v444, 12
        %v979 = vpop.permute.xlu0 %978
        %980 = vrot.lane.b32.xlu0 %v546, 12
        %v981 = vpop.permute.xlu0 %980
        %982 = vrot.lane.b32.xlu0 %v447, 12
        %v983 = vpop.permute.xlu0 %982
        %984 = vrot.lane.b32.xlu0 %v547, 12
        %v985 = vpop.permute.xlu0 %984
        %986 = vrot.lane.b32.xlu0 %v450, 12
        %v987 = vpop.permute.xlu0 %986
        %988 = vrot.lane.b32.xlu0 %v548, 12
        %v989 = vpop.permute.xlu0 %988
        %990 = vrot.lane.b32.xlu0 %v453, 12
        %v991 = vpop.permute.xlu0 %990
        %v1025 = vrot.slane %v548, 1
        %v1026 = vrot.slane %v453, 1
        %v1027 = vsel %vm595, %v1025, %v1026
        %v1028 = vrot.slane %v564, 1
        %v1029 = vsel %vm595, %v1026, %v1028
        %1030 = vrot.lane.b32.xlu0 %v603, 16
        %v1031 = vpop.permute.xlu0 %1030
        %1032 = vrot.lane.b32.xlu0 %v605, 16
        %v1033 = vpop.permute.xlu0 %1032
        %1034 = vrot.lane.b32.xlu0 %v598, 16
        %v1035 = vpop.permute.xlu0 %1034
        %1036 = vrot.lane.b32.xlu0 %v600, 16
        %v1037 = vpop.permute.xlu0 %1036
        %1038 = vrot.lane.b32.xlu0 %v608, 16
        %v1039 = vpop.permute.xlu0 %1038
        %1040 = vrot.lane.b32.xlu0 %v610, 16
        %v1041 = vpop.permute.xlu0 %1040
        %1042 = vrot.lane.b32.xlu0 %v613, 16
        %v1043 = vpop.permute.xlu0 %1042
        %1044 = vrot.lane.b32.xlu0 %v615, 16
        %v1045 = vpop.permute.xlu0 %1044
        %1046 = vrot.lane.b32.xlu0 %v618, 16
        %v1047 = vpop.permute.xlu0 %1046
        %1048 = vrot.lane.b32.xlu0 %v620, 16
        %v1049 = vpop.permute.xlu0 %1048
        %1050 = vrot.lane.b32.xlu0 %v623, 16
        %v1051 = vpop.permute.xlu0 %1050
        %1052 = vrot.lane.b32.xlu0 %v625, 16
        %v1053 = vpop.permute.xlu0 %1052
        %1054 = vrot.lane.b32.xlu0 %v628, 16
        %v1055 = vpop.permute.xlu0 %1054
        %1056 = vrot.lane.b32.xlu0 %v630, 16
        %v1057 = vpop.permute.xlu0 %1056
        %1058 = vrot.lane.b32.xlu0 %v633, 16
        %v1059 = vpop.permute.xlu0 %1058
        %1060 = vrot.lane.b32.xlu0 %v635, 16
        %v1061 = vpop.permute.xlu0 %1060
        %1062 = vrot.lane.b32.xlu0 %v638, 16
        %v1063 = vpop.permute.xlu0 %1062
        %1064 = vrot.lane.b32.xlu0 %v640, 16
        %v1065 = vpop.permute.xlu0 %1064
        %1066 = vrot.lane.b32.xlu0 %v643, 16
        %v1067 = vpop.permute.xlu0 %1066
        %1068 = vrot.lane.b32.xlu0 %v645, 16
        %v1069 = vpop.permute.xlu0 %1068
        %1070 = vrot.lane.b32.xlu0 %v648, 16
        %v1071 = vpop.permute.xlu0 %1070
        %1072 = vrot.lane.b32.xlu0 %v650, 16
        %v1073 = vpop.permute.xlu0 %1072
        %1074 = vrot.lane.b32.xlu0 %v653, 16
        %v1075 = vpop.permute.xlu0 %1074
        %1076 = vrot.lane.b32.xlu0 %v655, 16
        %v1077 = vpop.permute.xlu0 %1076
        %1078 = vrot.lane.b32.xlu0 %v658, 16
        %v1079 = vpop.permute.xlu0 %1078
        %1080 = vrot.lane.b32.xlu0 %v660, 16
        %v1081 = vpop.permute.xlu0 %1080
        %1082 = vrot.lane.b32.xlu0 %v663, 16
        %v1083 = vpop.permute.xlu0 %1082
        %1084 = vrot.lane.b32.xlu0 %v665, 16
        %v1085 = vpop.permute.xlu0 %1084
        %1086 = vrot.lane.b32.xlu0 %v668, 16
        %v1087 = vpop.permute.xlu0 %1086
        %1088 = vrot.lane.b32.xlu0 %v670, 16
        %v1089 = vpop.permute.xlu0 %1088
        %1090 = vrot.lane.b32.xlu0 %v1027, 16
        %v1091 = vpop.permute.xlu0 %1090
        %1092 = vrot.lane.b32.xlu0 %v1029, 16
        %v1093 = vpop.permute.xlu0 %1092
        %v1126 = vrot.slane %v548, 2
        %v1127 = vrot.slane %v453, 2
        %v1128 = vsel %vm761, %v1126, %v1127
        %v1129 = vrot.slane %v564, 2
        %v1130 = vsel %vm761, %v1127, %v1129
        %1131 = vrot.lane.b32.xlu0 %v769, 20
        %v1132 = vpop.permute.xlu0 %1131
        %1133 = vrot.lane.b32.xlu0 %v771, 20
        %v1134 = vpop.permute.xlu0 %1133
        %1135 = vrot.lane.b32.xlu0 %v764, 20
        %v1136 = vpop.permute.xlu0 %1135
        %1137 = vrot.lane.b32.xlu0 %v766, 20
        %v1138 = vpop.permute.xlu0 %1137
        %1139 = vrot.lane.b32.xlu0 %v774, 20
        %v1140 = vpop.permute.xlu0 %1139
        %1141 = vrot.lane.b32.xlu0 %v776, 20
        %v1142 = vpop.permute.xlu0 %1141
        %1143 = vrot.lane.b32.xlu0 %v779, 20
        %v1144 = vpop.permute.xlu0 %1143
        %1145 = vrot.lane.b32.xlu0 %v781, 20
        %v1146 = vpop.permute.xlu0 %1145
        %1147 = vrot.lane.b32.xlu0 %v784, 20
        %v1148 = vpop.permute.xlu0 %1147
        %1149 = vrot.lane.b32.xlu0 %v786, 20
        %v1150 = vpop.permute.xlu0 %1149
        %1151 = vrot.lane.b32.xlu0 %v789, 20
        %v1152 = vpop.permute.xlu0 %1151
        %1153 = vrot.lane.b32.xlu0 %v791, 20
        %v1154 = vpop.permute.xlu0 %1153
        %1155 = vrot.lane.b32.xlu0 %v794, 20
        %v1156 = vpop.permute.xlu0 %1155
        %1157 = vrot.lane.b32.xlu0 %v796, 20
        %v1158 = vpop.permute.xlu0 %1157
        %1159 = vrot.lane.b32.xlu0 %v799, 20
        %v1160 = vpop.permute.xlu0 %1159
        %1161 = vrot.lane.b32.xlu0 %v801, 20
        %v1162 = vpop.permute.xlu0 %1161
        %1163 = vrot.lane.b32.xlu0 %v804, 20
        %v1164 = vpop.permute.xlu0 %1163
        %1165 = vrot.lane.b32.xlu0 %v806, 20
        %v1166 = vpop.permute.xlu0 %1165
        %1167 = vrot.lane.b32.xlu0 %v809, 20
        %v1168 = vpop.permute.xlu0 %1167
        %1169 = vrot.lane.b32.xlu0 %v811, 20
        %v1170 = vpop.permute.xlu0 %1169
        %1171 = vrot.lane.b32.xlu0 %v814, 20
        %v1172 = vpop.permute.xlu0 %1171
        %1173 = vrot.lane.b32.xlu0 %v816, 20
        %v1174 = vpop.permute.xlu0 %1173
        %1175 = vrot.lane.b32.xlu0 %v819, 20
        %v1176 = vpop.permute.xlu0 %1175
        %1177 = vrot.lane.b32.xlu0 %v821, 20
        %v1178 = vpop.permute.xlu0 %1177
        %1179 = vrot.lane.b32.xlu0 %v824, 20
        %v1180 = vpop.permute.xlu0 %1179
        %1181 = vrot.lane.b32.xlu0 %v826, 20
        %v1182 = vpop.permute.xlu0 %1181
        %1183 = vrot.lane.b32.xlu0 %v829, 20
        %v1184 = vpop.permute.xlu0 %1183
        %1185 = vrot.lane.b32.xlu0 %v831, 20
        %v1186 = vpop.permute.xlu0 %1185
        %1187 = vrot.lane.b32.xlu0 %v834, 20
        %v1188 = vpop.permute.xlu0 %1187
        %1189 = vrot.lane.b32.xlu0 %v836, 20
        %v1190 = vpop.permute.xlu0 %1189
        %1191 = vrot.lane.b32.xlu0 %v1128, 20
        %v1192 = vpop.permute.xlu0 %1191
        %1193 = vrot.lane.b32.xlu0 %v1130, 20
        %v1194 = vpop.permute.xlu0 %1193
        %1227 = vrot.lane.b32.xlu0 %v534, 24
        %v1228 = vpop.permute.xlu0 %1227
        %1229 = vrot.lane.b32.xlu0 %v411, 24
        %v1230 = vpop.permute.xlu0 %1229
        %1231 = vrot.lane.b32.xlu0 %v535, 24
        %v1232 = vpop.permute.xlu0 %1231
        %1233 = vrot.lane.b32.xlu0 %v414, 24
        %v1234 = vpop.permute.xlu0 %1233
        %1235 = vrot.lane.b32.xlu0 %v536, 24
        %v1236 = vpop.permute.xlu0 %1235
        %1237 = vrot.lane.b32.xlu0 %v417, 24
        %v1238 = vpop.permute.xlu0 %1237
        %1239 = vrot.lane.b32.xlu0 %v537, 24
        %v1240 = vpop.permute.xlu0 %1239
        %1241 = vrot.lane.b32.xlu0 %v420, 24
        %v1242 = vpop.permute.xlu0 %1241
        %1243 = vrot.lane.b32.xlu0 %v538, 24
        %v1244 = vpop.permute.xlu0 %1243
        %1245 = vrot.lane.b32.xlu0 %v423, 24
        %v1246 = vpop.permute.xlu0 %1245
        %1247 = vrot.lane.b32.xlu0 %v539, 24
        %v1248 = vpop.permute.xlu0 %1247
        %1249 = vrot.lane.b32.xlu0 %v426, 24
        %v1250 = vpop.permute.xlu0 %1249
        %1251 = vrot.lane.b32.xlu0 %v540, 24
        %v1252 = vpop.permute.xlu0 %1251
        %1253 = vrot.lane.b32.xlu0 %v429, 24
        %v1254 = vpop.permute.xlu0 %1253
        %1255 = vrot.lane.b32.xlu0 %v541, 24
        %v1256 = vpop.permute.xlu0 %1255
        %1257 = vrot.lane.b32.xlu0 %v432, 24
        %v1258 = vpop.permute.xlu0 %1257
        %1259 = vrot.lane.b32.xlu0 %v542, 24
        %v1260 = vpop.permute.xlu0 %1259
        %1261 = vrot.lane.b32.xlu0 %v435, 24
        %v1262 = vpop.permute.xlu0 %1261
        %1263 = vrot.lane.b32.xlu0 %v543, 24
        %v1264 = vpop.permute.xlu0 %1263
        %1265 = vrot.lane.b32.xlu0 %v438, 24
        %v1266 = vpop.permute.xlu0 %1265
        %1267 = vrot.lane.b32.xlu0 %v544, 24
        %v1268 = vpop.permute.xlu0 %1267
        %1269 = vrot.lane.b32.xlu0 %v441, 24
        %v1270 = vpop.permute.xlu0 %1269
        %1271 = vrot.lane.b32.xlu0 %v545, 24
        %v1272 = vpop.permute.xlu0 %1271
        %1273 = vrot.lane.b32.xlu0 %v444, 24
        %v1274 = vpop.permute.xlu0 %1273
        %1275 = vrot.lane.b32.xlu0 %v546, 24
        %v1276 = vpop.permute.xlu0 %1275
        %1277 = vrot.lane.b32.xlu0 %v447, 24
        %v1278 = vpop.permute.xlu0 %1277
        %1279 = vrot.lane.b32.xlu0 %v547, 24
        %v1280 = vpop.permute.xlu0 %1279
        %1281 = vrot.lane.b32.xlu0 %v450, 24
        %v1282 = vpop.permute.xlu0 %1281
        %1283 = vrot.lane.b32.xlu0 %v548, 24
        %v1284 = vpop.permute.xlu0 %1283
        %1285 = vrot.lane.b32.xlu0 %v453, 24
        %v1286 = vpop.permute.xlu0 %1285
        %1317 = vrot.lane.b32.xlu0 %v598, 28
        %v1318 = vpop.permute.xlu0 %1317
        %1319 = vrot.lane.b32.xlu0 %v600, 28
        %v1320 = vpop.permute.xlu0 %1319
        %1321 = vrot.lane.b32.xlu0 %v608, 28
        %v1322 = vpop.permute.xlu0 %1321
        %1323 = vrot.lane.b32.xlu0 %v610, 28
        %v1324 = vpop.permute.xlu0 %1323
        %1325 = vrot.lane.b32.xlu0 %v613, 28
        %v1326 = vpop.permute.xlu0 %1325
        %1327 = vrot.lane.b32.xlu0 %v615, 28
        %v1328 = vpop.permute.xlu0 %1327
        %1329 = vrot.lane.b32.xlu0 %v618, 28
        %v1330 = vpop.permute.xlu0 %1329
        %1331 = vrot.lane.b32.xlu0 %v620, 28
        %v1332 = vpop.permute.xlu0 %1331
        %1333 = vrot.lane.b32.xlu0 %v623, 28
        %v1334 = vpop.permute.xlu0 %1333
        %1335 = vrot.lane.b32.xlu0 %v625, 28
        %v1336 = vpop.permute.xlu0 %1335
        %1337 = vrot.lane.b32.xlu0 %v628, 28
        %v1338 = vpop.permute.xlu0 %1337
        %1339 = vrot.lane.b32.xlu0 %v630, 28
        %v1340 = vpop.permute.xlu0 %1339
        %1341 = vrot.lane.b32.xlu0 %v633, 28
        %v1342 = vpop.permute.xlu0 %1341
        %1343 = vrot.lane.b32.xlu0 %v635, 28
        %v1344 = vpop.permute.xlu0 %1343
        %1345 = vrot.lane.b32.xlu0 %v638, 28
        %v1346 = vpop.permute.xlu0 %1345
        %1347 = vrot.lane.b32.xlu0 %v640, 28
        %v1348 = vpop.permute.xlu0 %1347
        %1349 = vrot.lane.b32.xlu0 %v643, 28
        %v1350 = vpop.permute.xlu0 %1349
        %1351 = vrot.lane.b32.xlu0 %v645, 28
        %v1352 = vpop.permute.xlu0 %1351
        %1353 = vrot.lane.b32.xlu0 %v648, 28
        %v1354 = vpop.permute.xlu0 %1353
        %1355 = vrot.lane.b32.xlu0 %v650, 28
        %v1356 = vpop.permute.xlu0 %1355
        %1357 = vrot.lane.b32.xlu0 %v653, 28
        %v1358 = vpop.permute.xlu0 %1357
        %1359 = vrot.lane.b32.xlu0 %v655, 28
        %v1360 = vpop.permute.xlu0 %1359
        %1361 = vrot.lane.b32.xlu0 %v658, 28
        %v1362 = vpop.permute.xlu0 %1361
        %1363 = vrot.lane.b32.xlu0 %v660, 28
        %v1364 = vpop.permute.xlu0 %1363
        %1365 = vrot.lane.b32.xlu0 %v663, 28
        %v1366 = vpop.permute.xlu0 %1365
        %1367 = vrot.lane.b32.xlu0 %v665, 28
        %v1368 = vpop.permute.xlu0 %1367
        %1369 = vrot.lane.b32.xlu0 %v668, 28
        %v1370 = vpop.permute.xlu0 %1369
        %1371 = vrot.lane.b32.xlu0 %v670, 28
        %v1372 = vpop.permute.xlu0 %1371
        %1373 = vrot.lane.b32.xlu0 %v1027, 28
        %v1374 = vpop.permute.xlu0 %1373
        %1375 = vrot.lane.b32.xlu0 %v1029, 28
        %v1376 = vpop.permute.xlu0 %1375
        %1407 = vrot.lane.b32.xlu0 %v764, 32
        %v1408 = vpop.permute.xlu0 %1407
        %1409 = vrot.lane.b32.xlu0 %v766, 32
        %v1410 = vpop.permute.xlu0 %1409
        %1411 = vrot.lane.b32.xlu0 %v774, 32
        %v1412 = vpop.permute.xlu0 %1411
        %1413 = vrot.lane.b32.xlu0 %v776, 32
        %v1414 = vpop.permute.xlu0 %1413
        %1415 = vrot.lane.b32.xlu0 %v779, 32
        %v1416 = vpop.permute.xlu0 %1415
        %1417 = vrot.lane.b32.xlu0 %v781, 32
        %v1418 = vpop.permute.xlu0 %1417
        %1419 = vrot.lane.b32.xlu0 %v784, 32
        %v1420 = vpop.permute.xlu0 %1419
        %1421 = vrot.lane.b32.xlu0 %v786, 32
        %v1422 = vpop.permute.xlu0 %1421
        %1423 = vrot.lane.b32.xlu0 %v789, 32
        %v1424 = vpop.permute.xlu0 %1423
        %1425 = vrot.lane.b32.xlu0 %v791, 32
        %v1426 = vpop.permute.xlu0 %1425
        %1427 = vrot.lane.b32.xlu0 %v794, 32
        %v1428 = vpop.permute.xlu0 %1427
        %1429 = vrot.lane.b32.xlu0 %v796, 32
        %v1430 = vpop.permute.xlu0 %1429
        %1431 = vrot.lane.b32.xlu0 %v799, 32
        %v1432 = vpop.permute.xlu0 %1431
        %1433 = vrot.lane.b32.xlu0 %v801, 32
        %v1434 = vpop.permute.xlu0 %1433
        %1435 = vrot.lane.b32.xlu0 %v804, 32
        %v1436 = vpop.permute.xlu0 %1435
        %1437 = vrot.lane.b32.xlu0 %v806, 32
        %v1438 = vpop.permute.xlu0 %1437
        %1439 = vrot.lane.b32.xlu0 %v809, 32
        %v1440 = vpop.permute.xlu0 %1439
        %1441 = vrot.lane.b32.xlu0 %v811, 32
        %v1442 = vpop.permute.xlu0 %1441
        %1443 = vrot.lane.b32.xlu0 %v814, 32
        %v1444 = vpop.permute.xlu0 %1443
        %1445 = vrot.lane.b32.xlu0 %v816, 32
        %v1446 = vpop.permute.xlu0 %1445
        %1447 = vrot.lane.b32.xlu0 %v819, 32
        %v1448 = vpop.permute.xlu0 %1447
        %1449 = vrot.lane.b32.xlu0 %v821, 32
        %v1450 = vpop.permute.xlu0 %1449
        %1451 = vrot.lane.b32.xlu0 %v824, 32
        %v1452 = vpop.permute.xlu0 %1451
        %1453 = vrot.lane.b32.xlu0 %v826, 32
        %v1454 = vpop.permute.xlu0 %1453
        %1455 = vrot.lane.b32.xlu0 %v829, 32
        %v1456 = vpop.permute.xlu0 %1455
        %1457 = vrot.lane.b32.xlu0 %v831, 32
        %v1458 = vpop.permute.xlu0 %1457
        %1459 = vrot.lane.b32.xlu0 %v834, 32
        %v1460 = vpop.permute.xlu0 %1459
        %1461 = vrot.lane.b32.xlu0 %v836, 32
        %v1462 = vpop.permute.xlu0 %1461
        %1463 = vrot.lane.b32.xlu0 %v1128, 32
        %v1464 = vpop.permute.xlu0 %1463
        %1465 = vrot.lane.b32.xlu0 %v1130, 32
        %v1466 = vpop.permute.xlu0 %1465
        %vm1497 = vcmask 31744
        %v1498 = vsel %vm1497, %v534, %v672
        %v1499 = vsel %vm1497, %v411, %v674
        %v1500 = vsel %vm1497, %v533, %v676
        %v1501 = vsel %vm1497, %v408, %v678
        %v1502 = vsel %vm1497, %v535, %v680
        %v1503 = vsel %vm1497, %v414, %v682
        %v1504 = vsel %vm1497, %v536, %v684
        %v1505 = vsel %vm1497, %v417, %v686
        %v1506 = vsel %vm1497, %v537, %v688
        %v1507 = vsel %vm1497, %v420, %v690
        %v1508 = vsel %vm1497, %v538, %v692
        %v1509 = vsel %vm1497, %v423, %v694
        %v1510 = vsel %vm1497, %v539, %v696
        %v1511 = vsel %vm1497, %v426, %v698
        %v1512 = vsel %vm1497, %v540, %v700
        %v1513 = vsel %vm1497, %v429, %v702
        %v1514 = vsel %vm1497, %v541, %v704
        %v1515 = vsel %vm1497, %v432, %v706
        %v1516 = vsel %vm1497, %v542, %v708
        %v1517 = vsel %vm1497, %v435, %v710
        %v1518 = vsel %vm1497, %v543, %v712
        %v1519 = vsel %vm1497, %v438, %v714
        %v1520 = vsel %vm1497, %v544, %v716
        %v1521 = vsel %vm1497, %v441, %v718
        %v1522 = vsel %vm1497, %v545, %v720
        %v1523 = vsel %vm1497, %v444, %v722
        %v1524 = vsel %vm1497, %v546, %v724
        %v1525 = vsel %vm1497, %v447, %v726
        %v1526 = vsel %vm1497, %v547, %v728
        %v1527 = vsel %vm1497, %v450, %v730
        %vm1528 = vcmask 64512
        %v1529 = vsel %vm1528, %v1498, %v838
        %v1530 = vsel %vm1528, %v1499, %v840
        %v1531 = vsel %vm1528, %v1500, %v842
        %v1532 = vsel %vm1528, %v1501, %v844
        %v1533 = vsel %vm1528, %v1502, %v846
        %v1534 = vsel %vm1528, %v1503, %v848
        %v1535 = vsel %vm1528, %v1504, %v850
        %v1536 = vsel %vm1528, %v1505, %v852
        %v1537 = vsel %vm1528, %v1506, %v854
        %v1538 = vsel %vm1528, %v1507, %v856
        %v1539 = vsel %vm1528, %v1508, %v858
        %v1540 = vsel %vm1528, %v1509, %v860
        %v1541 = vsel %vm1528, %v1510, %v862
        %v1542 = vsel %vm1528, %v1511, %v864
        %v1543 = vsel %vm1528, %v1512, %v866
        %v1544 = vsel %vm1528, %v1513, %v868
        %v1545 = vsel %vm1528, %v1514, %v870
        %v1546 = vsel %vm1528, %v1515, %v872
        %v1547 = vsel %vm1528, %v1516, %v874
        %v1548 = vsel %vm1528, %v1517, %v876
        %v1549 = vsel %vm1528, %v1518, %v878
        %v1550 = vsel %vm1528, %v1519, %v880
        %v1551 = vsel %vm1528, %v1520, %v882
        %v1552 = vsel %vm1528, %v1521, %v884
        %v1553 = vsel %vm1528, %v1522, %v886
        %v1554 = vsel %vm1528, %v1523, %v888
        %v1555 = vsel %vm1528, %v1524, %v890
        %v1556 = vsel %vm1528, %v1525, %v892
        %v1557 = vsel %vm1528, %v1526, %v894
        %v1558 = vsel %vm1528, %v1527, %v896
        %vm1559 = vcmask 97280
        %v1560 = vsel %vm1559, %v1529, %v929
        %v1561 = vsel %vm1559, %v1530, %v931
        %v1562 = vsel %vm1559, %v1531, %v933
        %v1563 = vsel %vm1559, %v1532, %v935
        %v1564 = vsel %vm1559, %v1529, %v937
        %v1565 = vsel %vm1559, %v1530, %v939
        %v1566 = vsel %vm1559, %v1533, %v941
        %v1567 = vsel %vm1559, %v1534, %v943
        %v1568 = vsel %vm1559, %v1535, %v945
        %v1569 = vsel %vm1559, %v1536, %v947
        %v1570 = vsel %vm1559, %v1537, %v949
        %v1571 = vsel %vm1559, %v1538, %v951
        %v1572 = vsel %vm1559, %v1539, %v953
        %v1573 = vsel %vm1559, %v1540, %v955
        %v1574 = vsel %vm1559, %v1541, %v957
        %v1575 = vsel %vm1559, %v1542, %v959
        %v1576 = vsel %vm1559, %v1543, %v961
        %v1577 = vsel %vm1559, %v1544, %v963
        %v1578 = vsel %vm1559, %v1545, %v965
        %v1579 = vsel %vm1559, %v1546, %v967
        %v1580 = vsel %vm1559, %v1547, %v969
        %v1581 = vsel %vm1559, %v1548, %v971
        %v1582 = vsel %vm1559, %v1549, %v973
        %v1583 = vsel %vm1559, %v1550, %v975
        %v1584 = vsel %vm1559, %v1551, %v977
        %v1585 = vsel %vm1559, %v1552, %v979
        %v1586 = vsel %vm1559, %v1553, %v981
        %v1587 = vsel %vm1559, %v1554, %v983
        %v1588 = vsel %vm1559, %v1555, %v985
        %v1589 = vsel %vm1559, %v1556, %v987
        %v1590 = vsel %vm1559, %v1557, %v989
        %v1591 = vsel %vm1559, %v1558, %v991
        %vm1592 = vcmask 130048
        %v1593 = vsel %vm1592, %v1560, %v1031
        %v1594 = vsel %vm1592, %v1561, %v1033
        %v1595 = vsel %vm1592, %v1562, %v1035
        %v1596 = vsel %vm1592, %v1563, %v1037
        %v1597 = vsel %vm1592, %v1564, %v1039
        %v1598 = vsel %vm1592, %v1565, %v1041
        %v1599 = vsel %vm1592, %v1566, %v1043
        %v1600 = vsel %vm1592, %v1567, %v1045
        %v1601 = vsel %vm1592, %v1568, %v1047
        %v1602 = vsel %vm1592, %v1569, %v1049
        %v1603 = vsel %vm1592, %v1570, %v1051
        %v1604 = vsel %vm1592, %v1571, %v1053
        %v1605 = vsel %vm1592, %v1572, %v1055
        %v1606 = vsel %vm1592, %v1573, %v1057
        %v1607 = vsel %vm1592, %v1574, %v1059
        %v1608 = vsel %vm1592, %v1575, %v1061
        %v1609 = vsel %vm1592, %v1576, %v1063
        %v1610 = vsel %vm1592, %v1577, %v1065
        %v1611 = vsel %vm1592, %v1578, %v1067
        %v1612 = vsel %vm1592, %v1579, %v1069
        %v1613 = vsel %vm1592, %v1580, %v1071
        %v1614 = vsel %vm1592, %v1581, %v1073
        %v1615 = vsel %vm1592, %v1582, %v1075
        %v1616 = vsel %vm1592, %v1583, %v1077
        %v1617 = vsel %vm1592, %v1584, %v1079
        %v1618 = vsel %vm1592, %v1585, %v1081
        %v1619 = vsel %vm1592, %v1586, %v1083
        %v1620 = vsel %vm1592, %v1587, %v1085
        %v1621 = vsel %vm1592, %v1588, %v1087
        %v1622 = vsel %vm1592, %v1589, %v1089
        %v1623 = vsel %vm1592, %v1590, %v1091
        %v1624 = vsel %vm1592, %v1591, %v1093
        %vm1625 = vcmask 162816
        %v1626 = vsel %vm1625, %v1593, %v1132
        %v1627 = vsel %vm1625, %v1594, %v1134
        %v1628 = vsel %vm1625, %v1595, %v1136
        %v1629 = vsel %vm1625, %v1596, %v1138
        %v1630 = vsel %vm1625, %v1597, %v1140
        %v1631 = vsel %vm1625, %v1598, %v1142
        %v1632 = vsel %vm1625, %v1599, %v1144
        %v1633 = vsel %vm1625, %v1600, %v1146
        %v1634 = vsel %vm1625, %v1601, %v1148
        %v1635 = vsel %vm1625, %v1602, %v1150
        %v1636 = vsel %vm1625, %v1603, %v1152
        %v1637 = vsel %vm1625, %v1604, %v1154
        %v1638 = vsel %vm1625, %v1605, %v1156
        %v1639 = vsel %vm1625, %v1606, %v1158
        %v1640 = vsel %vm1625, %v1607, %v1160
        %v1641 = vsel %vm1625, %v1608, %v1162
        %v1642 = vsel %vm1625, %v1609, %v1164
        %v1643 = vsel %vm1625, %v1610, %v1166
        %v1644 = vsel %vm1625, %v1611, %v1168
        %v1645 = vsel %vm1625, %v1612, %v1170
        %v1646 = vsel %vm1625, %v1613, %v1172
        %v1647 = vsel %vm1625, %v1614, %v1174
        %v1648 = vsel %vm1625, %v1615, %v1176
        %v1649 = vsel %vm1625, %v1616, %v1178
        %v1650 = vsel %vm1625, %v1617, %v1180
        %v1651 = vsel %vm1625, %v1618, %v1182
        %v1652 = vsel %vm1625, %v1619, %v1184
        %v1653 = vsel %vm1625, %v1620, %v1186
        %v1654 = vsel %vm1625, %v1621, %v1188
        %v1655 = vsel %vm1625, %v1622, %v1190
        %v1656 = vsel %vm1625, %v1623, %v1192
        %v1657 = vsel %vm1625, %v1624, %v1194
        %vm1658 = vcmask 195584
        %v1659 = vsel %vm1658, %v1626, %v1228
        %v1660 = vsel %vm1658, %v1627, %v1230
        %v1661 = vsel %vm1658, %v1628, %v1232
        %v1662 = vsel %vm1658, %v1629, %v1234
        %v1663 = vsel %vm1658, %v1630, %v1236
        %v1664 = vsel %vm1658, %v1631, %v1238
        %v1665 = vsel %vm1658, %v1632, %v1240
        %v1666 = vsel %vm1658, %v1633, %v1242
        %v1667 = vsel %vm1658, %v1634, %v1244
        %v1668 = vsel %vm1658, %v1635, %v1246
        %v1669 = vsel %vm1658, %v1636, %v1248
        %v1670 = vsel %vm1658, %v1637, %v1250
        %v1671 = vsel %vm1658, %v1638, %v1252
        %v1672 = vsel %vm1658, %v1639, %v1254
        %v1673 = vsel %vm1658, %v1640, %v1256
        %v1674 = vsel %vm1658, %v1641, %v1258
        %v1675 = vsel %vm1658, %v1642, %v1260
        %v1676 = vsel %vm1658, %v1643, %v1262
        %v1677 = vsel %vm1658, %v1644, %v1264
        %v1678 = vsel %vm1658, %v1645, %v1266
        %v1679 = vsel %vm1658, %v1646, %v1268
        %v1680 = vsel %vm1658, %v1647, %v1270
        %v1681 = vsel %vm1658, %v1648, %v1272
        %v1682 = vsel %vm1658, %v1649, %v1274
        %v1683 = vsel %vm1658, %v1650, %v1276
        %v1684 = vsel %vm1658, %v1651, %v1278
        %v1685 = vsel %vm1658, %v1652, %v1280
        %v1686 = vsel %vm1658, %v1653, %v1282
        %v1687 = vsel %vm1658, %v1654, %v1284
        %v1688 = vsel %vm1658, %v1655, %v1286
        %v1689 = vsel %vm1658, %v1656, %v1280
        %v1690 = vsel %vm1658, %v1657, %v1282
        %vm1691 = vcmask 228352
        %v1692 = vsel %vm1691, %v1659, %v1318
        %v1693 = vsel %vm1691, %v1660, %v1320
        %v1694 = vsel %vm1691, %v1661, %v1322
        %v1695 = vsel %vm1691, %v1662, %v1324
        %v1696 = vsel %vm1691, %v1663, %v1326
        %v1697 = vsel %vm1691, %v1664, %v1328
        %v1698 = vsel %vm1691, %v1665, %v1330
        %v1699 = vsel %vm1691, %v1666, %v1332
        %v1700 = vsel %vm1691, %v1667, %v1334
        %v1701 = vsel %vm1691, %v1668, %v1336
        %v1702 = vsel %vm1691, %v1669, %v1338
        %v1703 = vsel %vm1691, %v1670, %v1340
        %v1704 = vsel %vm1691, %v1671, %v1342
        %v1705 = vsel %vm1691, %v1672, %v1344
        %v1706 = vsel %vm1691, %v1673, %v1346
        %v1707 = vsel %vm1691, %v1674, %v1348
        %v1708 = vsel %vm1691, %v1675, %v1350
        %v1709 = vsel %vm1691, %v1676, %v1352
        %v1710 = vsel %vm1691, %v1677, %v1354
        %v1711 = vsel %vm1691, %v1678, %v1356
        %v1712 = vsel %vm1691, %v1679, %v1358
        %v1713 = vsel %vm1691, %v1680, %v1360
        %v1714 = vsel %vm1691, %v1681, %v1362
        %v1715 = vsel %vm1691, %v1682, %v1364
        %v1716 = vsel %vm1691, %v1683, %v1366
        %v1717 = vsel %vm1691, %v1684, %v1368
        %v1718 = vsel %vm1691, %v1685, %v1370
        %v1719 = vsel %vm1691, %v1686, %v1372
        %v1720 = vsel %vm1691, %v1687, %v1374
        %v1721 = vsel %vm1691, %v1688, %v1376
        %v1722 = vsel %vm1691, %v1689, %v1370
        %v1723 = vsel %vm1691, %v1690, %v1372
        %vm1724 = vcmask 261120
        %v1725 = vsel %vm1724, %v1692, %v1408
        %v1726 = vsel %vm1724, %v1693, %v1410
        %v1727 = vsel %vm1724, %v1694, %v1412
        %v1728 = vsel %vm1724, %v1695, %v1414
        %v1729 = vsel %vm1724, %v1696, %v1416
        %v1730 = vsel %vm1724, %v1697, %v1418
        %v1731 = vsel %vm1724, %v1698, %v1420
        %v1732 = vsel %vm1724, %v1699, %v1422
        %v1733 = vsel %vm1724, %v1700, %v1424
        %v1734 = vsel %vm1724, %v1701, %v1426
        %v1735 = vsel %vm1724, %v1702, %v1428
        %v1736 = vsel %vm1724, %v1703, %v1430
        %v1737 = vsel %vm1724, %v1704, %v1432
        %v1738 = vsel %vm1724, %v1705, %v1434
        %v1739 = vsel %vm1724, %v1706, %v1436
        %v1740 = vsel %vm1724, %v1707, %v1438
        %v1741 = vsel %vm1724, %v1708, %v1440
        %v1742 = vsel %vm1724, %v1709, %v1442
        %v1743 = vsel %vm1724, %v1710, %v1444
        %v1744 = vsel %vm1724, %v1711, %v1446
        %v1745 = vsel %vm1724, %v1712, %v1448
        %v1746 = vsel %vm1724, %v1713, %v1450
        %v1747 = vsel %vm1724, %v1714, %v1452
        %v1748 = vsel %vm1724, %v1715, %v1454
        %v1749 = vsel %vm1724, %v1716, %v1456
        %v1750 = vsel %vm1724, %v1717, %v1458
        %v1751 = vsel %vm1724, %v1718, %v1460
        %v1752 = vsel %vm1724, %v1719, %v1462
        %v1753 = vsel %vm1724, %v1720, %v1464
        %v1754 = vsel %vm1724, %v1721, %v1466
        %v1755 = vsel %vm1724, %v1722, %v1460
        %v1756 = vsel %vm1724, %v1723, %v1462
        %v1757 = vld [vmem:[%s1] sm:$0xff]
        %v1758 = vld [vmem:[%s1 + $0x8] sm:$0xff]
        %v1759 = vld [vmem:[%s1 + $0x10] sm:$0xff]
        %v1760 = vld [vmem:[%s1 + $0x18] sm:$0xff]
        %v1761 = vld [vmem:[%s1 + $0x20] sm:$0xf]
        %vm1762 = vcmask 293888
        %v1764 = vsel %vm1762, %v1725, 0
        %v1767 = vsel %vm1762, %v1726, 0
        %v1770 = vsel %vm1762, %v1727, 0
        %v1773 = vsel %vm1762, %v1728, 0
        %v1776 = vsel %vm1762, %v1729, 0
        %v1779 = vsel %vm1762, %v1730, 0
        %v1782 = vsel %vm1762, %v1731, 0
        %v1785 = vsel %vm1762, %v1732, 0
        %v1788 = vsel %vm1762, %v1733, 0
        %v1791 = vsel %vm1762, %v1734, 0
        %v1794 = vsel %vm1762, %v1735, 0
        %v1797 = vsel %vm1762, %v1736, 0
        %v1800 = vsel %vm1762, %v1737, 0
        %v1803 = vsel %vm1762, %v1738, 0
        %v1806 = vsel %vm1762, %v1739, 0
        %v1809 = vsel %vm1762, %v1740, 0
        %v1812 = vsel %vm1762, %v1741, 0
        %v1815 = vsel %vm1762, %v1742, 0
        %v1818 = vsel %vm1762, %v1743, 0
        %v1821 = vsel %vm1762, %v1744, 0
        %v1824 = vsel %vm1762, %v1745, 0
        %v1827 = vsel %vm1762, %v1746, 0
        %v1830 = vsel %vm1762, %v1747, 0
        %v1833 = vsel %vm1762, %v1748, 0
        %v1836 = vsel %vm1762, %v1749, 0
        %v1839 = vsel %vm1762, %v1750, 0
        %v1842 = vsel %vm1762, %v1751, 0
        %v1845 = vsel %vm1762, %v1752, 0
        %v1848 = vsel %vm1762, %v1753, 0
        %v1851 = vsel %vm1762, %v1754, 0
        %v1854 = vsel %vm1762, %v1755, 0
        %v1857 = vsel %vm1762, %v1756, 0
        %vm1859 = vcmask 1043456
        %v1861 = vsel %vm1859, %v1761, 0
        %1863 = vmatprep.subr.mxu0 0.0
        %1864 = vmatpush1.msra.mxu0 0.0
        %1865 = vmatprep.subr.mxu0 0.0
        %1866 = vmatpush1.msra.mxu0 0.0
        %1867 = vmatprep.subr.mxu0 0.0
        %1868 = vmatpush1.msra.mxu0 0.0
        %1869 = vmatprep.subr.mxu0 0.0
        %1870 = vmatpush1.msra.mxu0 0.0
        %1871 = vmatprep.subr.mxu0 0.0
        %1872 = vmatpush1.msra.mxu0 0.0
        %1873 = vmatprep.subr.mxu0 0.0
        %1874 = vmatpush1.msra.mxu0 0.0
        %1875 = vmatprep.subr.mxu0 0.0
        %1876 = vmatpush1.msra.mxu0 0.0
        %1877 = vmatprep.subr.mxu0 0.0
        %1878 = vmatpush1.msra.mxu0 0.0
        %1879 = vmatprep.subr.mxu0 0.0
        %1880 = vmatpush1.msra.mxu0 0.0
        %1881 = vmatprep.subr.mxu0 0.0
        %1882 = vmatpush1.msra.mxu0 0.0
        %1883 = vmatprep.subr.mxu0 0.0
        %1884 = vmatpush1.msra.mxu0 0.0
        %1885 = vmatprep.subr.mxu0 0.0
        %1886 = vmatpush1.msra.mxu0 %v1861
        %1887 = vmatprep.subr.mxu0 0.0
        %1888 = vmatpush1.msra.mxu0 %v1760
        %1889 = vmatprep.subr.mxu0 0.0
        %1890 = vmatpush1.msra.mxu0 %v1759
        %1891 = vmatprep.subr.mxu0 0.0
        %1892 = vmatpush1.msra.mxu0 %v1758
        %1893 = vmatprep.subr.mxu0 0.0
        %1894 = vmatpush1.msra.mxu0 %v1757
        %1895 = vmatprep.subr.mxu0 0.0
        %1896 = vmatpush2.msra.mxu0 0.0
        %1897 = vmatprep.subr.mxu0 0.0
        %1898 = vmatpush2.msra.mxu0 0.0
        %1899 = vmatprep.subr.mxu0 0.0
        %1900 = vmatpush2.msra.mxu0 0.0
        %1901 = vmatprep.subr.mxu0 0.0
        %1902 = vmatpush2.msra.mxu0 0.0
        %1903 = vmatprep.subr.mxu0 0.0
        %1904 = vmatpush2.msra.mxu0 0.0
        %1905 = vmatprep.subr.mxu0 0.0
        %1906 = vmatpush2.msra.mxu0 0.0
        %1907 = vmatprep.subr.mxu0 0.0
        %1908 = vmatpush2.msra.mxu0 0.0
        %1909 = vmatprep.subr.mxu0 0.0
        %1910 = vmatpush2.msra.mxu0 0.0
        %1911 = vmatprep.subr.mxu0 0.0
        %1912 = vmatpush2.msra.mxu0 0.0
        %1913 = vmatprep.subr.mxu0 0.0
        %1914 = vmatpush2.msra.mxu0 0.0
        %1915 = vmatprep.subr.mxu0 0.0
        %1916 = vmatpush2.msra.mxu0 0.0
        %1917 = vmatprep.subr.mxu0 0.0
        %1918 = vmatpush2.msra.mxu0 0.0
        %1919 = vmatprep.subr.mxu0 0.0
        %1920 = vmatpush2.msra.mxu0 0.0
        %1921 = vmatprep.subr.mxu0 0.0
        %1922 = vmatpush2.msra.mxu0 0.0
        %1923 = vmatprep.subr.mxu0 0.0
        %1924 = vmatpush2.msra.mxu0 0.0
        %1925 = vmatprep.subr.mxu0 0.0
        %1926 = vmatpush2.msra.mxu0 0.0
        %1927 = vmatprep.mubr.f32.mxu0 0.0
        %1928 = vmatmul.mubr.f32.gmra.mxu0 %v1764
        %v1929 = vpop.f32.mrf.mxu0
        %v1930 = vadd.f32 0.0, %v1929
        %v1931 = vpop.f32.mrf.mxu0
        %1932 = vmatprep.mubr.f32.mxu0 0.0
        %1933 = vmatmul.mubr.f32.gmra.mxu0 %v1767
        %v1934 = vpop.f32.mrf.mxu0
        %v1935 = vadd.f32 0.0, %v1934
        %v1936 = vpop.f32.mrf.mxu0
        %1937 = vmatprep.mubr.f32.mxu0 0.0
        %1938 = vmatmul.mubr.f32.gmra.mxu0 %v1770
        %v1939 = vpop.f32.mrf.mxu0
        %v1940 = vadd.f32 0.0, %v1939
        %v1941 = vpop.f32.mrf.mxu0
        %1942 = vmatprep.mubr.f32.mxu0 0.0
        %1943 = vmatmul.mubr.f32.gmra.mxu0 %v1773
        %v1944 = vpop.f32.mrf.mxu0
        %v1945 = vadd.f32 0.0, %v1944
        %v1946 = vpop.f32.mrf.mxu0
        %1947 = vmatprep.mubr.f32.mxu0 0.0
        %1948 = vmatmul.mubr.f32.gmra.mxu0 %v1776
        %v1949 = vpop.f32.mrf.mxu0
        %v1950 = vadd.f32 0.0, %v1949
        %v1951 = vpop.f32.mrf.mxu0
        %1952 = vmatprep.mubr.f32.mxu0 0.0
        %1953 = vmatmul.mubr.f32.gmra.mxu0 %v1779
        %v1954 = vpop.f32.mrf.mxu0
        %v1955 = vadd.f32 0.0, %v1954
        %v1956 = vpop.f32.mrf.mxu0
        %1957 = vmatprep.mubr.f32.mxu0 0.0
        %1958 = vmatmul.mubr.f32.gmra.mxu0 %v1782
        %v1959 = vpop.f32.mrf.mxu0
        %v1960 = vadd.f32 0.0, %v1959
        %v1961 = vpop.f32.mrf.mxu0
        %1962 = vmatprep.mubr.f32.mxu0 0.0
        %1963 = vmatmul.mubr.f32.gmra.mxu0 %v1785
        %v1964 = vpop.f32.mrf.mxu0
        %v1965 = vadd.f32 0.0, %v1964
        %v1966 = vpop.f32.mrf.mxu0
        %1967 = vmatprep.mubr.f32.mxu0 0.0
        %1968 = vmatmul.mubr.f32.gmra.mxu0 %v1788
        %v1969 = vpop.f32.mrf.mxu0
        %v1970 = vadd.f32 0.0, %v1969
        %v1971 = vpop.f32.mrf.mxu0
        %1972 = vmatprep.mubr.f32.mxu0 0.0
        %1973 = vmatmul.mubr.f32.gmra.mxu0 %v1791
        %v1974 = vpop.f32.mrf.mxu0
        %v1975 = vadd.f32 0.0, %v1974
        %v1976 = vpop.f32.mrf.mxu0
        %1977 = vmatprep.mubr.f32.mxu0 0.0
        %1978 = vmatmul.mubr.f32.gmra.mxu0 %v1794
        %v1979 = vpop.f32.mrf.mxu0
        %v1980 = vadd.f32 0.0, %v1979
        %v1981 = vpop.f32.mrf.mxu0
        %1982 = vmatprep.mubr.f32.mxu0 0.0
        %1983 = vmatmul.mubr.f32.gmra.mxu0 %v1797
        %v1984 = vpop.f32.mrf.mxu0
        %v1985 = vadd.f32 0.0, %v1984
        %v1986 = vpop.f32.mrf.mxu0
        %1987 = vmatprep.mubr.f32.mxu0 0.0
        %1988 = vmatmul.mubr.f32.gmra.mxu0 %v1800
        %v1989 = vpop.f32.mrf.mxu0
        %v1990 = vadd.f32 0.0, %v1989
        %v1991 = vpop.f32.mrf.mxu0
        %1992 = vmatprep.mubr.f32.mxu0 0.0
        %1993 = vmatmul.mubr.f32.gmra.mxu0 %v1803
        %v1994 = vpop.f32.mrf.mxu0
        %v1995 = vadd.f32 0.0, %v1994
        %v1996 = vpop.f32.mrf.mxu0
        %1997 = vmatprep.mubr.f32.mxu0 0.0
        %1998 = vmatmul.mubr.f32.gmra.mxu0 %v1806
        %v1999 = vpop.f32.mrf.mxu0
        %v2000 = vadd.f32 0.0, %v1999
        %v2001 = vpop.f32.mrf.mxu0
        %2002 = vmatprep.mubr.f32.mxu0 0.0
        %2003 = vmatmul.mubr.f32.gmra.mxu0 %v1809
        %v2004 = vpop.f32.mrf.mxu0
        %v2005 = vadd.f32 0.0, %v2004
        %v2006 = vpop.f32.mrf.mxu0
        %2007 = vmatprep.mubr.f32.mxu0 0.0
        %2008 = vmatmul.mubr.f32.gmra.mxu0 %v1812
        %v2009 = vpop.f32.mrf.mxu0
        %v2010 = vadd.f32 0.0, %v2009
        %v2011 = vpop.f32.mrf.mxu0
        %2012 = vmatprep.mubr.f32.mxu0 0.0
        %2013 = vmatmul.mubr.f32.gmra.mxu0 %v1815
        %v2014 = vpop.f32.mrf.mxu0
        %v2015 = vadd.f32 0.0, %v2014
        %v2016 = vpop.f32.mrf.mxu0
        %2017 = vmatprep.mubr.f32.mxu0 0.0
        %2018 = vmatmul.mubr.f32.gmra.mxu0 %v1818
        %v2019 = vpop.f32.mrf.mxu0
        %v2020 = vadd.f32 0.0, %v2019
        %v2021 = vpop.f32.mrf.mxu0
        %2022 = vmatprep.mubr.f32.mxu0 0.0
        %2023 = vmatmul.mubr.f32.gmra.mxu0 %v1821
        %v2024 = vpop.f32.mrf.mxu0
        %v2025 = vadd.f32 0.0, %v2024
        %v2026 = vpop.f32.mrf.mxu0
        %2027 = vmatprep.mubr.f32.mxu0 0.0
        %2028 = vmatmul.mubr.f32.gmra.mxu0 %v1824
        %v2029 = vpop.f32.mrf.mxu0
        %v2030 = vadd.f32 0.0, %v2029
        %v2031 = vpop.f32.mrf.mxu0
        %2032 = vmatprep.mubr.f32.mxu0 0.0
        %2033 = vmatmul.mubr.f32.gmra.mxu0 %v1827
        %v2034 = vpop.f32.mrf.mxu0
        %v2035 = vadd.f32 0.0, %v2034
        %v2036 = vpop.f32.mrf.mxu0
        %2037 = vmatprep.mubr.f32.mxu0 0.0
        %2038 = vmatmul.mubr.f32.gmra.mxu0 %v1830
        %v2039 = vpop.f32.mrf.mxu0
        %v2040 = vadd.f32 0.0, %v2039
        %v2041 = vpop.f32.mrf.mxu0
        %2042 = vmatprep.mubr.f32.mxu0 0.0
        %2043 = vmatmul.mubr.f32.gmra.mxu0 %v1833
        %v2044 = vpop.f32.mrf.mxu0
        %v2045 = vadd.f32 0.0, %v2044
        %v2046 = vpop.f32.mrf.mxu0
        %2047 = vmatprep.mubr.f32.mxu0 0.0
        %2048 = vmatmul.mubr.f32.gmra.mxu0 %v1836
        %v2049 = vpop.f32.mrf.mxu0
        %v2050 = vadd.f32 0.0, %v2049
        %v2051 = vpop.f32.mrf.mxu0
        %2052 = vmatprep.mubr.f32.mxu0 0.0
        %2053 = vmatmul.mubr.f32.gmra.mxu0 %v1839
        %v2054 = vpop.f32.mrf.mxu0
        %v2055 = vadd.f32 0.0, %v2054
        %v2056 = vpop.f32.mrf.mxu0
        %2057 = vmatprep.mubr.f32.mxu0 0.0
        %2058 = vmatmul.mubr.f32.gmra.mxu0 %v1842
        %v2059 = vpop.f32.mrf.mxu0
        %v2060 = vadd.f32 0.0, %v2059
        %v2061 = vpop.f32.mrf.mxu0
        %2062 = vmatprep.mubr.f32.mxu0 0.0
        %2063 = vmatmul.mubr.f32.gmra.mxu0 %v1845
        %v2064 = vpop.f32.mrf.mxu0
        %v2065 = vadd.f32 0.0, %v2064
        %v2066 = vpop.f32.mrf.mxu0
        %2067 = vmatprep.mubr.f32.mxu0 0.0
        %2068 = vmatmul.mubr.f32.gmra.mxu0 %v1848
        %v2069 = vpop.f32.mrf.mxu0
        %v2070 = vadd.f32 0.0, %v2069
        %v2071 = vpop.f32.mrf.mxu0
        %2072 = vmatprep.mubr.f32.mxu0 0.0
        %2073 = vmatmul.mubr.f32.gmra.mxu0 %v1851
        %v2074 = vpop.f32.mrf.mxu0
        %v2075 = vadd.f32 0.0, %v2074
        %v2076 = vpop.f32.mrf.mxu0
        %2077 = vmatprep.mubr.f32.mxu0 0.0
        %2078 = vmatmul.mubr.f32.gmra.mxu0 %v1854
        %v2079 = vpop.f32.mrf.mxu0
        %v2080 = vadd.f32 0.0, %v2079
        %v2081 = vpop.f32.mrf.mxu0
        %2082 = vmatprep.mubr.f32.mxu0 0.0
        %2083 = vmatmul.mubr.f32.gmra.mxu0 %v1857
        %v2084 = vpop.f32.mrf.mxu0
        %v2085 = vadd.f32 0.0, %v2084
        %v2086 = vpop.f32.mrf.mxu0
        %2087 = vdwg.mxu0
        %s2088 = scalar_lea.vmem [#allocation2], %s297
        %2089 = vst.msk [vmem:[%s2088] sm:$0xff] %vm1528, %v1930
        %2090 = vst.msk [vmem:[%s2088 + $0x8] sm:$0xff] %vm1528, %v1935
        %2091 = vst.msk [vmem:[%s2088 + $0x10] sm:$0xff] %vm1528, %v1940
        %2092 = vst.msk [vmem:[%s2088 + $0x18] sm:$0xff] %vm1528, %v1945
        %2093 = vst.msk [vmem:[%s2088 + $0x20] sm:$0xff] %vm1528, %v1950
        %2094 = vst.msk [vmem:[%s2088 + $0x28] sm:$0xff] %vm1528, %v1955
        %2095 = vst.msk [vmem:[%s2088 + $0x30] sm:$0xff] %vm1528, %v1960
        %2096 = vst.msk [vmem:[%s2088 + $0x38] sm:$0xff] %vm1528, %v1965
        %2097 = vst.msk [vmem:[%s2088 + $0x40] sm:$0xff] %vm1528, %v1970
        %2098 = vst.msk [vmem:[%s2088 + $0x48] sm:$0xff] %vm1528, %v1975
        %2099 = vst.msk [vmem:[%s2088 + $0x50] sm:$0xff] %vm1528, %v1980
        %2100 = vst.msk [vmem:[%s2088 + $0x58] sm:$0xff] %vm1528, %v1985
        %2101 = vst.msk [vmem:[%s2088 + $0x60] sm:$0xff] %vm1528, %v1990
        %2102 = vst.msk [vmem:[%s2088 + $0x68] sm:$0xff] %vm1528, %v1995
        %2103 = vst.msk [vmem:[%s2088 + $0x70] sm:$0xff] %vm1528, %v2000
        %2104 = vst.msk [vmem:[%s2088 + $0x78] sm:$0xff] %vm1528, %v2005
        %2105 = vst.msk [vmem:[%s2088 + $0x80] sm:$0xff] %vm1528, %v2010
        %2106 = vst.msk [vmem:[%s2088 + $0x88] sm:$0xff] %vm1528, %v2015
        %2107 = vst.msk [vmem:[%s2088 + $0x90] sm:$0xff] %vm1528, %v2020
        %2108 = vst.msk [vmem:[%s2088 + $0x98] sm:$0xff] %vm1528, %v2025
        %2109 = vst.msk [vmem:[%s2088 + $0xa0] sm:$0xff] %vm1528, %v2030
        %2110 = vst.msk [vmem:[%s2088 + $0xa8] sm:$0xff] %vm1528, %v2035
        %2111 = vst.msk [vmem:[%s2088 + $0xb0] sm:$0xff] %vm1528, %v2040
        %2112 = vst.msk [vmem:[%s2088 + $0xb8] sm:$0xff] %vm1528, %v2045
        %2113 = vst.msk [vmem:[%s2088 + $0xc0] sm:$0xff] %vm1528, %v2050
        %2114 = vst.msk [vmem:[%s2088 + $0xc8] sm:$0xff] %vm1528, %v2055
        %2115 = vst.msk [vmem:[%s2088 + $0xd0] sm:$0xff] %vm1528, %v2060
        %2116 = vst.msk [vmem:[%s2088 + $0xd8] sm:$0xff] %vm1528, %v2065
        %2117 = vst.msk [vmem:[%s2088 + $0xe0] sm:$0xff] %vm1528, %v2070
        %2118 = vst.msk [vmem:[%s2088 + $0xe8] sm:$0xff] %vm1528, %v2075
        %2119 = vst.msk [vmem:[%s2088 + $0xf0] sm:$0xff] %vm1528, %v2080
        %2120 = vst.msk [vmem:[%s2088 + $0xf8] sm:$0xff] %vm1528, %v2085
        %v2121 = vld [vmem:[#allocation3] sm:$0x1]
        %v2122 = vsel %vm1528, %v1930, 0.0
        %v2123 = vsel %vm1528, %v1935, 0.0
        %v2124 = vadd.f32 %v2122, %v2123
        %v2125 = vsel %vm1528, %v1940, 0.0
        %v2126 = vadd.f32 %v2124, %v2125
        %v2127 = vsel %vm1528, %v1945, 0.0
        %v2128 = vadd.f32 %v2126, %v2127
        %v2129 = vsel %vm1528, %v1950, 0.0
        %v2130 = vadd.f32 %v2128, %v2129
        %v2131 = vsel %vm1528, %v1955, 0.0
        %v2132 = vadd.f32 %v2130, %v2131
        %v2133 = vsel %vm1528, %v1960, 0.0
        %v2134 = vadd.f32 %v2132, %v2133
        %v2135 = vsel %vm1528, %v1965, 0.0
        %v2136 = vadd.f32 %v2134, %v2135
        %v2137 = vsel %vm1528, %v1970, 0.0
        %v2138 = vadd.f32 %v2136, %v2137
        %v2139 = vsel %vm1528, %v1975, 0.0
        %v2140 = vadd.f32 %v2138, %v2139
        %v2141 = vsel %vm1528, %v1980, 0.0
        %v2142 = vadd.f32 %v2140, %v2141
        %v2143 = vsel %vm1528, %v1985, 0.0
        %v2144 = vadd.f32 %v2142, %v2143
        %v2145 = vsel %vm1528, %v1990, 0.0
        %v2146 = vadd.f32 %v2144, %v2145
        %v2147 = vsel %vm1528, %v1995, 0.0
        %v2148 = vadd.f32 %v2146, %v2147
        %v2149 = vsel %vm1528, %v2000, 0.0
        %v2150 = vadd.f32 %v2148, %v2149
        %v2151 = vsel %vm1528, %v2005, 0.0
        %v2152 = vadd.f32 %v2150, %v2151
        %v2153 = vsel %vm1528, %v2010, 0.0
        %v2154 = vadd.f32 %v2152, %v2153
        %v2155 = vsel %vm1528, %v2015, 0.0
        %v2156 = vadd.f32 %v2154, %v2155
        %v2157 = vsel %vm1528, %v2020, 0.0
        %v2158 = vadd.f32 %v2156, %v2157
        %v2159 = vsel %vm1528, %v2025, 0.0
        %v2160 = vadd.f32 %v2158, %v2159
        %v2161 = vsel %vm1528, %v2030, 0.0
        %v2162 = vadd.f32 %v2160, %v2161
        %v2163 = vsel %vm1528, %v2035, 0.0
        %v2164 = vadd.f32 %v2162, %v2163
        %v2165 = vsel %vm1528, %v2040, 0.0
        %v2166 = vadd.f32 %v2164, %v2165
        %v2167 = vsel %vm1528, %v2045, 0.0
        %v2168 = vadd.f32 %v2166, %v2167
        %v2169 = vsel %vm1528, %v2050, 0.0
        %v2170 = vadd.f32 %v2168, %v2169
        %v2171 = vsel %vm1528, %v2055, 0.0
        %v2172 = vadd.f32 %v2170, %v2171
        %v2173 = vsel %vm1528, %v2060, 0.0
        %v2174 = vadd.f32 %v2172, %v2173
        %v2175 = vsel %vm1528, %v2065, 0.0
        %v2176 = vadd.f32 %v2174, %v2175
        %v2177 = vsel %vm1528, %v2070, 0.0
        %v2178 = vadd.f32 %v2176, %v2177
        %v2179 = vsel %vm1528, %v2075, 0.0
        %v2180 = vadd.f32 %v2178, %v2179
        %v2181 = vsel %vm1528, %v2080, 0.0
        %v2182 = vadd.f32 %v2180, %v2181
        %v2183 = vsel %vm1528, %v2085, 0.0
        %v2184 = vadd.f32 %v2182, %v2183
        %v2185 = vrot.slane %v2184, 4
        %v2186 = vadd.f32 %v2184, %v2185
        %v2187 = vrot.slane %v2186, 2
        %v2188 = vadd.f32 %v2186, %v2187
        %v2189 = vrot.slane %v2188, 1
        %v2190 = vadd.f32 %v2188, %v2189
        %v2191 = vadd.f32 %v2121, %v2190
        %vm2192 = vcmask 57344
        %2193 = vst.msk [vmem:[#allocation3] sm:$0x1] %vm2192, %v2191
        %v2194 = vld [vmem:[#allocation3 + $0x1] sm:$0x1]
        %v2195 = vmul.f32 %v1930, %v1930
        %v2196 = vmul.f32 %v1935, %v1935
        %v2197 = vmul.f32 %v1940, %v1940
        %v2198 = vmul.f32 %v1945, %v1945
        %v2199 = vmul.f32 %v1950, %v1950
        %v2200 = vmul.f32 %v1955, %v1955
        %v2201 = vmul.f32 %v1960, %v1960
        %v2202 = vmul.f32 %v1965, %v1965
        %v2203 = vmul.f32 %v1970, %v1970
        %v2204 = vmul.f32 %v1975, %v1975
        %v2205 = vmul.f32 %v1980, %v1980
        %v2206 = vmul.f32 %v1985, %v1985
        %v2207 = vmul.f32 %v1990, %v1990
        %v2208 = vmul.f32 %v1995, %v1995
        %v2209 = vmul.f32 %v2000, %v2000
        %v2210 = vmul.f32 %v2005, %v2005
        %v2211 = vmul.f32 %v2010, %v2010
        %v2212 = vmul.f32 %v2015, %v2015
        %v2213 = vmul.f32 %v2020, %v2020
        %v2214 = vmul.f32 %v2025, %v2025
        %v2215 = vmul.f32 %v2030, %v2030
        %v2216 = vmul.f32 %v2035, %v2035
        %v2217 = vmul.f32 %v2040, %v2040
        %v2218 = vmul.f32 %v2045, %v2045
        %v2219 = vmul.f32 %v2050, %v2050
        %v2220 = vmul.f32 %v2055, %v2055
        %v2221 = vmul.f32 %v2060, %v2060
        %v2222 = vmul.f32 %v2065, %v2065
        %v2223 = vmul.f32 %v2070, %v2070
        %v2224 = vmul.f32 %v2075, %v2075
        %v2225 = vmul.f32 %v2080, %v2080
        %v2226 = vmul.f32 %v2085, %v2085
        %v2227 = vsel %vm1528, %v2195, 0.0
        %v2228 = vsel %vm1528, %v2196, 0.0
        %v2229 = vadd.f32 %v2227, %v2228
        %v2230 = vsel %vm1528, %v2197, 0.0
        %v2231 = vadd.f32 %v2229, %v2230
        %v2232 = vsel %vm1528, %v2198, 0.0
        %v2233 = vadd.f32 %v2231, %v2232
        %v2234 = vsel %vm1528, %v2199, 0.0
        %v2235 = vadd.f32 %v2233, %v2234
        %v2236 = vsel %vm1528, %v2200, 0.0
        %v2237 = vadd.f32 %v2235, %v2236
        %v2238 = vsel %vm1528, %v2201, 0.0
        %v2239 = vadd.f32 %v2237, %v2238
        %v2240 = vsel %vm1528, %v2202, 0.0
        %v2241 = vadd.f32 %v2239, %v2240
        %v2242 = vsel %vm1528, %v2203, 0.0
        %v2243 = vadd.f32 %v2241, %v2242
        %v2244 = vsel %vm1528, %v2204, 0.0
        %v2245 = vadd.f32 %v2243, %v2244
        %v2246 = vsel %vm1528, %v2205, 0.0
        %v2247 = vadd.f32 %v2245, %v2246
        %v2248 = vsel %vm1528, %v2206, 0.0
        %v2249 = vadd.f32 %v2247, %v2248
        %v2250 = vsel %vm1528, %v2207, 0.0
        %v2251 = vadd.f32 %v2249, %v2250
        %v2252 = vsel %vm1528, %v2208, 0.0
        %v2253 = vadd.f32 %v2251, %v2252
        %v2254 = vsel %vm1528, %v2209, 0.0
        %v2255 = vadd.f32 %v2253, %v2254
        %v2256 = vsel %vm1528, %v2210, 0.0
        %v2257 = vadd.f32 %v2255, %v2256
        %v2258 = vsel %vm1528, %v2211, 0.0
        %v2259 = vadd.f32 %v2257, %v2258
        %v2260 = vsel %vm1528, %v2212, 0.0
        %v2261 = vadd.f32 %v2259, %v2260
        %v2262 = vsel %vm1528, %v2213, 0.0
        %v2263 = vadd.f32 %v2261, %v2262
        %v2264 = vsel %vm1528, %v2214, 0.0
        %v2265 = vadd.f32 %v2263, %v2264
        %v2266 = vsel %vm1528, %v2215, 0.0
        %v2267 = vadd.f32 %v2265, %v2266
        %v2268 = vsel %vm1528, %v2216, 0.0
        %v2269 = vadd.f32 %v2267, %v2268
        %v2270 = vsel %vm1528, %v2217, 0.0
        %v2271 = vadd.f32 %v2269, %v2270
        %v2272 = vsel %vm1528, %v2218, 0.0
        %v2273 = vadd.f32 %v2271, %v2272
        %v2274 = vsel %vm1528, %v2219, 0.0
        %v2275 = vadd.f32 %v2273, %v2274
        %v2276 = vsel %vm1528, %v2220, 0.0
        %v2277 = vadd.f32 %v2275, %v2276
        %v2278 = vsel %vm1528, %v2221, 0.0
        %v2279 = vadd.f32 %v2277, %v2278
        %v2280 = vsel %vm1528, %v2222, 0.0
        %v2281 = vadd.f32 %v2279, %v2280
        %v2282 = vsel %vm1528, %v2223, 0.0
        %v2283 = vadd.f32 %v2281, %v2282
        %v2284 = vsel %vm1528, %v2224, 0.0
        %v2285 = vadd.f32 %v2283, %v2284
        %v2286 = vsel %vm1528, %v2225, 0.0
        %v2287 = vadd.f32 %v2285, %v2286
        %v2288 = vsel %vm1528, %v2226, 0.0
        %v2289 = vadd.f32 %v2287, %v2288
        %v2290 = vrot.slane %v2289, 4
        %v2291 = vadd.f32 %v2289, %v2290
        %v2292 = vrot.slane %v2291, 2
        %v2293 = vadd.f32 %v2291, %v2292
        %v2294 = vrot.slane %v2293, 1
        %v2295 = vadd.f32 %v2293, %v2294
        %v2296 = vadd.f32 %v2194, %v2295
        %2297 = vst.msk [vmem:[#allocation3 + $0x1] sm:$0x1] %vm2192, %v2296
      $region56: #{tpu_custom_call.1} parent=47 // pred_fallthru
        _
      %p2298 = scmp.eq.s32.totalorder %s22, 1
      %p2299 = pnand %p2298, %p299
      %p2300 = pneg %p2299
      // Predicated region
      $region57: #{tpu_custom_call.1} parent=47 // pred_check
        _
      $region58: #{tpu_custom_call.1} parent=47 // pred_check_branch
        %2302 = sbr.rel (%p2299) target = $region60
      $region59: #{tpu_custom_call.1} parent=47 // pred_region
        %v2303 = vld [vmem:[#allocation3] sm:$0x1]
        %v2304 = vmul.f32 %v2303, 0.001953125
        %v2305 = vld [vmem:[#allocation3 + $0x1] sm:$0x1]
        %v2306 = vmul.f32 %v2305, 0.001953125
        %v2307 = vmul.f32 %v2304, %v2304
        %v2308 = vsub.f32 %v2306, %v2307
        %v2309 = vld [vmem:[%s3] sm:$0x1]
        %v2310 = vadd.f32 %v2308, 1e-05
        %v2311 = vrsqrt.pop %v2310
        %v2312 = vmul.f32 %v2309, %v2311
        %vm2313 = vcmask 57344
        %2314 = vst.msk [vmem:[#allocation4] sm:$0x1] %vm2313, %v2312
        %v2315 = vld [vmem:[%s4] sm:$0x1]
        %v2316 = vmul.f32 %v2304, %v2312
        %v2317 = vsub.f32 %v2315, %v2316
        %2318 = vst.msk [vmem:[#allocation4 + $0x1] sm:$0x1] %vm2313, %v2317
        %vm2319 = vcmask 58368
        %2320 = vst.msk [vmem:[#allocation5] sm:$0x3] %vm2319, 0.0
      $region60: #{tpu_custom_call.1} parent=47 // pred_fallthru
        _
      // Predicated region
      $region61: #{tpu_custom_call.1} parent=47 // pred_check
        %p2321 = pneg %p2298
      $region62: #{tpu_custom_call.1} parent=47 // pred_check_branch
        %2323 = sbr.rel (%p2321) target = $region64
      $region63: #{tpu_custom_call.1} parent=47 // pred_region
        %s2324 = scalar_lea.vmem [#allocation2], %s297
        %v2325 = vld [vmem:[%s2324] sm:$0xff]
        %v2326 = vld [vmem:[%s2324 + $0x8] sm:$0xff]
        %v2327 = vld [vmem:[%s2324 + $0x10] sm:$0xff]
        %v2328 = vld [vmem:[%s2324 + $0x18] sm:$0xff]
        %v2329 = vld [vmem:[%s2324 + $0x20] sm:$0xff]
        %v2330 = vld [vmem:[%s2324 + $0x28] sm:$0xff]
        %v2331 = vld [vmem:[%s2324 + $0x30] sm:$0xff]
        %v2332 = vld [vmem:[%s2324 + $0x38] sm:$0xff]
        %v2333 = vld [vmem:[%s2324 + $0x40] sm:$0xff]
        %v2334 = vld [vmem:[%s2324 + $0x48] sm:$0xff]
        %v2335 = vld [vmem:[%s2324 + $0x50] sm:$0xff]
        %v2336 = vld [vmem:[%s2324 + $0x58] sm:$0xff]
        %v2337 = vld [vmem:[%s2324 + $0x60] sm:$0xff]
        %v2338 = vld [vmem:[%s2324 + $0x68] sm:$0xff]
        %v2339 = vld [vmem:[%s2324 + $0x70] sm:$0xff]
        %v2340 = vld [vmem:[%s2324 + $0x78] sm:$0xff]
        %v2341 = vld [vmem:[%s2324 + $0x80] sm:$0xff]
        %v2342 = vld [vmem:[%s2324 + $0x88] sm:$0xff]
        %v2343 = vld [vmem:[%s2324 + $0x90] sm:$0xff]
        %v2344 = vld [vmem:[%s2324 + $0x98] sm:$0xff]
        %v2345 = vld [vmem:[%s2324 + $0xa0] sm:$0xff]
        %v2346 = vld [vmem:[%s2324 + $0xa8] sm:$0xff]
        %v2347 = vld [vmem:[%s2324 + $0xb0] sm:$0xff]
        %v2348 = vld [vmem:[%s2324 + $0xb8] sm:$0xff]
        %v2349 = vld [vmem:[%s2324 + $0xc0] sm:$0xff]
        %v2350 = vld [vmem:[%s2324 + $0xc8] sm:$0xff]
        %v2351 = vld [vmem:[%s2324 + $0xd0] sm:$0xff]
        %v2352 = vld [vmem:[%s2324 + $0xd8] sm:$0xff]
        %v2353 = vld [vmem:[%s2324 + $0xe0] sm:$0xff]
        %v2354 = vld [vmem:[%s2324 + $0xe8] sm:$0xff]
        %v2355 = vld [vmem:[%s2324 + $0xf0] sm:$0xff]
        %v2356 = vld [vmem:[%s2324 + $0xf8] sm:$0xff]
        %v2357 = vld [vmem:[#allocation4] sm:$0x1]
        %v2358 = vlaneseq
        %v2359 = vshrl.u32 %v2358, 7
        %v2360 = vsub.s32 0, %v2359
        %v2361 = vrot.slane %v2357, %v2360
        %v2362 = vmul.f32 %v2325, %v2361
        %v2363 = vmul.f32 %v2326, %v2361
        %v2364 = vmul.f32 %v2327, %v2361
        %v2365 = vmul.f32 %v2328, %v2361
        %v2366 = vmul.f32 %v2329, %v2361
        %v2367 = vmul.f32 %v2330, %v2361
        %v2368 = vmul.f32 %v2331, %v2361
        %v2369 = vmul.f32 %v2332, %v2361
        %v2370 = vmul.f32 %v2333, %v2361
        %v2371 = vmul.f32 %v2334, %v2361
        %v2372 = vmul.f32 %v2335, %v2361
        %v2373 = vmul.f32 %v2336, %v2361
        %v2374 = vmul.f32 %v2337, %v2361
        %v2375 = vmul.f32 %v2338, %v2361
        %v2376 = vmul.f32 %v2339, %v2361
        %v2377 = vmul.f32 %v2340, %v2361
        %v2378 = vmul.f32 %v2341, %v2361
        %v2379 = vmul.f32 %v2342, %v2361
        %v2380 = vmul.f32 %v2343, %v2361
        %v2381 = vmul.f32 %v2344, %v2361
        %v2382 = vmul.f32 %v2345, %v2361
        %v2383 = vmul.f32 %v2346, %v2361
        %v2384 = vmul.f32 %v2347, %v2361
        %v2385 = vmul.f32 %v2348, %v2361
        %v2386 = vmul.f32 %v2349, %v2361
        %v2387 = vmul.f32 %v2350, %v2361
        %v2388 = vmul.f32 %v2351, %v2361
        %v2389 = vmul.f32 %v2352, %v2361
        %v2390 = vmul.f32 %v2353, %v2361
        %v2391 = vmul.f32 %v2354, %v2361
        %v2392 = vmul.f32 %v2355, %v2361
        %v2393 = vmul.f32 %v2356, %v2361
        %v2394 = vld [vmem:[#allocation4 + $0x1] sm:$0x1]
        %v2395 = vlaneseq
        %v2396 = vshrl.u32 %v2395, 7
        %v2397 = vsub.s32 0, %v2396
        %v2398 = vrot.slane %v2394, %v2397
        %v2399 = vadd.f32 %v2362, %v2398
        %v2400 = vadd.f32 %v2363, %v2398
        %v2401 = vadd.f32 %v2364, %v2398
        %v2402 = vadd.f32 %v2365, %v2398
        %v2403 = vadd.f32 %v2366, %v2398
        %v2404 = vadd.f32 %v2367, %v2398
        %v2405 = vadd.f32 %v2368, %v2398
        %v2406 = vadd.f32 %v2369, %v2398
        %v2407 = vadd.f32 %v2370, %v2398
        %v2408 = vadd.f32 %v2371, %v2398
        %v2409 = vadd.f32 %v2372, %v2398
        %v2410 = vadd.f32 %v2373, %v2398
        %v2411 = vadd.f32 %v2374, %v2398
        %v2412 = vadd.f32 %v2375, %v2398
        %v2413 = vadd.f32 %v2376, %v2398
        %v2414 = vadd.f32 %v2377, %v2398
        %v2415 = vadd.f32 %v2378, %v2398
        %v2416 = vadd.f32 %v2379, %v2398
        %v2417 = vadd.f32 %v2380, %v2398
        %v2418 = vadd.f32 %v2381, %v2398
        %v2419 = vadd.f32 %v2382, %v2398
        %v2420 = vadd.f32 %v2383, %v2398
        %v2421 = vadd.f32 %v2384, %v2398
        %v2422 = vadd.f32 %v2385, %v2398
        %v2423 = vadd.f32 %v2386, %v2398
        %v2424 = vadd.f32 %v2387, %v2398
        %v2425 = vadd.f32 %v2388, %v2398
        %v2426 = vadd.f32 %v2389, %v2398
        %v2427 = vadd.f32 %v2390, %v2398
        %v2428 = vadd.f32 %v2391, %v2398
        %v2429 = vadd.f32 %v2392, %v2398
        %v2430 = vadd.f32 %v2393, %v2398
        %vm2431 = vcmp.ge.f32.partialorder %v2399, 0.0
        %vm2432 = vcmp.ge.f32.partialorder %v2400, 0.0
        %vm2433 = vcmp.ge.f32.partialorder %v2401, 0.0
        %vm2434 = vcmp.ge.f32.partialorder %v2402, 0.0
        %vm2435 = vcmp.ge.f32.partialorder %v2403, 0.0
        %vm2436 = vcmp.ge.f32.partialorder %v2404, 0.0
        %vm2437 = vcmp.ge.f32.partialorder %v2405, 0.0
        %vm2438 = vcmp.ge.f32.partialorder %v2406, 0.0
        %vm2439 = vcmp.ge.f32.partialorder %v2407, 0.0
        %vm2440 = vcmp.ge.f32.partialorder %v2408, 0.0
        %vm2441 = vcmp.ge.f32.partialorder %v2409, 0.0
        %vm2442 = vcmp.ge.f32.partialorder %v2410, 0.0
        %vm2443 = vcmp.ge.f32.partialorder %v2411, 0.0
        %vm2444 = vcmp.ge.f32.partialorder %v2412, 0.0
        %vm2445 = vcmp.ge.f32.partialorder %v2413, 0.0
        %vm2446 = vcmp.ge.f32.partialorder %v2414, 0.0
        %vm2447 = vcmp.ge.f32.partialorder %v2415, 0.0
        %vm2448 = vcmp.ge.f32.partialorder %v2416, 0.0
        %vm2449 = vcmp.ge.f32.partialorder %v2417, 0.0
        %vm2450 = vcmp.ge.f32.partialorder %v2418, 0.0
        %vm2451 = vcmp.ge.f32.partialorder %v2419, 0.0
        %vm2452 = vcmp.ge.f32.partialorder %v2420, 0.0
        %vm2453 = vcmp.ge.f32.partialorder %v2421, 0.0
        %vm2454 = vcmp.ge.f32.partialorder %v2422, 0.0
        %vm2455 = vcmp.ge.f32.partialorder %v2423, 0.0
        %vm2456 = vcmp.ge.f32.partialorder %v2424, 0.0
        %vm2457 = vcmp.ge.f32.partialorder %v2425, 0.0
        %vm2458 = vcmp.ge.f32.partialorder %v2426, 0.0
        %vm2459 = vcmp.ge.f32.partialorder %v2427, 0.0
        %vm2460 = vcmp.ge.f32.partialorder %v2428, 0.0
        %vm2461 = vcmp.ge.f32.partialorder %v2429, 0.0
        %vm2462 = vcmp.ge.f32.partialorder %v2430, 0.0
        %v2463 = vmul.f32 %v2399, 0.2
        %v2464 = vmul.f32 %v2400, 0.2
        %v2465 = vmul.f32 %v2401, 0.2
        %v2466 = vmul.f32 %v2402, 0.2
        %v2467 = vmul.f32 %v2403, 0.2
        %v2468 = vmul.f32 %v2404, 0.2
        %v2469 = vmul.f32 %v2405, 0.2
        %v2470 = vmul.f32 %v2406, 0.2
        %v2471 = vmul.f32 %v2407, 0.2
        %v2472 = vmul.f32 %v2408, 0.2
        %v2473 = vmul.f32 %v2409, 0.2
        %v2474 = vmul.f32 %v2410, 0.2
        %v2475 = vmul.f32 %v2411, 0.2
        %v2476 = vmul.f32 %v2412, 0.2
        %v2477 = vmul.f32 %v2413, 0.2
        %v2478 = vmul.f32 %v2414, 0.2
        %v2479 = vmul.f32 %v2415, 0.2
        %v2480 = vmul.f32 %v2416, 0.2
        %v2481 = vmul.f32 %v2417, 0.2
        %v2482 = vmul.f32 %v2418, 0.2
        %v2483 = vmul.f32 %v2419, 0.2
        %v2484 = vmul.f32 %v2420, 0.2
        %v2485 = vmul.f32 %v2421, 0.2
        %v2486 = vmul.f32 %v2422, 0.2
        %v2487 = vmul.f32 %v2423, 0.2
        %v2488 = vmul.f32 %v2424, 0.2
        %v2489 = vmul.f32 %v2425, 0.2
        %v2490 = vmul.f32 %v2426, 0.2
        %v2491 = vmul.f32 %v2427, 0.2
        %v2492 = vmul.f32 %v2428, 0.2
        %v2493 = vmul.f32 %v2429, 0.2
        %v2494 = vmul.f32 %v2430, 0.2
        %v2495 = vsel %vm2431, %v2399, %v2463
        %v2496 = vsel %vm2432, %v2400, %v2464
        %v2497 = vsel %vm2433, %v2401, %v2465
        %v2498 = vsel %vm2434, %v2402, %v2466
        %v2499 = vsel %vm2435, %v2403, %v2467
        %v2500 = vsel %vm2436, %v2404, %v2468
        %v2501 = vsel %vm2437, %v2405, %v2469
        %v2502 = vsel %vm2438, %v2406, %v2470
        %v2503 = vsel %vm2439, %v2407, %v2471
        %v2504 = vsel %vm2440, %v2408, %v2472
        %v2505 = vsel %vm2441, %v2409, %v2473
        %v2506 = vsel %vm2442, %v2410, %v2474
        %v2507 = vsel %vm2443, %v2411, %v2475
        %v2508 = vsel %vm2444, %v2412, %v2476
        %v2509 = vsel %vm2445, %v2413, %v2477
        %v2510 = vsel %vm2446, %v2414, %v2478
        %v2511 = vsel %vm2447, %v2415, %v2479
        %v2512 = vsel %vm2448, %v2416, %v2480
        %v2513 = vsel %vm2449, %v2417, %v2481
        %v2514 = vsel %vm2450, %v2418, %v2482
        %v2515 = vsel %vm2451, %v2419, %v2483
        %v2516 = vsel %vm2452, %v2420, %v2484
        %v2517 = vsel %vm2453, %v2421, %v2485
        %v2518 = vsel %vm2454, %v2422, %v2486
        %v2519 = vsel %vm2455, %v2423, %v2487
        %v2520 = vsel %vm2456, %v2424, %v2488
        %v2521 = vsel %vm2457, %v2425, %v2489
        %v2522 = vsel %vm2458, %v2426, %v2490
        %v2523 = vsel %vm2459, %v2427, %v2491
        %v2524 = vsel %vm2460, %v2428, %v2492
        %v2525 = vsel %vm2461, %v2429, %v2493
        %v2526 = vsel %vm2462, %v2430, %v2494
        %v2543 = vrot.slane %v2495, 1
        %v2544 = vrot.slane %v2497, 1
        %v2545 = vrot.slane %v2499, 1
        %v2546 = vrot.slane %v2501, 1
        %v2547 = vrot.slane %v2503, 1
        %v2548 = vrot.slane %v2505, 1
        %v2549 = vrot.slane %v2507, 1
        %v2550 = vrot.slane %v2509, 1
        %v2551 = vrot.slane %v2511, 1
        %v2552 = vrot.slane %v2513, 1
        %v2553 = vrot.slane %v2515, 1
        %v2554 = vrot.slane %v2517, 1
        %v2555 = vrot.slane %v2519, 1
        %v2556 = vrot.slane %v2521, 1
        %v2557 = vrot.slane %v2523, 1
        %v2558 = vrot.slane %v2525, 1
        %vm2591 = vcmask 1040384
        %v2592 = vrot.slane %v2495, 7
        %v2593 = vrot.slane %v2496, 7
        %v2594 = vsel %vm2591, %v2592, %v2593
        %v2595 = vrot.slane %v2497, 7
        %v2596 = vrot.slane %v2498, 7
        %v2597 = vsel %vm2591, %v2595, %v2596
        %v2598 = vrot.slane %v2499, 7
        %v2599 = vrot.slane %v2500, 7
        %v2600 = vsel %vm2591, %v2598, %v2599
        %v2601 = vrot.slane %v2501, 7
        %v2602 = vrot.slane %v2502, 7
        %v2603 = vsel %vm2591, %v2601, %v2602
        %v2604 = vrot.slane %v2503, 7
        %v2605 = vrot.slane %v2504, 7
        %v2606 = vsel %vm2591, %v2604, %v2605
        %v2607 = vrot.slane %v2505, 7
        %v2608 = vrot.slane %v2506, 7
        %v2609 = vsel %vm2591, %v2607, %v2608
        %v2610 = vrot.slane %v2507, 7
        %v2611 = vrot.slane %v2508, 7
        %v2612 = vsel %vm2591, %v2610, %v2611
        %v2613 = vrot.slane %v2509, 7
        %v2614 = vrot.slane %v2510, 7
        %v2615 = vsel %vm2591, %v2613, %v2614
        %v2616 = vrot.slane %v2511, 7
        %v2617 = vrot.slane %v2512, 7
        %v2618 = vsel %vm2591, %v2616, %v2617
        %v2619 = vrot.slane %v2513, 7
        %v2620 = vrot.slane %v2514, 7
        %v2621 = vsel %vm2591, %v2619, %v2620
        %v2622 = vrot.slane %v2515, 7
        %v2623 = vrot.slane %v2516, 7
        %v2624 = vsel %vm2591, %v2622, %v2623
        %v2625 = vrot.slane %v2517, 7
        %v2626 = vrot.slane %v2518, 7
        %v2627 = vsel %vm2591, %v2625, %v2626
        %v2628 = vrot.slane %v2519, 7
        %v2629 = vrot.slane %v2520, 7
        %v2630 = vsel %vm2591, %v2628, %v2629
        %v2631 = vrot.slane %v2521, 7
        %v2632 = vrot.slane %v2522, 7
        %v2633 = vsel %vm2591, %v2631, %v2632
        %v2634 = vrot.slane %v2523, 7
        %v2635 = vrot.slane %v2524, 7
        %v2636 = vsel %vm2591, %v2634, %v2635
        %v2637 = vrot.slane %v2525, 7
        %v2638 = vrot.slane %v2526, 7
        %v2639 = vsel %vm2591, %v2637, %v2638
        %v2687 = vrot.slane %v2496, 5
        %v2688 = vrot.slane %v2498, 5
        %v2689 = vrot.slane %v2500, 5
        %v2690 = vrot.slane %v2502, 5
        %v2691 = vrot.slane %v2504, 5
        %v2692 = vrot.slane %v2506, 5
        %v2693 = vrot.slane %v2508, 5
        %v2694 = vrot.slane %v2510, 5
        %v2695 = vrot.slane %v2512, 5
        %v2696 = vrot.slane %v2514, 5
        %v2697 = vrot.slane %v2516, 5
        %v2698 = vrot.slane %v2518, 5
        %v2699 = vrot.slane %v2520, 5
        %v2700 = vrot.slane %v2522, 5
        %v2701 = vrot.slane %v2524, 5
        %v2702 = vrot.slane %v2526, 5
        %v2719 = vsel %vm2591, %v2543, %v2592
        %v2720 = vsel %vm2591, %v2544, %v2595
        %v2721 = vsel %vm2591, %v2545, %v2598
        %v2722 = vsel %vm2591, %v2546, %v2601
        %v2723 = vsel %vm2591, %v2547, %v2604
        %v2724 = vsel %vm2591, %v2548, %v2607
        %v2725 = vsel %vm2591, %v2549, %v2610
        %v2726 = vsel %vm2591, %v2550, %v2613
        %v2727 = vsel %vm2591, %v2551, %v2616
        %v2728 = vsel %vm2591, %v2552, %v2619
        %v2729 = vsel %vm2591, %v2553, %v2622
        %v2730 = vsel %vm2591, %v2554, %v2625
        %v2731 = vsel %vm2591, %v2555, %v2628
        %v2732 = vsel %vm2591, %v2556, %v2631
        %v2733 = vsel %vm2591, %v2557, %v2634
        %v2734 = vsel %vm2591, %v2558, %v2637
        %v2735 = vsel %vm2591, %v2593, %v2687
        %v2736 = vsel %vm2591, %v2596, %v2688
        %v2737 = vsel %vm2591, %v2599, %v2689
        %v2738 = vsel %vm2591, %v2602, %v2690
        %v2739 = vsel %vm2591, %v2605, %v2691
        %v2740 = vsel %vm2591, %v2608, %v2692
        %v2741 = vsel %vm2591, %v2611, %v2693
        %v2742 = vsel %vm2591, %v2614, %v2694
        %v2743 = vsel %vm2591, %v2617, %v2695
        %v2744 = vsel %vm2591, %v2620, %v2696
        %v2745 = vsel %vm2591, %v2623, %v2697
        %v2746 = vsel %vm2591, %v2626, %v2698
        %v2747 = vsel %vm2591, %v2629, %v2699
        %v2748 = vsel %vm2591, %v2632, %v2700
        %v2749 = vsel %vm2591, %v2635, %v2701
        %v2750 = vsel %vm2591, %v2638, %v2702
        %vm2781 = vcmask 1046528
        %v2782 = vrot.slane %v2720, 1
        %v2783 = vrot.slane %v2597, 1
        %v2784 = vsel %vm2781, %v2782, %v2783
        %v2785 = vrot.slane %v2736, 1
        %v2786 = vsel %vm2781, %v2783, %v2785
        %v2787 = vrot.slane %v2719, 1
        %v2788 = vrot.slane %v2594, 1
        %v2789 = vsel %vm2781, %v2787, %v2788
        %v2790 = vrot.slane %v2735, 1
        %v2791 = vsel %vm2781, %v2788, %v2790
        %v2792 = vrot.slane %v2721, 1
        %v2793 = vrot.slane %v2600, 1
        %v2794 = vsel %vm2781, %v2792, %v2793
        %v2795 = vrot.slane %v2737, 1
        %v2796 = vsel %vm2781, %v2793, %v2795
        %v2797 = vrot.slane %v2722, 1
        %v2798 = vrot.slane %v2603, 1
        %v2799 = vsel %vm2781, %v2797, %v2798
        %v2800 = vrot.slane %v2738, 1
        %v2801 = vsel %vm2781, %v2798, %v2800
        %v2802 = vrot.slane %v2723, 1
        %v2803 = vrot.slane %v2606, 1
        %v2804 = vsel %vm2781, %v2802, %v2803
        %v2805 = vrot.slane %v2739, 1
        %v2806 = vsel %vm2781, %v2803, %v2805
        %v2807 = vrot.slane %v2724, 1
        %v2808 = vrot.slane %v2609, 1
        %v2809 = vsel %vm2781, %v2807, %v2808
        %v2810 = vrot.slane %v2740, 1
        %v2811 = vsel %vm2781, %v2808, %v2810
        %v2812 = vrot.slane %v2725, 1
        %v2813 = vrot.slane %v2612, 1
        %v2814 = vsel %vm2781, %v2812, %v2813
        %v2815 = vrot.slane %v2741, 1
        %v2816 = vsel %vm2781, %v2813, %v2815
        %v2817 = vrot.slane %v2726, 1
        %v2818 = vrot.slane %v2615, 1
        %v2819 = vsel %vm2781, %v2817, %v2818
        %v2820 = vrot.slane %v2742, 1
        %v2821 = vsel %vm2781, %v2818, %v2820
        %v2822 = vrot.slane %v2727, 1
        %v2823 = vrot.slane %v2618, 1
        %v2824 = vsel %vm2781, %v2822, %v2823
        %v2825 = vrot.slane %v2743, 1
        %v2826 = vsel %vm2781, %v2823, %v2825
        %v2827 = vrot.slane %v2728, 1
        %v2828 = vrot.slane %v2621, 1
        %v2829 = vsel %vm2781, %v2827, %v2828
        %v2830 = vrot.slane %v2744, 1
        %v2831 = vsel %vm2781, %v2828, %v2830
        %v2832 = vrot.slane %v2729, 1
        %v2833 = vrot.slane %v2624, 1
        %v2834 = vsel %vm2781, %v2832, %v2833
        %v2835 = vrot.slane %v2745, 1
        %v2836 = vsel %vm2781, %v2833, %v2835
        %v2837 = vrot.slane %v2730, 1
        %v2838 = vrot.slane %v2627, 1
        %v2839 = vsel %vm2781, %v2837, %v2838
        %v2840 = vrot.slane %v2746, 1
        %v2841 = vsel %vm2781, %v2838, %v2840
        %v2842 = vrot.slane %v2731, 1
        %v2843 = vrot.slane %v2630, 1
        %v2844 = vsel %vm2781, %v2842, %v2843
        %v2845 = vrot.slane %v2747, 1
        %v2846 = vsel %vm2781, %v2843, %v2845
        %v2847 = vrot.slane %v2732, 1
        %v2848 = vrot.slane %v2633, 1
        %v2849 = vsel %vm2781, %v2847, %v2848
        %v2850 = vrot.slane %v2748, 1
        %v2851 = vsel %vm2781, %v2848, %v2850
        %v2852 = vrot.slane %v2733, 1
        %v2853 = vrot.slane %v2636, 1
        %v2854 = vsel %vm2781, %v2852, %v2853
        %v2855 = vrot.slane %v2749, 1
        %v2856 = vsel %vm2781, %v2853, %v2855
        %2857 = vrot.lane.b32.xlu0 %v2784, 8
        %v2858 = vpop.permute.xlu0 %2857
        %2859 = vrot.lane.b32.xlu0 %v2786, 8
        %v2860 = vpop.permute.xlu0 %2859
        %2861 = vrot.lane.b32.xlu0 %v2789, 8
        %v2862 = vpop.permute.xlu0 %2861
        %2863 = vrot.lane.b32.xlu0 %v2791, 8
        %v2864 = vpop.permute.xlu0 %2863
        %2865 = vrot.lane.b32.xlu0 %v2794, 8
        %v2866 = vpop.permute.xlu0 %2865
        %2867 = vrot.lane.b32.xlu0 %v2796, 8
        %v2868 = vpop.permute.xlu0 %2867
        %2869 = vrot.lane.b32.xlu0 %v2799, 8
        %v2870 = vpop.permute.xlu0 %2869
        %2871 = vrot.lane.b32.xlu0 %v2801, 8
        %v2872 = vpop.permute.xlu0 %2871
        %2873 = vrot.lane.b32.xlu0 %v2804, 8
        %v2874 = vpop.permute.xlu0 %2873
        %2875 = vrot.lane.b32.xlu0 %v2806, 8
        %v2876 = vpop.permute.xlu0 %2875
        %2877 = vrot.lane.b32.xlu0 %v2809, 8
        %v2878 = vpop.permute.xlu0 %2877
        %2879 = vrot.lane.b32.xlu0 %v2811, 8
        %v2880 = vpop.permute.xlu0 %2879
        %2881 = vrot.lane.b32.xlu0 %v2814, 8
        %v2882 = vpop.permute.xlu0 %2881
        %2883 = vrot.lane.b32.xlu0 %v2816, 8
        %v2884 = vpop.permute.xlu0 %2883
        %2885 = vrot.lane.b32.xlu0 %v2819, 8
        %v2886 = vpop.permute.xlu0 %2885
        %2887 = vrot.lane.b32.xlu0 %v2821, 8
        %v2888 = vpop.permute.xlu0 %2887
        %2889 = vrot.lane.b32.xlu0 %v2824, 8
        %v2890 = vpop.permute.xlu0 %2889
        %2891 = vrot.lane.b32.xlu0 %v2826, 8
        %v2892 = vpop.permute.xlu0 %2891
        %2893 = vrot.lane.b32.xlu0 %v2829, 8
        %v2894 = vpop.permute.xlu0 %2893
        %2895 = vrot.lane.b32.xlu0 %v2831, 8
        %v2896 = vpop.permute.xlu0 %2895
        %2897 = vrot.lane.b32.xlu0 %v2834, 8
        %v2898 = vpop.permute.xlu0 %2897
        %2899 = vrot.lane.b32.xlu0 %v2836, 8
        %v2900 = vpop.permute.xlu0 %2899
        %2901 = vrot.lane.b32.xlu0 %v2839, 8
        %v2902 = vpop.permute.xlu0 %2901
        %2903 = vrot.lane.b32.xlu0 %v2841, 8
        %v2904 = vpop.permute.xlu0 %2903
        %2905 = vrot.lane.b32.xlu0 %v2844, 8
        %v2906 = vpop.permute.xlu0 %2905
        %2907 = vrot.lane.b32.xlu0 %v2846, 8
        %v2908 = vpop.permute.xlu0 %2907
        %2909 = vrot.lane.b32.xlu0 %v2849, 8
        %v2910 = vpop.permute.xlu0 %2909
        %2911 = vrot.lane.b32.xlu0 %v2851, 8
        %v2912 = vpop.permute.xlu0 %2911
        %2913 = vrot.lane.b32.xlu0 %v2854, 8
        %v2914 = vpop.permute.xlu0 %2913
        %2915 = vrot.lane.b32.xlu0 %v2856, 8
        %v2916 = vpop.permute.xlu0 %2915
        %vm2947 = vcmask 1045504
        %v2948 = vrot.slane %v2720, 2
        %v2949 = vrot.slane %v2597, 2
        %v2950 = vsel %vm2947, %v2948, %v2949
        %v2951 = vrot.slane %v2736, 2
        %v2952 = vsel %vm2947, %v2949, %v2951
        %v2953 = vrot.slane %v2719, 2
        %v2954 = vrot.slane %v2594, 2
        %v2955 = vsel %vm2947, %v2953, %v2954
        %v2956 = vrot.slane %v2735, 2
        %v2957 = vsel %vm2947, %v2954, %v2956
        %v2958 = vrot.slane %v2721, 2
        %v2959 = vrot.slane %v2600, 2
        %v2960 = vsel %vm2947, %v2958, %v2959
        %v2961 = vrot.slane %v2737, 2
        %v2962 = vsel %vm2947, %v2959, %v2961
        %v2963 = vrot.slane %v2722, 2
        %v2964 = vrot.slane %v2603, 2
        %v2965 = vsel %vm2947, %v2963, %v2964
        %v2966 = vrot.slane %v2738, 2
        %v2967 = vsel %vm2947, %v2964, %v2966
        %v2968 = vrot.slane %v2723, 2
        %v2969 = vrot.slane %v2606, 2
        %v2970 = vsel %vm2947, %v2968, %v2969
        %v2971 = vrot.slane %v2739, 2
        %v2972 = vsel %vm2947, %v2969, %v2971
        %v2973 = vrot.slane %v2724, 2
        %v2974 = vrot.slane %v2609, 2
        %v2975 = vsel %vm2947, %v2973, %v2974
        %v2976 = vrot.slane %v2740, 2
        %v2977 = vsel %vm2947, %v2974, %v2976
        %v2978 = vrot.slane %v2725, 2
        %v2979 = vrot.slane %v2612, 2
        %v2980 = vsel %vm2947, %v2978, %v2979
        %v2981 = vrot.slane %v2741, 2
        %v2982 = vsel %vm2947, %v2979, %v2981
        %v2983 = vrot.slane %v2726, 2
        %v2984 = vrot.slane %v2615, 2
        %v2985 = vsel %vm2947, %v2983, %v2984
        %v2986 = vrot.slane %v2742, 2
        %v2987 = vsel %vm2947, %v2984, %v2986
        %v2988 = vrot.slane %v2727, 2
        %v2989 = vrot.slane %v2618, 2
        %v2990 = vsel %vm2947, %v2988, %v2989
        %v2991 = vrot.slane %v2743, 2
        %v2992 = vsel %vm2947, %v2989, %v2991
        %v2993 = vrot.slane %v2728, 2
        %v2994 = vrot.slane %v2621, 2
        %v2995 = vsel %vm2947, %v2993, %v2994
        %v2996 = vrot.slane %v2744, 2
        %v2997 = vsel %vm2947, %v2994, %v2996
        %v2998 = vrot.slane %v2729, 2
        %v2999 = vrot.slane %v2624, 2
        %v3000 = vsel %vm2947, %v2998, %v2999
        %v3001 = vrot.slane %v2745, 2
        %v3002 = vsel %vm2947, %v2999, %v3001
        %v3003 = vrot.slane %v2730, 2
        %v3004 = vrot.slane %v2627, 2
        %v3005 = vsel %vm2947, %v3003, %v3004
        %v3006 = vrot.slane %v2746, 2
        %v3007 = vsel %vm2947, %v3004, %v3006
        %v3008 = vrot.slane %v2731, 2
        %v3009 = vrot.slane %v2630, 2
        %v3010 = vsel %vm2947, %v3008, %v3009
        %v3011 = vrot.slane %v2747, 2
        %v3012 = vsel %vm2947, %v3009, %v3011
        %v3013 = vrot.slane %v2732, 2
        %v3014 = vrot.slane %v2633, 2
        %v3015 = vsel %vm2947, %v3013, %v3014
        %v3016 = vrot.slane %v2748, 2
        %v3017 = vsel %vm2947, %v3014, %v3016
        %v3018 = vrot.slane %v2733, 2
        %v3019 = vrot.slane %v2636, 2
        %v3020 = vsel %vm2947, %v3018, %v3019
        %v3021 = vrot.slane %v2749, 2
        %v3022 = vsel %vm2947, %v3019, %v3021
        %3023 = vrot.lane.b32.xlu0 %v2950, 16
        %v3024 = vpop.permute.xlu0 %3023
        %3025 = vrot.lane.b32.xlu0 %v2952, 16
        %v3026 = vpop.permute.xlu0 %3025
        %3027 = vrot.lane.b32.xlu0 %v2955, 16
        %v3028 = vpop.permute.xlu0 %3027
        %3029 = vrot.lane.b32.xlu0 %v2957, 16
        %v3030 = vpop.permute.xlu0 %3029
        %3031 = vrot.lane.b32.xlu0 %v2960, 16
        %v3032 = vpop.permute.xlu0 %3031
        %3033 = vrot.lane.b32.xlu0 %v2962, 16
        %v3034 = vpop.permute.xlu0 %3033
        %3035 = vrot.lane.b32.xlu0 %v2965, 16
        %v3036 = vpop.permute.xlu0 %3035
        %3037 = vrot.lane.b32.xlu0 %v2967, 16
        %v3038 = vpop.permute.xlu0 %3037
        %3039 = vrot.lane.b32.xlu0 %v2970, 16
        %v3040 = vpop.permute.xlu0 %3039
        %3041 = vrot.lane.b32.xlu0 %v2972, 16
        %v3042 = vpop.permute.xlu0 %3041
        %3043 = vrot.lane.b32.xlu0 %v2975, 16
        %v3044 = vpop.permute.xlu0 %3043
        %3045 = vrot.lane.b32.xlu0 %v2977, 16
        %v3046 = vpop.permute.xlu0 %3045
        %3047 = vrot.lane.b32.xlu0 %v2980, 16
        %v3048 = vpop.permute.xlu0 %3047
        %3049 = vrot.lane.b32.xlu0 %v2982, 16
        %v3050 = vpop.permute.xlu0 %3049
        %3051 = vrot.lane.b32.xlu0 %v2985, 16
        %v3052 = vpop.permute.xlu0 %3051
        %3053 = vrot.lane.b32.xlu0 %v2987, 16
        %v3054 = vpop.permute.xlu0 %3053
        %3055 = vrot.lane.b32.xlu0 %v2990, 16
        %v3056 = vpop.permute.xlu0 %3055
        %3057 = vrot.lane.b32.xlu0 %v2992, 16
        %v3058 = vpop.permute.xlu0 %3057
        %3059 = vrot.lane.b32.xlu0 %v2995, 16
        %v3060 = vpop.permute.xlu0 %3059
        %3061 = vrot.lane.b32.xlu0 %v2997, 16
        %v3062 = vpop.permute.xlu0 %3061
        %3063 = vrot.lane.b32.xlu0 %v3000, 16
        %v3064 = vpop.permute.xlu0 %3063
        %3065 = vrot.lane.b32.xlu0 %v3002, 16
        %v3066 = vpop.permute.xlu0 %3065
        %3067 = vrot.lane.b32.xlu0 %v3005, 16
        %v3068 = vpop.permute.xlu0 %3067
        %3069 = vrot.lane.b32.xlu0 %v3007, 16
        %v3070 = vpop.permute.xlu0 %3069
        %3071 = vrot.lane.b32.xlu0 %v3010, 16
        %v3072 = vpop.permute.xlu0 %3071
        %3073 = vrot.lane.b32.xlu0 %v3012, 16
        %v3074 = vpop.permute.xlu0 %3073
        %3075 = vrot.lane.b32.xlu0 %v3015, 16
        %v3076 = vpop.permute.xlu0 %3075
        %3077 = vrot.lane.b32.xlu0 %v3017, 16
        %v3078 = vpop.permute.xlu0 %3077
        %3079 = vrot.lane.b32.xlu0 %v3020, 16
        %v3080 = vpop.permute.xlu0 %3079
        %3081 = vrot.lane.b32.xlu0 %v3022, 16
        %v3082 = vpop.permute.xlu0 %3081
        %3114 = vrot.lane.b32.xlu0 %v2719, 24
        %v3115 = vpop.permute.xlu0 %3114
        %3116 = vrot.lane.b32.xlu0 %v2594, 24
        %v3117 = vpop.permute.xlu0 %3116
        %3118 = vrot.lane.b32.xlu0 %v2720, 24
        %v3119 = vpop.permute.xlu0 %3118
        %3120 = vrot.lane.b32.xlu0 %v2597, 24
        %v3121 = vpop.permute.xlu0 %3120
        %3122 = vrot.lane.b32.xlu0 %v2721, 24
        %v3123 = vpop.permute.xlu0 %3122
        %3124 = vrot.lane.b32.xlu0 %v2600, 24
        %v3125 = vpop.permute.xlu0 %3124
        %3126 = vrot.lane.b32.xlu0 %v2722, 24
        %v3127 = vpop.permute.xlu0 %3126
        %3128 = vrot.lane.b32.xlu0 %v2603, 24
        %v3129 = vpop.permute.xlu0 %3128
        %3130 = vrot.lane.b32.xlu0 %v2723, 24
        %v3131 = vpop.permute.xlu0 %3130
        %3132 = vrot.lane.b32.xlu0 %v2606, 24
        %v3133 = vpop.permute.xlu0 %3132
        %3134 = vrot.lane.b32.xlu0 %v2724, 24
        %v3135 = vpop.permute.xlu0 %3134
        %3136 = vrot.lane.b32.xlu0 %v2609, 24
        %v3137 = vpop.permute.xlu0 %3136
        %3138 = vrot.lane.b32.xlu0 %v2725, 24
        %v3139 = vpop.permute.xlu0 %3138
        %3140 = vrot.lane.b32.xlu0 %v2612, 24
        %v3141 = vpop.permute.xlu0 %3140
        %3142 = vrot.lane.b32.xlu0 %v2726, 24
        %v3143 = vpop.permute.xlu0 %3142
        %3144 = vrot.lane.b32.xlu0 %v2615, 24
        %v3145 = vpop.permute.xlu0 %3144
        %3146 = vrot.lane.b32.xlu0 %v2727, 24
        %v3147 = vpop.permute.xlu0 %3146
        %3148 = vrot.lane.b32.xlu0 %v2618, 24
        %v3149 = vpop.permute.xlu0 %3148
        %3150 = vrot.lane.b32.xlu0 %v2728, 24
        %v3151 = vpop.permute.xlu0 %3150
        %3152 = vrot.lane.b32.xlu0 %v2621, 24
        %v3153 = vpop.permute.xlu0 %3152
        %3154 = vrot.lane.b32.xlu0 %v2729, 24
        %v3155 = vpop.permute.xlu0 %3154
        %3156 = vrot.lane.b32.xlu0 %v2624, 24
        %v3157 = vpop.permute.xlu0 %3156
        %3158 = vrot.lane.b32.xlu0 %v2730, 24
        %v3159 = vpop.permute.xlu0 %3158
        %3160 = vrot.lane.b32.xlu0 %v2627, 24
        %v3161 = vpop.permute.xlu0 %3160
        %3162 = vrot.lane.b32.xlu0 %v2731, 24
        %v3163 = vpop.permute.xlu0 %3162
        %3164 = vrot.lane.b32.xlu0 %v2630, 24
        %v3165 = vpop.permute.xlu0 %3164
        %3166 = vrot.lane.b32.xlu0 %v2732, 24
        %v3167 = vpop.permute.xlu0 %3166
        %3168 = vrot.lane.b32.xlu0 %v2633, 24
        %v3169 = vpop.permute.xlu0 %3168
        %3170 = vrot.lane.b32.xlu0 %v2733, 24
        %v3171 = vpop.permute.xlu0 %3170
        %3172 = vrot.lane.b32.xlu0 %v2636, 24
        %v3173 = vpop.permute.xlu0 %3172
        %3174 = vrot.lane.b32.xlu0 %v2734, 24
        %v3175 = vpop.permute.xlu0 %3174
        %3176 = vrot.lane.b32.xlu0 %v2639, 24
        %v3177 = vpop.permute.xlu0 %3176
        %v3211 = vrot.slane %v2734, 1
        %v3212 = vrot.slane %v2639, 1
        %v3213 = vsel %vm2781, %v3211, %v3212
        %v3214 = vrot.slane %v2750, 1
        %v3215 = vsel %vm2781, %v3212, %v3214
        %3216 = vrot.lane.b32.xlu0 %v2789, 32
        %v3217 = vpop.permute.xlu0 %3216
        %3218 = vrot.lane.b32.xlu0 %v2791, 32
        %v3219 = vpop.permute.xlu0 %3218
        %3220 = vrot.lane.b32.xlu0 %v2784, 32
        %v3221 = vpop.permute.xlu0 %3220
        %3222 = vrot.lane.b32.xlu0 %v2786, 32
        %v3223 = vpop.permute.xlu0 %3222
        %3224 = vrot.lane.b32.xlu0 %v2794, 32
        %v3225 = vpop.permute.xlu0 %3224
        %3226 = vrot.lane.b32.xlu0 %v2796, 32
        %v3227 = vpop.permute.xlu0 %3226
        %3228 = vrot.lane.b32.xlu0 %v2799, 32
        %v3229 = vpop.permute.xlu0 %3228
        %3230 = vrot.lane.b32.xlu0 %v2801, 32
        %v3231 = vpop.permute.xlu0 %3230
        %3232 = vrot.lane.b32.xlu0 %v2804, 32
        %v3233 = vpop.permute.xlu0 %3232
        %3234 = vrot.lane.b32.xlu0 %v2806, 32
        %v3235 = vpop.permute.xlu0 %3234
        %3236 = vrot.lane.b32.xlu0 %v2809, 32
        %v3237 = vpop.permute.xlu0 %3236
        %3238 = vrot.lane.b32.xlu0 %v2811, 32
        %v3239 = vpop.permute.xlu0 %3238
        %3240 = vrot.lane.b32.xlu0 %v2814, 32
        %v3241 = vpop.permute.xlu0 %3240
        %3242 = vrot.lane.b32.xlu0 %v2816, 32
        %v3243 = vpop.permute.xlu0 %3242
        %3244 = vrot.lane.b32.xlu0 %v2819, 32
        %v3245 = vpop.permute.xlu0 %3244
        %3246 = vrot.lane.b32.xlu0 %v2821, 32
        %v3247 = vpop.permute.xlu0 %3246
        %3248 = vrot.lane.b32.xlu0 %v2824, 32
        %v3249 = vpop.permute.xlu0 %3248
        %3250 = vrot.lane.b32.xlu0 %v2826, 32
        %v3251 = vpop.permute.xlu0 %3250
        %3252 = vrot.lane.b32.xlu0 %v2829, 32
        %v3253 = vpop.permute.xlu0 %3252
        %3254 = vrot.lane.b32.xlu0 %v2831, 32
        %v3255 = vpop.permute.xlu0 %3254
        %3256 = vrot.lane.b32.xlu0 %v2834, 32
        %v3257 = vpop.permute.xlu0 %3256
        %3258 = vrot.lane.b32.xlu0 %v2836, 32
        %v3259 = vpop.permute.xlu0 %3258
        %3260 = vrot.lane.b32.xlu0 %v2839, 32
        %v3261 = vpop.permute.xlu0 %3260
        %3262 = vrot.lane.b32.xlu0 %v2841, 32
        %v3263 = vpop.permute.xlu0 %3262
        %3264 = vrot.lane.b32.xlu0 %v2844, 32
        %v3265 = vpop.permute.xlu0 %3264
        %3266 = vrot.lane.b32.xlu0 %v2846, 32
        %v3267 = vpop.permute.xlu0 %3266
        %3268 = vrot.lane.b32.xlu0 %v2849, 32
        %v3269 = vpop.permute.xlu0 %3268
        %3270 = vrot.lane.b32.xlu0 %v2851, 32
        %v3271 = vpop.permute.xlu0 %3270
        %3272 = vrot.lane.b32.xlu0 %v2854, 32
        %v3273 = vpop.permute.xlu0 %3272
        %3274 = vrot.lane.b32.xlu0 %v2856, 32
        %v3275 = vpop.permute.xlu0 %3274
        %3276 = vrot.lane.b32.xlu0 %v3213, 32
        %v3277 = vpop.permute.xlu0 %3276
        %3278 = vrot.lane.b32.xlu0 %v3215, 32
        %v3279 = vpop.permute.xlu0 %3278
        %v3312 = vrot.slane %v2734, 2
        %v3313 = vrot.slane %v2639, 2
        %v3314 = vsel %vm2947, %v3312, %v3313
        %v3315 = vrot.slane %v2750, 2
        %v3316 = vsel %vm2947, %v3313, %v3315
        %3317 = vrot.lane.b32.xlu0 %v2955, 40
        %v3318 = vpop.permute.xlu0 %3317
        %3319 = vrot.lane.b32.xlu0 %v2957, 40
        %v3320 = vpop.permute.xlu0 %3319
        %3321 = vrot.lane.b32.xlu0 %v2950, 40
        %v3322 = vpop.permute.xlu0 %3321
        %3323 = vrot.lane.b32.xlu0 %v2952, 40
        %v3324 = vpop.permute.xlu0 %3323
        %3325 = vrot.lane.b32.xlu0 %v2960, 40
        %v3326 = vpop.permute.xlu0 %3325
        %3327 = vrot.lane.b32.xlu0 %v2962, 40
        %v3328 = vpop.permute.xlu0 %3327
        %3329 = vrot.lane.b32.xlu0 %v2965, 40
        %v3330 = vpop.permute.xlu0 %3329
        %3331 = vrot.lane.b32.xlu0 %v2967, 40
        %v3332 = vpop.permute.xlu0 %3331
        %3333 = vrot.lane.b32.xlu0 %v2970, 40
        %v3334 = vpop.permute.xlu0 %3333
        %3335 = vrot.lane.b32.xlu0 %v2972, 40
        %v3336 = vpop.permute.xlu0 %3335
        %3337 = vrot.lane.b32.xlu0 %v2975, 40
        %v3338 = vpop.permute.xlu0 %3337
        %3339 = vrot.lane.b32.xlu0 %v2977, 40
        %v3340 = vpop.permute.xlu0 %3339
        %3341 = vrot.lane.b32.xlu0 %v2980, 40
        %v3342 = vpop.permute.xlu0 %3341
        %3343 = vrot.lane.b32.xlu0 %v2982, 40
        %v3344 = vpop.permute.xlu0 %3343
        %3345 = vrot.lane.b32.xlu0 %v2985, 40
        %v3346 = vpop.permute.xlu0 %3345
        %3347 = vrot.lane.b32.xlu0 %v2987, 40
        %v3348 = vpop.permute.xlu0 %3347
        %3349 = vrot.lane.b32.xlu0 %v2990, 40
        %v3350 = vpop.permute.xlu0 %3349
        %3351 = vrot.lane.b32.xlu0 %v2992, 40
        %v3352 = vpop.permute.xlu0 %3351
        %3353 = vrot.lane.b32.xlu0 %v2995, 40
        %v3354 = vpop.permute.xlu0 %3353
        %3355 = vrot.lane.b32.xlu0 %v2997, 40
        %v3356 = vpop.permute.xlu0 %3355
        %3357 = vrot.lane.b32.xlu0 %v3000, 40
        %v3358 = vpop.permute.xlu0 %3357
        %3359 = vrot.lane.b32.xlu0 %v3002, 40
        %v3360 = vpop.permute.xlu0 %3359
        %3361 = vrot.lane.b32.xlu0 %v3005, 40
        %v3362 = vpop.permute.xlu0 %3361
        %3363 = vrot.lane.b32.xlu0 %v3007, 40
        %v3364 = vpop.permute.xlu0 %3363
        %3365 = vrot.lane.b32.xlu0 %v3010, 40
        %v3366 = vpop.permute.xlu0 %3365
        %3367 = vrot.lane.b32.xlu0 %v3012, 40
        %v3368 = vpop.permute.xlu0 %3367
        %3369 = vrot.lane.b32.xlu0 %v3015, 40
        %v3370 = vpop.permute.xlu0 %3369
        %3371 = vrot.lane.b32.xlu0 %v3017, 40
        %v3372 = vpop.permute.xlu0 %3371
        %3373 = vrot.lane.b32.xlu0 %v3020, 40
        %v3374 = vpop.permute.xlu0 %3373
        %3375 = vrot.lane.b32.xlu0 %v3022, 40
        %v3376 = vpop.permute.xlu0 %3375
        %3377 = vrot.lane.b32.xlu0 %v3314, 40
        %v3378 = vpop.permute.xlu0 %3377
        %3379 = vrot.lane.b32.xlu0 %v3316, 40
        %v3380 = vpop.permute.xlu0 %3379
        %3413 = vrot.lane.b32.xlu0 %v2720, 48
        %v3414 = vpop.permute.xlu0 %3413
        %3415 = vrot.lane.b32.xlu0 %v2597, 48
        %v3416 = vpop.permute.xlu0 %3415
        %3417 = vrot.lane.b32.xlu0 %v2721, 48
        %v3418 = vpop.permute.xlu0 %3417
        %3419 = vrot.lane.b32.xlu0 %v2600, 48
        %v3420 = vpop.permute.xlu0 %3419
        %3421 = vrot.lane.b32.xlu0 %v2722, 48
        %v3422 = vpop.permute.xlu0 %3421
        %3423 = vrot.lane.b32.xlu0 %v2603, 48
        %v3424 = vpop.permute.xlu0 %3423
        %3425 = vrot.lane.b32.xlu0 %v2723, 48
        %v3426 = vpop.permute.xlu0 %3425
        %3427 = vrot.lane.b32.xlu0 %v2606, 48
        %v3428 = vpop.permute.xlu0 %3427
        %3429 = vrot.lane.b32.xlu0 %v2724, 48
        %v3430 = vpop.permute.xlu0 %3429
        %3431 = vrot.lane.b32.xlu0 %v2609, 48
        %v3432 = vpop.permute.xlu0 %3431
        %3433 = vrot.lane.b32.xlu0 %v2725, 48
        %v3434 = vpop.permute.xlu0 %3433
        %3435 = vrot.lane.b32.xlu0 %v2612, 48
        %v3436 = vpop.permute.xlu0 %3435
        %3437 = vrot.lane.b32.xlu0 %v2726, 48
        %v3438 = vpop.permute.xlu0 %3437
        %3439 = vrot.lane.b32.xlu0 %v2615, 48
        %v3440 = vpop.permute.xlu0 %3439
        %3441 = vrot.lane.b32.xlu0 %v2727, 48
        %v3442 = vpop.permute.xlu0 %3441
        %3443 = vrot.lane.b32.xlu0 %v2618, 48
        %v3444 = vpop.permute.xlu0 %3443
        %3445 = vrot.lane.b32.xlu0 %v2728, 48
        %v3446 = vpop.permute.xlu0 %3445
        %3447 = vrot.lane.b32.xlu0 %v2621, 48
        %v3448 = vpop.permute.xlu0 %3447
        %3449 = vrot.lane.b32.xlu0 %v2729, 48
        %v3450 = vpop.permute.xlu0 %3449
        %3451 = vrot.lane.b32.xlu0 %v2624, 48
        %v3452 = vpop.permute.xlu0 %3451
        %3453 = vrot.lane.b32.xlu0 %v2730, 48
        %v3454 = vpop.permute.xlu0 %3453
        %3455 = vrot.lane.b32.xlu0 %v2627, 48
        %v3456 = vpop.permute.xlu0 %3455
        %3457 = vrot.lane.b32.xlu0 %v2731, 48
        %v3458 = vpop.permute.xlu0 %3457
        %3459 = vrot.lane.b32.xlu0 %v2630, 48
        %v3460 = vpop.permute.xlu0 %3459
        %3461 = vrot.lane.b32.xlu0 %v2732, 48
        %v3462 = vpop.permute.xlu0 %3461
        %3463 = vrot.lane.b32.xlu0 %v2633, 48
        %v3464 = vpop.permute.xlu0 %3463
        %3465 = vrot.lane.b32.xlu0 %v2733, 48
        %v3466 = vpop.permute.xlu0 %3465
        %3467 = vrot.lane.b32.xlu0 %v2636, 48
        %v3468 = vpop.permute.xlu0 %3467
        %3469 = vrot.lane.b32.xlu0 %v2734, 48
        %v3470 = vpop.permute.xlu0 %3469
        %3471 = vrot.lane.b32.xlu0 %v2639, 48
        %v3472 = vpop.permute.xlu0 %3471
        %3503 = vrot.lane.b32.xlu0 %v2784, 56
        %v3504 = vpop.permute.xlu0 %3503
        %3505 = vrot.lane.b32.xlu0 %v2786, 56
        %v3506 = vpop.permute.xlu0 %3505
        %3507 = vrot.lane.b32.xlu0 %v2794, 56
        %v3508 = vpop.permute.xlu0 %3507
        %3509 = vrot.lane.b32.xlu0 %v2796, 56
        %v3510 = vpop.permute.xlu0 %3509
        %3511 = vrot.lane.b32.xlu0 %v2799, 56
        %v3512 = vpop.permute.xlu0 %3511
        %3513 = vrot.lane.b32.xlu0 %v2801, 56
        %v3514 = vpop.permute.xlu0 %3513
        %3515 = vrot.lane.b32.xlu0 %v2804, 56
        %v3516 = vpop.permute.xlu0 %3515
        %3517 = vrot.lane.b32.xlu0 %v2806, 56
        %v3518 = vpop.permute.xlu0 %3517
        %3519 = vrot.lane.b32.xlu0 %v2809, 56
        %v3520 = vpop.permute.xlu0 %3519
        %3521 = vrot.lane.b32.xlu0 %v2811, 56
        %v3522 = vpop.permute.xlu0 %3521
        %3523 = vrot.lane.b32.xlu0 %v2814, 56
        %v3524 = vpop.permute.xlu0 %3523
        %3525 = vrot.lane.b32.xlu0 %v2816, 56
        %v3526 = vpop.permute.xlu0 %3525
        %3527 = vrot.lane.b32.xlu0 %v2819, 56
        %v3528 = vpop.permute.xlu0 %3527
        %3529 = vrot.lane.b32.xlu0 %v2821, 56
        %v3530 = vpop.permute.xlu0 %3529
        %3531 = vrot.lane.b32.xlu0 %v2824, 56
        %v3532 = vpop.permute.xlu0 %3531
        %3533 = vrot.lane.b32.xlu0 %v2826, 56
        %v3534 = vpop.permute.xlu0 %3533
        %3535 = vrot.lane.b32.xlu0 %v2829, 56
        %v3536 = vpop.permute.xlu0 %3535
        %3537 = vrot.lane.b32.xlu0 %v2831, 56
        %v3538 = vpop.permute.xlu0 %3537
        %3539 = vrot.lane.b32.xlu0 %v2834, 56
        %v3540 = vpop.permute.xlu0 %3539
        %3541 = vrot.lane.b32.xlu0 %v2836, 56
        %v3542 = vpop.permute.xlu0 %3541
        %3543 = vrot.lane.b32.xlu0 %v2839, 56
        %v3544 = vpop.permute.xlu0 %3543
        %3545 = vrot.lane.b32.xlu0 %v2841, 56
        %v3546 = vpop.permute.xlu0 %3545
        %3547 = vrot.lane.b32.xlu0 %v2844, 56
        %v3548 = vpop.permute.xlu0 %3547
        %3549 = vrot.lane.b32.xlu0 %v2846, 56
        %v3550 = vpop.permute.xlu0 %3549
        %3551 = vrot.lane.b32.xlu0 %v2849, 56
        %v3552 = vpop.permute.xlu0 %3551
        %3553 = vrot.lane.b32.xlu0 %v2851, 56
        %v3554 = vpop.permute.xlu0 %3553
        %3555 = vrot.lane.b32.xlu0 %v2854, 56
        %v3556 = vpop.permute.xlu0 %3555
        %3557 = vrot.lane.b32.xlu0 %v2856, 56
        %v3558 = vpop.permute.xlu0 %3557
        %3559 = vrot.lane.b32.xlu0 %v3213, 56
        %v3560 = vpop.permute.xlu0 %3559
        %3561 = vrot.lane.b32.xlu0 %v3215, 56
        %v3562 = vpop.permute.xlu0 %3561
        %3593 = vrot.lane.b32.xlu0 %v2950, 64
        %v3594 = vpop.permute.xlu0 %3593
        %3595 = vrot.lane.b32.xlu0 %v2952, 64
        %v3596 = vpop.permute.xlu0 %3595
        %3597 = vrot.lane.b32.xlu0 %v2960, 64
        %v3598 = vpop.permute.xlu0 %3597
        %3599 = vrot.lane.b32.xlu0 %v2962, 64
        %v3600 = vpop.permute.xlu0 %3599
        %3601 = vrot.lane.b32.xlu0 %v2965, 64
        %v3602 = vpop.permute.xlu0 %3601
        %3603 = vrot.lane.b32.xlu0 %v2967, 64
        %v3604 = vpop.permute.xlu0 %3603
        %3605 = vrot.lane.b32.xlu0 %v2970, 64
        %v3606 = vpop.permute.xlu0 %3605
        %3607 = vrot.lane.b32.xlu0 %v2972, 64
        %v3608 = vpop.permute.xlu0 %3607
        %3609 = vrot.lane.b32.xlu0 %v2975, 64
        %v3610 = vpop.permute.xlu0 %3609
        %3611 = vrot.lane.b32.xlu0 %v2977, 64
        %v3612 = vpop.permute.xlu0 %3611
        %3613 = vrot.lane.b32.xlu0 %v2980, 64
        %v3614 = vpop.permute.xlu0 %3613
        %3615 = vrot.lane.b32.xlu0 %v2982, 64
        %v3616 = vpop.permute.xlu0 %3615
        %3617 = vrot.lane.b32.xlu0 %v2985, 64
        %v3618 = vpop.permute.xlu0 %3617
        %3619 = vrot.lane.b32.xlu0 %v2987, 64
        %v3620 = vpop.permute.xlu0 %3619
        %3621 = vrot.lane.b32.xlu0 %v2990, 64
        %v3622 = vpop.permute.xlu0 %3621
        %3623 = vrot.lane.b32.xlu0 %v2992, 64
        %v3624 = vpop.permute.xlu0 %3623
        %3625 = vrot.lane.b32.xlu0 %v2995, 64
        %v3626 = vpop.permute.xlu0 %3625
        %3627 = vrot.lane.b32.xlu0 %v2997, 64
        %v3628 = vpop.permute.xlu0 %3627
        %3629 = vrot.lane.b32.xlu0 %v3000, 64
        %v3630 = vpop.permute.xlu0 %3629
        %3631 = vrot.lane.b32.xlu0 %v3002, 64
        %v3632 = vpop.permute.xlu0 %3631
        %3633 = vrot.lane.b32.xlu0 %v3005, 64
        %v3634 = vpop.permute.xlu0 %3633
        %3635 = vrot.lane.b32.xlu0 %v3007, 64
        %v3636 = vpop.permute.xlu0 %3635
        %3637 = vrot.lane.b32.xlu0 %v3010, 64
        %v3638 = vpop.permute.xlu0 %3637
        %3639 = vrot.lane.b32.xlu0 %v3012, 64
        %v3640 = vpop.permute.xlu0 %3639
        %3641 = vrot.lane.b32.xlu0 %v3015, 64
        %v3642 = vpop.permute.xlu0 %3641
        %3643 = vrot.lane.b32.xlu0 %v3017, 64
        %v3644 = vpop.permute.xlu0 %3643
        %3645 = vrot.lane.b32.xlu0 %v3020, 64
        %v3646 = vpop.permute.xlu0 %3645
        %3647 = vrot.lane.b32.xlu0 %v3022, 64
        %v3648 = vpop.permute.xlu0 %3647
        %3649 = vrot.lane.b32.xlu0 %v3314, 64
        %v3650 = vpop.permute.xlu0 %3649
        %3651 = vrot.lane.b32.xlu0 %v3316, 64
        %v3652 = vpop.permute.xlu0 %3651
        %vm3683 = vcmask 64512
        %v3684 = vsel %vm3683, %v2720, %v2858
        %v3685 = vsel %vm3683, %v2597, %v2860
        %v3686 = vsel %vm3683, %v2719, %v2862
        %v3687 = vsel %vm3683, %v2594, %v2864
        %v3688 = vsel %vm3683, %v2721, %v2866
        %v3689 = vsel %vm3683, %v2600, %v2868
        %v3690 = vsel %vm3683, %v2722, %v2870
        %v3691 = vsel %vm3683, %v2603, %v2872
        %v3692 = vsel %vm3683, %v2723, %v2874
        %v3693 = vsel %vm3683, %v2606, %v2876
        %v3694 = vsel %vm3683, %v2724, %v2878
        %v3695 = vsel %vm3683, %v2609, %v2880
        %v3696 = vsel %vm3683, %v2725, %v2882
        %v3697 = vsel %vm3683, %v2612, %v2884
        %v3698 = vsel %vm3683, %v2726, %v2886
        %v3699 = vsel %vm3683, %v2615, %v2888
        %v3700 = vsel %vm3683, %v2727, %v2890
        %v3701 = vsel %vm3683, %v2618, %v2892
        %v3702 = vsel %vm3683, %v2728, %v2894
        %v3703 = vsel %vm3683, %v2621, %v2896
        %v3704 = vsel %vm3683, %v2729, %v2898
        %v3705 = vsel %vm3683, %v2624, %v2900
        %v3706 = vsel %vm3683, %v2730, %v2902
        %v3707 = vsel %vm3683, %v2627, %v2904
        %v3708 = vsel %vm3683, %v2731, %v2906
        %v3709 = vsel %vm3683, %v2630, %v2908
        %v3710 = vsel %vm3683, %v2732, %v2910
        %v3711 = vsel %vm3683, %v2633, %v2912
        %v3712 = vsel %vm3683, %v2733, %v2914
        %v3713 = vsel %vm3683, %v2636, %v2916
        %vm3714 = vcmask 130048
        %v3715 = vsel %vm3714, %v3684, %v3024
        %v3716 = vsel %vm3714, %v3685, %v3026
        %v3717 = vsel %vm3714, %v3686, %v3028
        %v3718 = vsel %vm3714, %v3687, %v3030
        %v3719 = vsel %vm3714, %v3688, %v3032
        %v3720 = vsel %vm3714, %v3689, %v3034
        %v3721 = vsel %vm3714, %v3690, %v3036
        %v3722 = vsel %vm3714, %v3691, %v3038
        %v3723 = vsel %vm3714, %v3692, %v3040
        %v3724 = vsel %vm3714, %v3693, %v3042
        %v3725 = vsel %vm3714, %v3694, %v3044
        %v3726 = vsel %vm3714, %v3695, %v3046
        %v3727 = vsel %vm3714, %v3696, %v3048
        %v3728 = vsel %vm3714, %v3697, %v3050
        %v3729 = vsel %vm3714, %v3698, %v3052
        %v3730 = vsel %vm3714, %v3699, %v3054
        %v3731 = vsel %vm3714, %v3700, %v3056
        %v3732 = vsel %vm3714, %v3701, %v3058
        %v3733 = vsel %vm3714, %v3702, %v3060
        %v3734 = vsel %vm3714, %v3703, %v3062
        %v3735 = vsel %vm3714, %v3704, %v3064
        %v3736 = vsel %vm3714, %v3705, %v3066
        %v3737 = vsel %vm3714, %v3706, %v3068
        %v3738 = vsel %vm3714, %v3707, %v3070
        %v3739 = vsel %vm3714, %v3708, %v3072
        %v3740 = vsel %vm3714, %v3709, %v3074
        %v3741 = vsel %vm3714, %v3710, %v3076
        %v3742 = vsel %vm3714, %v3711, %v3078
        %v3743 = vsel %vm3714, %v3712, %v3080
        %v3744 = vsel %vm3714, %v3713, %v3082
        %vm3745 = vcmask 195584
        %v3746 = vsel %vm3745, %v3715, %v3115
        %v3747 = vsel %vm3745, %v3716, %v3117
        %v3748 = vsel %vm3745, %v3717, %v3119
        %v3749 = vsel %vm3745, %v3718, %v3121
        %v3750 = vsel %vm3745, %v3715, %v3123
        %v3751 = vsel %vm3745, %v3716, %v3125
        %v3752 = vsel %vm3745, %v3719, %v3127
        %v3753 = vsel %vm3745, %v3720, %v3129
        %v3754 = vsel %vm3745, %v3721, %v3131
        %v3755 = vsel %vm3745, %v3722, %v3133
        %v3756 = vsel %vm3745, %v3723, %v3135
        %v3757 = vsel %vm3745, %v3724, %v3137
        %v3758 = vsel %vm3745, %v3725, %v3139
        %v3759 = vsel %vm3745, %v3726, %v3141
        %v3760 = vsel %vm3745, %v3727, %v3143
        %v3761 = vsel %vm3745, %v3728, %v3145
        %v3762 = vsel %vm3745, %v3729, %v3147
        %v3763 = vsel %vm3745, %v3730, %v3149
        %v3764 = vsel %vm3745, %v3731, %v3151
        %v3765 = vsel %vm3745, %v3732, %v3153
        %v3766 = vsel %vm3745, %v3733, %v3155
        %v3767 = vsel %vm3745, %v3734, %v3157
        %v3768 = vsel %vm3745, %v3735, %v3159
        %v3769 = vsel %vm3745, %v3736, %v3161
        %v3770 = vsel %vm3745, %v3737, %v3163
        %v3771 = vsel %vm3745, %v3738, %v3165
        %v3772 = vsel %vm3745, %v3739, %v3167
        %v3773 = vsel %vm3745, %v3740, %v3169
        %v3774 = vsel %vm3745, %v3741, %v3171
        %v3775 = vsel %vm3745, %v3742, %v3173
        %v3776 = vsel %vm3745, %v3743, %v3175
        %v3777 = vsel %vm3745, %v3744, %v3177
        %vm3778 = vcmask 261120
        %v3779 = vsel %vm3778, %v3746, %v3217
        %v3780 = vsel %vm3778, %v3747, %v3219
        %v3781 = vsel %vm3778, %v3748, %v3221
        %v3782 = vsel %vm3778, %v3749, %v3223
        %v3783 = vsel %vm3778, %v3750, %v3225
        %v3784 = vsel %vm3778, %v3751, %v3227
        %v3785 = vsel %vm3778, %v3752, %v3229
        %v3786 = vsel %vm3778, %v3753, %v3231
        %v3787 = vsel %vm3778, %v3754, %v3233
        %v3788 = vsel %vm3778, %v3755, %v3235
        %v3789 = vsel %vm3778, %v3756, %v3237
        %v3790 = vsel %vm3778, %v3757, %v3239
        %v3791 = vsel %vm3778, %v3758, %v3241
        %v3792 = vsel %vm3778, %v3759, %v3243
        %v3793 = vsel %vm3778, %v3760, %v3245
        %v3794 = vsel %vm3778, %v3761, %v3247
        %v3795 = vsel %vm3778, %v3762, %v3249
        %v3796 = vsel %vm3778, %v3763, %v3251
        %v3797 = vsel %vm3778, %v3764, %v3253
        %v3798 = vsel %vm3778, %v3765, %v3255
        %v3799 = vsel %vm3778, %v3766, %v3257
        %v3800 = vsel %vm3778, %v3767, %v3259
        %v3801 = vsel %vm3778, %v3768, %v3261
        %v3802 = vsel %vm3778, %v3769, %v3263
        %v3803 = vsel %vm3778, %v3770, %v3265
        %v3804 = vsel %vm3778, %v3771, %v3267
        %v3805 = vsel %vm3778, %v3772, %v3269
        %v3806 = vsel %vm3778, %v3773, %v3271
        %v3807 = vsel %vm3778, %v3774, %v3273
        %v3808 = vsel %vm3778, %v3775, %v3275
        %v3809 = vsel %vm3778, %v3776, %v3277
        %v3810 = vsel %vm3778, %v3777, %v3279
        %vm3811 = vcmask 326656
        %v3812 = vsel %vm3811, %v3779, %v3318
        %v3813 = vsel %vm3811, %v3780, %v3320
        %v3814 = vsel %vm3811, %v3781, %v3322
        %v3815 = vsel %vm3811, %v3782, %v3324
        %v3816 = vsel %vm3811, %v3783, %v3326
        %v3817 = vsel %vm3811, %v3784, %v3328
        %v3818 = vsel %vm3811, %v3785, %v3330
        %v3819 = vsel %vm3811, %v3786, %v3332
        %v3820 = vsel %vm3811, %v3787, %v3334
        %v3821 = vsel %vm3811, %v3788, %v3336
        %v3822 = vsel %vm3811, %v3789, %v3338
        %v3823 = vsel %vm3811, %v3790, %v3340
        %v3824 = vsel %vm3811, %v3791, %v3342
        %v3825 = vsel %vm3811, %v3792, %v3344
        %v3826 = vsel %vm3811, %v3793, %v3346
        %v3827 = vsel %vm3811, %v3794, %v3348
        %v3828 = vsel %vm3811, %v3795, %v3350
        %v3829 = vsel %vm3811, %v3796, %v3352
        %v3830 = vsel %vm3811, %v3797, %v3354
        %v3831 = vsel %vm3811, %v3798, %v3356
        %v3832 = vsel %vm3811, %v3799, %v3358
        %v3833 = vsel %vm3811, %v3800, %v3360
        %v3834 = vsel %vm3811, %v3801, %v3362
        %v3835 = vsel %vm3811, %v3802, %v3364
        %v3836 = vsel %vm3811, %v3803, %v3366
        %v3837 = vsel %vm3811, %v3804, %v3368
        %v3838 = vsel %vm3811, %v3805, %v3370
        %v3839 = vsel %vm3811, %v3806, %v3372
        %v3840 = vsel %vm3811, %v3807, %v3374
        %v3841 = vsel %vm3811, %v3808, %v3376
        %v3842 = vsel %vm3811, %v3809, %v3378
        %v3843 = vsel %vm3811, %v3810, %v3380
        %vm3844 = vcmask 392192
        %v3845 = vsel %vm3844, %v3812, %v3414
        %v3846 = vsel %vm3844, %v3813, %v3416
        %v3847 = vsel %vm3844, %v3814, %v3418
        %v3848 = vsel %vm3844, %v3815, %v3420
        %v3849 = vsel %vm3844, %v3816, %v3422
        %v3850 = vsel %vm3844, %v3817, %v3424
        %v3851 = vsel %vm3844, %v3818, %v3426
        %v3852 = vsel %vm3844, %v3819, %v3428
        %v3853 = vsel %vm3844, %v3820, %v3430
        %v3854 = vsel %vm3844, %v3821, %v3432
        %v3855 = vsel %vm3844, %v3822, %v3434
        %v3856 = vsel %vm3844, %v3823, %v3436
        %v3857 = vsel %vm3844, %v3824, %v3438
        %v3858 = vsel %vm3844, %v3825, %v3440
        %v3859 = vsel %vm3844, %v3826, %v3442
        %v3860 = vsel %vm3844, %v3827, %v3444
        %v3861 = vsel %vm3844, %v3828, %v3446
        %v3862 = vsel %vm3844, %v3829, %v3448
        %v3863 = vsel %vm3844, %v3830, %v3450
        %v3864 = vsel %vm3844, %v3831, %v3452
        %v3865 = vsel %vm3844, %v3832, %v3454
        %v3866 = vsel %vm3844, %v3833, %v3456
        %v3867 = vsel %vm3844, %v3834, %v3458
        %v3868 = vsel %vm3844, %v3835, %v3460
        %v3869 = vsel %vm3844, %v3836, %v3462
        %v3870 = vsel %vm3844, %v3837, %v3464
        %v3871 = vsel %vm3844, %v3838, %v3466
        %v3872 = vsel %vm3844, %v3839, %v3468
        %v3873 = vsel %vm3844, %v3840, %v3470
        %v3874 = vsel %vm3844, %v3841, %v3472
        %v3875 = vsel %vm3844, %v3842, %v3466
        %v3876 = vsel %vm3844, %v3843, %v3468
        %vm3877 = vcmask 457728
        %v3878 = vsel %vm3877, %v3845, %v3504
        %v3879 = vsel %vm3877, %v3846, %v3506
        %v3880 = vsel %vm3877, %v3847, %v3508
        %v3881 = vsel %vm3877, %v3848, %v3510
        %v3882 = vsel %vm3877, %v3849, %v3512
        %v3883 = vsel %vm3877, %v3850, %v3514
        %v3884 = vsel %vm3877, %v3851, %v3516
        %v3885 = vsel %vm3877, %v3852, %v3518
        %v3886 = vsel %vm3877, %v3853, %v3520
        %v3887 = vsel %vm3877, %v3854, %v3522
        %v3888 = vsel %vm3877, %v3855, %v3524
        %v3889 = vsel %vm3877, %v3856, %v3526
        %v3890 = vsel %vm3877, %v3857, %v3528
        %v3891 = vsel %vm3877, %v3858, %v3530
        %v3892 = vsel %vm3877, %v3859, %v3532
        %v3893 = vsel %vm3877, %v3860, %v3534
        %v3894 = vsel %vm3877, %v3861, %v3536
        %v3895 = vsel %vm3877, %v3862, %v3538
        %v3896 = vsel %vm3877, %v3863, %v3540
        %v3897 = vsel %vm3877, %v3864, %v3542
        %v3898 = vsel %vm3877, %v3865, %v3544
        %v3899 = vsel %vm3877, %v3866, %v3546
        %v3900 = vsel %vm3877, %v3867, %v3548
        %v3901 = vsel %vm3877, %v3868, %v3550
        %v3902 = vsel %vm3877, %v3869, %v3552
        %v3903 = vsel %vm3877, %v3870, %v3554
        %v3904 = vsel %vm3877, %v3871, %v3556
        %v3905 = vsel %vm3877, %v3872, %v3558
        %v3906 = vsel %vm3877, %v3873, %v3560
        %v3907 = vsel %vm3877, %v3874, %v3562
        %v3908 = vsel %vm3877, %v3875, %v3556
        %v3909 = vsel %vm3877, %v3876, %v3558
        %vm3910 = vcmask 523264
        %v3911 = vsel %vm3910, %v3878, %v3594
        %v3912 = vsel %vm3910, %v3879, %v3596
        %v3913 = vsel %vm3910, %v3880, %v3598
        %v3914 = vsel %vm3910, %v3881, %v3600
        %v3915 = vsel %vm3910, %v3882, %v3602
        %v3916 = vsel %vm3910, %v3883, %v3604
        %v3917 = vsel %vm3910, %v3884, %v3606
        %v3918 = vsel %vm3910, %v3885, %v3608
        %v3919 = vsel %vm3910, %v3886, %v3610
        %v3920 = vsel %vm3910, %v3887, %v3612
        %v3921 = vsel %vm3910, %v3888, %v3614
        %v3922 = vsel %vm3910, %v3889, %v3616
        %v3923 = vsel %vm3910, %v3890, %v3618
        %v3924 = vsel %vm3910, %v3891, %v3620
        %v3925 = vsel %vm3910, %v3892, %v3622
        %v3926 = vsel %vm3910, %v3893, %v3624
        %v3927 = vsel %vm3910, %v3894, %v3626
        %v3928 = vsel %vm3910, %v3895, %v3628
        %v3929 = vsel %vm3910, %v3896, %v3630
        %v3930 = vsel %vm3910, %v3897, %v3632
        %v3931 = vsel %vm3910, %v3898, %v3634
        %v3932 = vsel %vm3910, %v3899, %v3636
        %v3933 = vsel %vm3910, %v3900, %v3638
        %v3934 = vsel %vm3910, %v3901, %v3640
        %v3935 = vsel %vm3910, %v3902, %v3642
        %v3936 = vsel %vm3910, %v3903, %v3644
        %v3937 = vsel %vm3910, %v3904, %v3646
        %v3938 = vsel %vm3910, %v3905, %v3648
        %v3939 = vsel %vm3910, %v3906, %v3650
        %v3940 = vsel %vm3910, %v3907, %v3652
        %v3941 = vsel %vm3910, %v3908, %v3646
        %v3942 = vsel %vm3910, %v3909, %v3648
        %v3943 = vld [vmem:[%s2] sm:$0xff]
        %v3944 = vld [vmem:[%s2 + $0x8] sm:$0xff]
        %v3945 = vld [vmem:[%s2 + $0x10] sm:$0xff]
        %v3946 = vld [vmem:[%s2 + $0x18] sm:$0xff]
        %v3947 = vld [vmem:[%s2 + $0x20] sm:$0xff]
        %v3948 = vld [vmem:[%s2 + $0x28] sm:$0xff]
        %v3949 = vld [vmem:[%s2 + $0x30] sm:$0xff]
        %v3950 = vld [vmem:[%s2 + $0x38] sm:$0xff]
        %v3951 = vld [vmem:[%s2 + $0x40] sm:$0xff]
        %vm3952 = vcmask 588800
        %v3954 = vsel %vm3952, %v3911, 0
        %v3957 = vsel %vm3952, %v3912, 0
        %v3960 = vsel %vm3952, %v3913, 0
        %v3963 = vsel %vm3952, %v3914, 0
        %v3966 = vsel %vm3952, %v3915, 0
        %v3969 = vsel %vm3952, %v3916, 0
        %v3972 = vsel %vm3952, %v3917, 0
        %v3975 = vsel %vm3952, %v3918, 0
        %v3978 = vsel %vm3952, %v3919, 0
        %v3981 = vsel %vm3952, %v3920, 0
        %v3984 = vsel %vm3952, %v3921, 0
        %v3987 = vsel %vm3952, %v3922, 0
        %v3990 = vsel %vm3952, %v3923, 0
        %v3993 = vsel %vm3952, %v3924, 0
        %v3996 = vsel %vm3952, %v3925, 0
        %v3999 = vsel %vm3952, %v3926, 0
        %v4002 = vsel %vm3952, %v3927, 0
        %v4005 = vsel %vm3952, %v3928, 0
        %v4008 = vsel %vm3952, %v3929, 0
        %v4011 = vsel %vm3952, %v3930, 0
        %v4014 = vsel %vm3952, %v3931, 0
        %v4017 = vsel %vm3952, %v3932, 0
        %v4020 = vsel %vm3952, %v3933, 0
        %v4023 = vsel %vm3952, %v3934, 0
        %v4026 = vsel %vm3952, %v3935, 0
        %v4029 = vsel %vm3952, %v3936, 0
        %v4032 = vsel %vm3952, %v3937, 0
        %v4035 = vsel %vm3952, %v3938, 0
        %v4038 = vsel %vm3952, %v3939, 0
        %v4041 = vsel %vm3952, %v3940, 0
        %v4044 = vsel %vm3952, %v3941, 0
        %v4047 = vsel %vm3952, %v3942, 0
        %4049 = vmatprep.subr.mxu0 0.0
        %4050 = vmatpush1.msra.mxu0 0.0
        %4051 = vmatprep.subr.mxu0 0.0
        %4052 = vmatpush1.msra.mxu0 0.0
        %4053 = vmatprep.subr.mxu0 0.0
        %4054 = vmatpush1.msra.mxu0 0.0
        %4055 = vmatprep.subr.mxu0 0.0
        %4056 = vmatpush1.msra.mxu0 0.0
        %4057 = vmatprep.subr.mxu0 0.0
        %4058 = vmatpush1.msra.mxu0 0.0
        %4059 = vmatprep.subr.mxu0 0.0
        %4060 = vmatpush1.msra.mxu0 0.0
        %4061 = vmatprep.subr.mxu0 0.0
        %4062 = vmatpush1.msra.mxu0 0.0
        %4063 = vmatprep.subr.mxu0 0.0
        %4064 = vmatpush1.msra.mxu0 %v3951
        %4065 = vmatprep.subr.mxu0 0.0
        %4066 = vmatpush1.msra.mxu0 %v3950
        %4067 = vmatprep.subr.mxu0 0.0
        %4068 = vmatpush1.msra.mxu0 %v3949
        %4069 = vmatprep.subr.mxu0 0.0
        %4070 = vmatpush1.msra.mxu0 %v3948
        %4071 = vmatprep.subr.mxu0 0.0
        %4072 = vmatpush1.msra.mxu0 %v3947
        %4073 = vmatprep.subr.mxu0 0.0
        %4074 = vmatpush1.msra.mxu0 %v3946
        %4075 = vmatprep.subr.mxu0 0.0
        %4076 = vmatpush1.msra.mxu0 %v3945
        %4077 = vmatprep.subr.mxu0 0.0
        %4078 = vmatpush1.msra.mxu0 %v3944
        %4079 = vmatprep.subr.mxu0 0.0
        %4080 = vmatpush1.msra.mxu0 %v3943
        %4081 = vmatprep.subr.mxu0 0.0
        %4082 = vmatpush2.msra.mxu0 0.0
        %4083 = vmatprep.subr.mxu0 0.0
        %4084 = vmatpush2.msra.mxu0 0.0
        %4085 = vmatprep.subr.mxu0 0.0
        %4086 = vmatpush2.msra.mxu0 0.0
        %4087 = vmatprep.subr.mxu0 0.0
        %4088 = vmatpush2.msra.mxu0 0.0
        %4089 = vmatprep.subr.mxu0 0.0
        %4090 = vmatpush2.msra.mxu0 0.0
        %4091 = vmatprep.subr.mxu0 0.0
        %4092 = vmatpush2.msra.mxu0 0.0
        %4093 = vmatprep.subr.mxu0 0.0
        %4094 = vmatpush2.msra.mxu0 0.0
        %4095 = vmatprep.subr.mxu0 0.0
        %4096 = vmatpush2.msra.mxu0 0.0
        %4097 = vmatprep.subr.mxu0 0.0
        %4098 = vmatpush2.msra.mxu0 0.0
        %4099 = vmatprep.subr.mxu0 0.0
        %4100 = vmatpush2.msra.mxu0 0.0
        %4101 = vmatprep.subr.mxu0 0.0
        %4102 = vmatpush2.msra.mxu0 0.0
        %4103 = vmatprep.subr.mxu0 0.0
        %4104 = vmatpush2.msra.mxu0 0.0
        %4105 = vmatprep.subr.mxu0 0.0
        %4106 = vmatpush2.msra.mxu0 0.0
        %4107 = vmatprep.subr.mxu0 0.0
        %4108 = vmatpush2.msra.mxu0 0.0
        %4109 = vmatprep.subr.mxu0 0.0
        %4110 = vmatpush2.msra.mxu0 0.0
        %4111 = vmatprep.subr.mxu0 0.0
        %4112 = vmatpush2.msra.mxu0 0.0
        %4113 = vmatprep.mubr.f32.mxu0 0.0
        %4114 = vmatmul.mubr.f32.gmra.mxu0 %v3954
        %v4115 = vpop.f32.mrf.mxu0
        %v4116 = vadd.f32 0.0, %v4115
        %v4117 = vpop.f32.mrf.mxu0
        %4118 = vmatprep.mubr.f32.mxu0 0.0
        %4119 = vmatmul.mubr.f32.gmra.mxu0 %v3957
        %v4120 = vpop.f32.mrf.mxu0
        %v4121 = vadd.f32 0.0, %v4120
        %v4122 = vpop.f32.mrf.mxu0
        %4123 = vmatprep.mubr.f32.mxu0 0.0
        %4124 = vmatmul.mubr.f32.gmra.mxu0 %v3960
        %v4125 = vpop.f32.mrf.mxu0
        %v4126 = vadd.f32 0.0, %v4125
        %v4127 = vpop.f32.mrf.mxu0
        %4128 = vmatprep.mubr.f32.mxu0 0.0
        %4129 = vmatmul.mubr.f32.gmra.mxu0 %v3963
        %v4130 = vpop.f32.mrf.mxu0
        %v4131 = vadd.f32 0.0, %v4130
        %v4132 = vpop.f32.mrf.mxu0
        %4133 = vmatprep.mubr.f32.mxu0 0.0
        %4134 = vmatmul.mubr.f32.gmra.mxu0 %v3966
        %v4135 = vpop.f32.mrf.mxu0
        %v4136 = vadd.f32 0.0, %v4135
        %v4137 = vpop.f32.mrf.mxu0
        %4138 = vmatprep.mubr.f32.mxu0 0.0
        %4139 = vmatmul.mubr.f32.gmra.mxu0 %v3969
        %v4140 = vpop.f32.mrf.mxu0
        %v4141 = vadd.f32 0.0, %v4140
        %v4142 = vpop.f32.mrf.mxu0
        %4143 = vmatprep.mubr.f32.mxu0 0.0
        %4144 = vmatmul.mubr.f32.gmra.mxu0 %v3972
        %v4145 = vpop.f32.mrf.mxu0
        %v4146 = vadd.f32 0.0, %v4145
        %v4147 = vpop.f32.mrf.mxu0
        %4148 = vmatprep.mubr.f32.mxu0 0.0
        %4149 = vmatmul.mubr.f32.gmra.mxu0 %v3975
        %v4150 = vpop.f32.mrf.mxu0
        %v4151 = vadd.f32 0.0, %v4150
        %v4152 = vpop.f32.mrf.mxu0
        %4153 = vmatprep.mubr.f32.mxu0 0.0
        %4154 = vmatmul.mubr.f32.gmra.mxu0 %v3978
        %v4155 = vpop.f32.mrf.mxu0
        %v4156 = vadd.f32 0.0, %v4155
        %v4157 = vpop.f32.mrf.mxu0
        %4158 = vmatprep.mubr.f32.mxu0 0.0
        %4159 = vmatmul.mubr.f32.gmra.mxu0 %v3981
        %v4160 = vpop.f32.mrf.mxu0
        %v4161 = vadd.f32 0.0, %v4160
        %v4162 = vpop.f32.mrf.mxu0
        %4163 = vmatprep.mubr.f32.mxu0 0.0
        %4164 = vmatmul.mubr.f32.gmra.mxu0 %v3984
        %v4165 = vpop.f32.mrf.mxu0
        %v4166 = vadd.f32 0.0, %v4165
        %v4167 = vpop.f32.mrf.mxu0
        %4168 = vmatprep.mubr.f32.mxu0 0.0
        %4169 = vmatmul.mubr.f32.gmra.mxu0 %v3987
        %v4170 = vpop.f32.mrf.mxu0
        %v4171 = vadd.f32 0.0, %v4170
        %v4172 = vpop.f32.mrf.mxu0
        %4173 = vmatprep.mubr.f32.mxu0 0.0
        %4174 = vmatmul.mubr.f32.gmra.mxu0 %v3990
        %v4175 = vpop.f32.mrf.mxu0
        %v4176 = vadd.f32 0.0, %v4175
        %v4177 = vpop.f32.mrf.mxu0
        %4178 = vmatprep.mubr.f32.mxu0 0.0
        %4179 = vmatmul.mubr.f32.gmra.mxu0 %v3993
        %v4180 = vpop.f32.mrf.mxu0
        %v4181 = vadd.f32 0.0, %v4180
        %v4182 = vpop.f32.mrf.mxu0
        %4183 = vmatprep.mubr.f32.mxu0 0.0
        %4184 = vmatmul.mubr.f32.gmra.mxu0 %v3996
        %v4185 = vpop.f32.mrf.mxu0
        %v4186 = vadd.f32 0.0, %v4185
        %v4187 = vpop.f32.mrf.mxu0
        %4188 = vmatprep.mubr.f32.mxu0 0.0
        %4189 = vmatmul.mubr.f32.gmra.mxu0 %v3999
        %v4190 = vpop.f32.mrf.mxu0
        %v4191 = vadd.f32 0.0, %v4190
        %v4192 = vpop.f32.mrf.mxu0
        %4193 = vmatprep.mubr.f32.mxu0 0.0
        %4194 = vmatmul.mubr.f32.gmra.mxu0 %v4002
        %v4195 = vpop.f32.mrf.mxu0
        %v4196 = vadd.f32 0.0, %v4195
        %v4197 = vpop.f32.mrf.mxu0
        %4198 = vmatprep.mubr.f32.mxu0 0.0
        %4199 = vmatmul.mubr.f32.gmra.mxu0 %v4005
        %v4200 = vpop.f32.mrf.mxu0
        %v4201 = vadd.f32 0.0, %v4200
        %v4202 = vpop.f32.mrf.mxu0
        %4203 = vmatprep.mubr.f32.mxu0 0.0
        %4204 = vmatmul.mubr.f32.gmra.mxu0 %v4008
        %v4205 = vpop.f32.mrf.mxu0
        %v4206 = vadd.f32 0.0, %v4205
        %v4207 = vpop.f32.mrf.mxu0
        %4208 = vmatprep.mubr.f32.mxu0 0.0
        %4209 = vmatmul.mubr.f32.gmra.mxu0 %v4011
        %v4210 = vpop.f32.mrf.mxu0
        %v4211 = vadd.f32 0.0, %v4210
        %v4212 = vpop.f32.mrf.mxu0
        %4213 = vmatprep.mubr.f32.mxu0 0.0
        %4214 = vmatmul.mubr.f32.gmra.mxu0 %v4014
        %v4215 = vpop.f32.mrf.mxu0
        %v4216 = vadd.f32 0.0, %v4215
        %v4217 = vpop.f32.mrf.mxu0
        %4218 = vmatprep.mubr.f32.mxu0 0.0
        %4219 = vmatmul.mubr.f32.gmra.mxu0 %v4017
        %v4220 = vpop.f32.mrf.mxu0
        %v4221 = vadd.f32 0.0, %v4220
        %v4222 = vpop.f32.mrf.mxu0
        %4223 = vmatprep.mubr.f32.mxu0 0.0
        %4224 = vmatmul.mubr.f32.gmra.mxu0 %v4020
        %v4225 = vpop.f32.mrf.mxu0
        %v4226 = vadd.f32 0.0, %v4225
        %v4227 = vpop.f32.mrf.mxu0
        %4228 = vmatprep.mubr.f32.mxu0 0.0
        %4229 = vmatmul.mubr.f32.gmra.mxu0 %v4023
        %v4230 = vpop.f32.mrf.mxu0
        %v4231 = vadd.f32 0.0, %v4230
        %v4232 = vpop.f32.mrf.mxu0
        %4233 = vmatprep.mubr.f32.mxu0 0.0
        %4234 = vmatmul.mubr.f32.gmra.mxu0 %v4026
        %v4235 = vpop.f32.mrf.mxu0
        %v4236 = vadd.f32 0.0, %v4235
        %v4237 = vpop.f32.mrf.mxu0
        %4238 = vmatprep.mubr.f32.mxu0 0.0
        %4239 = vmatmul.mubr.f32.gmra.mxu0 %v4029
        %v4240 = vpop.f32.mrf.mxu0
        %v4241 = vadd.f32 0.0, %v4240
        %v4242 = vpop.f32.mrf.mxu0
        %4243 = vmatprep.mubr.f32.mxu0 0.0
        %4244 = vmatmul.mubr.f32.gmra.mxu0 %v4032
        %v4245 = vpop.f32.mrf.mxu0
        %v4246 = vadd.f32 0.0, %v4245
        %v4247 = vpop.f32.mrf.mxu0
        %4248 = vmatprep.mubr.f32.mxu0 0.0
        %4249 = vmatmul.mubr.f32.gmra.mxu0 %v4035
        %v4250 = vpop.f32.mrf.mxu0
        %v4251 = vadd.f32 0.0, %v4250
        %v4252 = vpop.f32.mrf.mxu0
        %4253 = vmatprep.mubr.f32.mxu0 0.0
        %4254 = vmatmul.mubr.f32.gmra.mxu0 %v4038
        %v4255 = vpop.f32.mrf.mxu0
        %v4256 = vadd.f32 0.0, %v4255
        %v4257 = vpop.f32.mrf.mxu0
        %4258 = vmatprep.mubr.f32.mxu0 0.0
        %4259 = vmatmul.mubr.f32.gmra.mxu0 %v4041
        %v4260 = vpop.f32.mrf.mxu0
        %v4261 = vadd.f32 0.0, %v4260
        %v4262 = vpop.f32.mrf.mxu0
        %4263 = vmatprep.mubr.f32.mxu0 0.0
        %4264 = vmatmul.mubr.f32.gmra.mxu0 %v4044
        %v4265 = vpop.f32.mrf.mxu0
        %v4266 = vadd.f32 0.0, %v4265
        %v4267 = vpop.f32.mrf.mxu0
        %4268 = vmatprep.mubr.f32.mxu0 0.0
        %4269 = vmatmul.mubr.f32.gmra.mxu0 %v4047
        %v4270 = vpop.f32.mrf.mxu0
        %v4271 = vadd.f32 0.0, %v4270
        %v4272 = vpop.f32.mrf.mxu0
        %4273 = vdwg.mxu0
        %s4274 = scalar_lea.vmem %s7, %s297
        %4275 = vst.msk [vmem:[%s4274] sm:$0xff] %vm3683, %v4116
        %4276 = vst.msk [vmem:[%s4274 + $0x8] sm:$0xff] %vm3683, %v4121
        %4277 = vst.msk [vmem:[%s4274 + $0x10] sm:$0xff] %vm3683, %v4126
        %4278 = vst.msk [vmem:[%s4274 + $0x18] sm:$0xff] %vm3683, %v4131
        %4279 = vst.msk [vmem:[%s4274 + $0x20] sm:$0xff] %vm3683, %v4136
        %4280 = vst.msk [vmem:[%s4274 + $0x28] sm:$0xff] %vm3683, %v4141
        %4281 = vst.msk [vmem:[%s4274 + $0x30] sm:$0xff] %vm3683, %v4146
        %4282 = vst.msk [vmem:[%s4274 + $0x38] sm:$0xff] %vm3683, %v4151
        %4283 = vst.msk [vmem:[%s4274 + $0x40] sm:$0xff] %vm3683, %v4156
        %4284 = vst.msk [vmem:[%s4274 + $0x48] sm:$0xff] %vm3683, %v4161
        %4285 = vst.msk [vmem:[%s4274 + $0x50] sm:$0xff] %vm3683, %v4166
        %4286 = vst.msk [vmem:[%s4274 + $0x58] sm:$0xff] %vm3683, %v4171
        %4287 = vst.msk [vmem:[%s4274 + $0x60] sm:$0xff] %vm3683, %v4176
        %4288 = vst.msk [vmem:[%s4274 + $0x68] sm:$0xff] %vm3683, %v4181
        %4289 = vst.msk [vmem:[%s4274 + $0x70] sm:$0xff] %vm3683, %v4186
        %4290 = vst.msk [vmem:[%s4274 + $0x78] sm:$0xff] %vm3683, %v4191
        %4291 = vst.msk [vmem:[%s4274 + $0x80] sm:$0xff] %vm3683, %v4196
        %4292 = vst.msk [vmem:[%s4274 + $0x88] sm:$0xff] %vm3683, %v4201
        %4293 = vst.msk [vmem:[%s4274 + $0x90] sm:$0xff] %vm3683, %v4206
        %4294 = vst.msk [vmem:[%s4274 + $0x98] sm:$0xff] %vm3683, %v4211
        %4295 = vst.msk [vmem:[%s4274 + $0xa0] sm:$0xff] %vm3683, %v4216
        %4296 = vst.msk [vmem:[%s4274 + $0xa8] sm:$0xff] %vm3683, %v4221
        %4297 = vst.msk [vmem:[%s4274 + $0xb0] sm:$0xff] %vm3683, %v4226
        %4298 = vst.msk [vmem:[%s4274 + $0xb8] sm:$0xff] %vm3683, %v4231
        %4299 = vst.msk [vmem:[%s4274 + $0xc0] sm:$0xff] %vm3683, %v4236
        %4300 = vst.msk [vmem:[%s4274 + $0xc8] sm:$0xff] %vm3683, %v4241
        %4301 = vst.msk [vmem:[%s4274 + $0xd0] sm:$0xff] %vm3683, %v4246
        %4302 = vst.msk [vmem:[%s4274 + $0xd8] sm:$0xff] %vm3683, %v4251
        %4303 = vst.msk [vmem:[%s4274 + $0xe0] sm:$0xff] %vm3683, %v4256
        %4304 = vst.msk [vmem:[%s4274 + $0xe8] sm:$0xff] %vm3683, %v4261
        %4305 = vst.msk [vmem:[%s4274 + $0xf0] sm:$0xff] %vm3683, %v4266
        %4306 = vst.msk [vmem:[%s4274 + $0xf8] sm:$0xff] %vm3683, %v4271
        %v4307 = vld [vmem:[#allocation5] sm:$0x1]
        %v4308 = vsel %vm3683, %v4116, 0.0
        %v4309 = vsel %vm3683, %v4121, 0.0
        %v4310 = vadd.f32 %v4308, %v4309
        %v4311 = vsel %vm3683, %v4126, 0.0
        %v4312 = vadd.f32 %v4310, %v4311
        %v4313 = vsel %vm3683, %v4131, 0.0
        %v4314 = vadd.f32 %v4312, %v4313
        %v4315 = vsel %vm3683, %v4136, 0.0
        %v4316 = vadd.f32 %v4314, %v4315
        %v4317 = vsel %vm3683, %v4141, 0.0
        %v4318 = vadd.f32 %v4316, %v4317
        %v4319 = vsel %vm3683, %v4146, 0.0
        %v4320 = vadd.f32 %v4318, %v4319
        %v4321 = vsel %vm3683, %v4151, 0.0
        %v4322 = vadd.f32 %v4320, %v4321
        %v4323 = vsel %vm3683, %v4156, 0.0
        %v4324 = vadd.f32 %v4322, %v4323
        %v4325 = vsel %vm3683, %v4161, 0.0
        %v4326 = vadd.f32 %v4324, %v4325
        %v4327 = vsel %vm3683, %v4166, 0.0
        %v4328 = vadd.f32 %v4326, %v4327
        %v4329 = vsel %vm3683, %v4171, 0.0
        %v4330 = vadd.f32 %v4328, %v4329
        %v4331 = vsel %vm3683, %v4176, 0.0
        %v4332 = vadd.f32 %v4330, %v4331
        %v4333 = vsel %vm3683, %v4181, 0.0
        %v4334 = vadd.f32 %v4332, %v4333
        %v4335 = vsel %vm3683, %v4186, 0.0
        %v4336 = vadd.f32 %v4334, %v4335
        %v4337 = vsel %vm3683, %v4191, 0.0
        %v4338 = vadd.f32 %v4336, %v4337
        %v4339 = vsel %vm3683, %v4196, 0.0
        %v4340 = vadd.f32 %v4338, %v4339
        %v4341 = vsel %vm3683, %v4201, 0.0
        %v4342 = vadd.f32 %v4340, %v4341
        %v4343 = vsel %vm3683, %v4206, 0.0
        %v4344 = vadd.f32 %v4342, %v4343
        %v4345 = vsel %vm3683, %v4211, 0.0
        %v4346 = vadd.f32 %v4344, %v4345
        %v4347 = vsel %vm3683, %v4216, 0.0
        %v4348 = vadd.f32 %v4346, %v4347
        %v4349 = vsel %vm3683, %v4221, 0.0
        %v4350 = vadd.f32 %v4348, %v4349
        %v4351 = vsel %vm3683, %v4226, 0.0
        %v4352 = vadd.f32 %v4350, %v4351
        %v4353 = vsel %vm3683, %v4231, 0.0
        %v4354 = vadd.f32 %v4352, %v4353
        %v4355 = vsel %vm3683, %v4236, 0.0
        %v4356 = vadd.f32 %v4354, %v4355
        %v4357 = vsel %vm3683, %v4241, 0.0
        %v4358 = vadd.f32 %v4356, %v4357
        %v4359 = vsel %vm3683, %v4246, 0.0
        %v4360 = vadd.f32 %v4358, %v4359
        %v4361 = vsel %vm3683, %v4251, 0.0
        %v4362 = vadd.f32 %v4360, %v4361
        %v4363 = vsel %vm3683, %v4256, 0.0
        %v4364 = vadd.f32 %v4362, %v4363
        %v4365 = vsel %vm3683, %v4261, 0.0
        %v4366 = vadd.f32 %v4364, %v4365
        %v4367 = vsel %vm3683, %v4266, 0.0
        %v4368 = vadd.f32 %v4366, %v4367
        %v4369 = vsel %vm3683, %v4271, 0.0
        %v4370 = vadd.f32 %v4368, %v4369
        %v4371 = vrot.slane %v4370, 4
        %v4372 = vadd.f32 %v4370, %v4371
        %v4373 = vrot.slane %v4372, 2
        %v4374 = vadd.f32 %v4372, %v4373
        %v4375 = vrot.slane %v4374, 1
        %v4376 = vadd.f32 %v4374, %v4375
        %v4377 = vadd.f32 %v4307, %v4376
        %vm4378 = vcmask 57344
        %4379 = vst.msk [vmem:[#allocation5] sm:$0x1] %vm4378, %v4377
        %v4380 = vld [vmem:[#allocation5 + $0x1] sm:$0x1]
        %v4381 = vmul.f32 %v4116, %v4116
        %v4382 = vmul.f32 %v4121, %v4121
        %v4383 = vmul.f32 %v4126, %v4126
        %v4384 = vmul.f32 %v4131, %v4131
        %v4385 = vmul.f32 %v4136, %v4136
        %v4386 = vmul.f32 %v4141, %v4141
        %v4387 = vmul.f32 %v4146, %v4146
        %v4388 = vmul.f32 %v4151, %v4151
        %v4389 = vmul.f32 %v4156, %v4156
        %v4390 = vmul.f32 %v4161, %v4161
        %v4391 = vmul.f32 %v4166, %v4166
        %v4392 = vmul.f32 %v4171, %v4171
        %v4393 = vmul.f32 %v4176, %v4176
        %v4394 = vmul.f32 %v4181, %v4181
        %v4395 = vmul.f32 %v4186, %v4186
        %v4396 = vmul.f32 %v4191, %v4191
        %v4397 = vmul.f32 %v4196, %v4196
        %v4398 = vmul.f32 %v4201, %v4201
        %v4399 = vmul.f32 %v4206, %v4206
        %v4400 = vmul.f32 %v4211, %v4211
        %v4401 = vmul.f32 %v4216, %v4216
        %v4402 = vmul.f32 %v4221, %v4221
        %v4403 = vmul.f32 %v4226, %v4226
        %v4404 = vmul.f32 %v4231, %v4231
        %v4405 = vmul.f32 %v4236, %v4236
        %v4406 = vmul.f32 %v4241, %v4241
        %v4407 = vmul.f32 %v4246, %v4246
        %v4408 = vmul.f32 %v4251, %v4251
        %v4409 = vmul.f32 %v4256, %v4256
        %v4410 = vmul.f32 %v4261, %v4261
        %v4411 = vmul.f32 %v4266, %v4266
        %v4412 = vmul.f32 %v4271, %v4271
        %v4413 = vsel %vm3683, %v4381, 0.0
        %v4414 = vsel %vm3683, %v4382, 0.0
        %v4415 = vadd.f32 %v4413, %v4414
        %v4416 = vsel %vm3683, %v4383, 0.0
        %v4417 = vadd.f32 %v4415, %v4416
        %v4418 = vsel %vm3683, %v4384, 0.0
        %v4419 = vadd.f32 %v4417, %v4418
        %v4420 = vsel %vm3683, %v4385, 0.0
        %v4421 = vadd.f32 %v4419, %v4420
        %v4422 = vsel %vm3683, %v4386, 0.0
        %v4423 = vadd.f32 %v4421, %v4422
        %v4424 = vsel %vm3683, %v4387, 0.0
        %v4425 = vadd.f32 %v4423, %v4424
        %v4426 = vsel %vm3683, %v4388, 0.0
        %v4427 = vadd.f32 %v4425, %v4426
        %v4428 = vsel %vm3683, %v4389, 0.0
        %v4429 = vadd.f32 %v4427, %v4428
        %v4430 = vsel %vm3683, %v4390, 0.0
        %v4431 = vadd.f32 %v4429, %v4430
        %v4432 = vsel %vm3683, %v4391, 0.0
        %v4433 = vadd.f32 %v4431, %v4432
        %v4434 = vsel %vm3683, %v4392, 0.0
        %v4435 = vadd.f32 %v4433, %v4434
        %v4436 = vsel %vm3683, %v4393, 0.0
        %v4437 = vadd.f32 %v4435, %v4436
        %v4438 = vsel %vm3683, %v4394, 0.0
        %v4439 = vadd.f32 %v4437, %v4438
        %v4440 = vsel %vm3683, %v4395, 0.0
        %v4441 = vadd.f32 %v4439, %v4440
        %v4442 = vsel %vm3683, %v4396, 0.0
        %v4443 = vadd.f32 %v4441, %v4442
        %v4444 = vsel %vm3683, %v4397, 0.0
        %v4445 = vadd.f32 %v4443, %v4444
        %v4446 = vsel %vm3683, %v4398, 0.0
        %v4447 = vadd.f32 %v4445, %v4446
        %v4448 = vsel %vm3683, %v4399, 0.0
        %v4449 = vadd.f32 %v4447, %v4448
        %v4450 = vsel %vm3683, %v4400, 0.0
        %v4451 = vadd.f32 %v4449, %v4450
        %v4452 = vsel %vm3683, %v4401, 0.0
        %v4453 = vadd.f32 %v4451, %v4452
        %v4454 = vsel %vm3683, %v4402, 0.0
        %v4455 = vadd.f32 %v4453, %v4454
        %v4456 = vsel %vm3683, %v4403, 0.0
        %v4457 = vadd.f32 %v4455, %v4456
        %v4458 = vsel %vm3683, %v4404, 0.0
        %v4459 = vadd.f32 %v4457, %v4458
        %v4460 = vsel %vm3683, %v4405, 0.0
        %v4461 = vadd.f32 %v4459, %v4460
        %v4462 = vsel %vm3683, %v4406, 0.0
        %v4463 = vadd.f32 %v4461, %v4462
        %v4464 = vsel %vm3683, %v4407, 0.0
        %v4465 = vadd.f32 %v4463, %v4464
        %v4466 = vsel %vm3683, %v4408, 0.0
        %v4467 = vadd.f32 %v4465, %v4466
        %v4468 = vsel %vm3683, %v4409, 0.0
        %v4469 = vadd.f32 %v4467, %v4468
        %v4470 = vsel %vm3683, %v4410, 0.0
        %v4471 = vadd.f32 %v4469, %v4470
        %v4472 = vsel %vm3683, %v4411, 0.0
        %v4473 = vadd.f32 %v4471, %v4472
        %v4474 = vsel %vm3683, %v4412, 0.0
        %v4475 = vadd.f32 %v4473, %v4474
        %v4476 = vrot.slane %v4475, 4
        %v4477 = vadd.f32 %v4475, %v4476
        %v4478 = vrot.slane %v4477, 2
        %v4479 = vadd.f32 %v4477, %v4478
        %v4480 = vrot.slane %v4479, 1
        %v4481 = vadd.f32 %v4479, %v4480
        %v4482 = vadd.f32 %v4380, %v4481
        %4483 = vst.msk [vmem:[#allocation5 + $0x1] sm:$0x1] %vm4378, %v4482
      $region64: #{tpu_custom_call.1} parent=47 // pred_fallthru
        _
      %p4484 = scmp.eq.s32.totalorder %s23, 1
      %p4485 = pnand %p2298, %p4484
      %p4486 = pneg %p4485
      // Predicated region
      $region65: #{tpu_custom_call.1} parent=47 // pred_check
        _
      $region66: #{tpu_custom_call.1} parent=47 // pred_check_branch
        %4488 = sbr.rel (%p4485) target = $region68
      $region67: #{tpu_custom_call.1} parent=47 // pred_region
        %v4489 = vld [vmem:[#allocation5] sm:$0x1]
        %v4490 = vmul.f32 %v4489, 0.001953125
        %v4491 = vld [vmem:[#allocation5 + $0x1] sm:$0x1]
        %v4492 = vmul.f32 %v4491, 0.001953125
        %v4493 = vmul.f32 %v4490, %v4490
        %v4494 = vsub.f32 %v4492, %v4493
        %v4495 = vld [vmem:[%s5] sm:$0x1]
        %v4496 = vadd.f32 %v4494, 1e-05
        %v4497 = vrsqrt.pop %v4496
        %v4498 = vmul.f32 %v4495, %v4497
        %v4499 = vld [vmem:[%s6] sm:$0x1]
        %v4500 = vmul.f32 %v4490, %v4498
        %v4501 = vsub.f32 %v4499, %v4500
        %v4502 = vld [vmem:[%s7] sm:$0xff]
        %v4503 = vld [vmem:[%s7 + $0x8] sm:$0xff]
        %v4504 = vld [vmem:[%s7 + $0x10] sm:$0xff]
        %v4505 = vld [vmem:[%s7 + $0x18] sm:$0xff]
        %v4506 = vld [vmem:[%s7 + $0x20] sm:$0xff]
        %v4507 = vld [vmem:[%s7 + $0x28] sm:$0xff]
        %v4508 = vld [vmem:[%s7 + $0x30] sm:$0xff]
        %v4509 = vld [vmem:[%s7 + $0x38] sm:$0xff]
        %v4510 = vld [vmem:[%s7 + $0x40] sm:$0xff]
        %v4511 = vld [vmem:[%s7 + $0x48] sm:$0xff]
        %v4512 = vld [vmem:[%s7 + $0x50] sm:$0xff]
        %v4513 = vld [vmem:[%s7 + $0x58] sm:$0xff]
        %v4514 = vld [vmem:[%s7 + $0x60] sm:$0xff]
        %v4515 = vld [vmem:[%s7 + $0x68] sm:$0xff]
        %v4516 = vld [vmem:[%s7 + $0x70] sm:$0xff]
        %v4517 = vld [vmem:[%s7 + $0x78] sm:$0xff]
        %v4518 = vld [vmem:[%s7 + $0x80] sm:$0xff]
        %v4519 = vld [vmem:[%s7 + $0x88] sm:$0xff]
        %v4520 = vld [vmem:[%s7 + $0x90] sm:$0xff]
        %v4521 = vld [vmem:[%s7 + $0x98] sm:$0xff]
        %v4522 = vld [vmem:[%s7 + $0xa0] sm:$0xff]
        %v4523 = vld [vmem:[%s7 + $0xa8] sm:$0xff]
        %v4524 = vld [vmem:[%s7 + $0xb0] sm:$0xff]
        %v4525 = vld [vmem:[%s7 + $0xb8] sm:$0xff]
        %v4526 = vld [vmem:[%s7 + $0xc0] sm:$0xff]
        %v4527 = vld [vmem:[%s7 + $0xc8] sm:$0xff]
        %v4528 = vld [vmem:[%s7 + $0xd0] sm:$0xff]
        %v4529 = vld [vmem:[%s7 + $0xd8] sm:$0xff]
        %v4530 = vld [vmem:[%s7 + $0xe0] sm:$0xff]
        %v4531 = vld [vmem:[%s7 + $0xe8] sm:$0xff]
        %v4532 = vld [vmem:[%s7 + $0xf0] sm:$0xff]
        %v4533 = vld [vmem:[%s7 + $0xf8] sm:$0xff]
        %v4534 = vld [vmem:[%s7 + $0x100] sm:$0xff]
        %v4535 = vld [vmem:[%s7 + $0x108] sm:$0xff]
        %v4536 = vld [vmem:[%s7 + $0x110] sm:$0xff]
        %v4537 = vld [vmem:[%s7 + $0x118] sm:$0xff]
        %v4538 = vld [vmem:[%s7 + $0x120] sm:$0xff]
        %v4539 = vld [vmem:[%s7 + $0x128] sm:$0xff]
        %v4540 = vld [vmem:[%s7 + $0x130] sm:$0xff]
        %v4541 = vld [vmem:[%s7 + $0x138] sm:$0xff]
        %v4542 = vld [vmem:[%s7 + $0x140] sm:$0xff]
        %v4543 = vld [vmem:[%s7 + $0x148] sm:$0xff]
        %v4544 = vld [vmem:[%s7 + $0x150] sm:$0xff]
        %v4545 = vld [vmem:[%s7 + $0x158] sm:$0xff]
        %v4546 = vld [vmem:[%s7 + $0x160] sm:$0xff]
        %v4547 = vld [vmem:[%s7 + $0x168] sm:$0xff]
        %v4548 = vld [vmem:[%s7 + $0x170] sm:$0xff]
        %v4549 = vld [vmem:[%s7 + $0x178] sm:$0xff]
        %v4550 = vld [vmem:[%s7 + $0x180] sm:$0xff]
        %v4551 = vld [vmem:[%s7 + $0x188] sm:$0xff]
        %v4552 = vld [vmem:[%s7 + $0x190] sm:$0xff]
        %v4553 = vld [vmem:[%s7 + $0x198] sm:$0xff]
        %v4554 = vld [vmem:[%s7 + $0x1a0] sm:$0xff]
        %v4555 = vld [vmem:[%s7 + $0x1a8] sm:$0xff]
        %v4556 = vld [vmem:[%s7 + $0x1b0] sm:$0xff]
        %v4557 = vld [vmem:[%s7 + $0x1b8] sm:$0xff]
        %v4558 = vld [vmem:[%s7 + $0x1c0] sm:$0xff]
        %v4559 = vld [vmem:[%s7 + $0x1c8] sm:$0xff]
        %v4560 = vld [vmem:[%s7 + $0x1d0] sm:$0xff]
        %v4561 = vld [vmem:[%s7 + $0x1d8] sm:$0xff]
        %v4562 = vld [vmem:[%s7 + $0x1e0] sm:$0xff]
        %v4563 = vld [vmem:[%s7 + $0x1e8] sm:$0xff]
        %v4564 = vld [vmem:[%s7 + $0x1f0] sm:$0xff]
        %v4565 = vld [vmem:[%s7 + $0x1f8] sm:$0xff]
        %v4567 = vlaneseq
        %v4568 = vshrl.u32 %v4567, 7
        %v4569 = vsub.s32 0, %v4568
        %v4570 = vrot.slane %v4498, %v4569
        %v4572 = vmul.f32 %v4502, %v4570
        %v4573 = vmul.f32 %v4503, %v4570
        %v4574 = vmul.f32 %v4504, %v4570
        %v4575 = vmul.f32 %v4505, %v4570
        %v4576 = vmul.f32 %v4506, %v4570
        %v4577 = vmul.f32 %v4507, %v4570
        %v4578 = vmul.f32 %v4508, %v4570
        %v4579 = vmul.f32 %v4509, %v4570
        %v4580 = vmul.f32 %v4510, %v4570
        %v4581 = vmul.f32 %v4511, %v4570
        %v4582 = vmul.f32 %v4512, %v4570
        %v4583 = vmul.f32 %v4513, %v4570
        %v4584 = vmul.f32 %v4514, %v4570
        %v4585 = vmul.f32 %v4515, %v4570
        %v4586 = vmul.f32 %v4516, %v4570
        %v4587 = vmul.f32 %v4517, %v4570
        %v4588 = vmul.f32 %v4518, %v4570
        %v4589 = vmul.f32 %v4519, %v4570
        %v4590 = vmul.f32 %v4520, %v4570
        %v4591 = vmul.f32 %v4521, %v4570
        %v4592 = vmul.f32 %v4522, %v4570
        %v4593 = vmul.f32 %v4523, %v4570
        %v4594 = vmul.f32 %v4524, %v4570
        %v4595 = vmul.f32 %v4525, %v4570
        %v4596 = vmul.f32 %v4526, %v4570
        %v4597 = vmul.f32 %v4527, %v4570
        %v4598 = vmul.f32 %v4528, %v4570
        %v4599 = vmul.f32 %v4529, %v4570
        %v4600 = vmul.f32 %v4530, %v4570
        %v4601 = vmul.f32 %v4531, %v4570
        %v4602 = vmul.f32 %v4532, %v4570
        %v4603 = vmul.f32 %v4533, %v4570
        %v4604 = vmul.f32 %v4534, %v4570
        %v4605 = vmul.f32 %v4535, %v4570
        %v4606 = vmul.f32 %v4536, %v4570
        %v4607 = vmul.f32 %v4537, %v4570
        %v4608 = vmul.f32 %v4538, %v4570
        %v4609 = vmul.f32 %v4539, %v4570
        %v4610 = vmul.f32 %v4540, %v4570
        %v4611 = vmul.f32 %v4541, %v4570
        %v4612 = vmul.f32 %v4542, %v4570
        %v4613 = vmul.f32 %v4543, %v4570
        %v4614 = vmul.f32 %v4544, %v4570
        %v4615 = vmul.f32 %v4545, %v4570
        %v4616 = vmul.f32 %v4546, %v4570
        %v4617 = vmul.f32 %v4547, %v4570
        %v4618 = vmul.f32 %v4548, %v4570
        %v4619 = vmul.f32 %v4549, %v4570
        %v4620 = vmul.f32 %v4550, %v4570
        %v4621 = vmul.f32 %v4551, %v4570
        %v4622 = vmul.f32 %v4552, %v4570
        %v4623 = vmul.f32 %v4553, %v4570
        %v4624 = vmul.f32 %v4554, %v4570
        %v4625 = vmul.f32 %v4555, %v4570
        %v4626 = vmul.f32 %v4556, %v4570
        %v4627 = vmul.f32 %v4557, %v4570
        %v4628 = vmul.f32 %v4558, %v4570
        %v4629 = vmul.f32 %v4559, %v4570
        %v4630 = vmul.f32 %v4560, %v4570
        %v4631 = vmul.f32 %v4561, %v4570
        %v4632 = vmul.f32 %v4562, %v4570
        %v4633 = vmul.f32 %v4563, %v4570
        %v4634 = vmul.f32 %v4564, %v4570
        %v4635 = vmul.f32 %v4565, %v4570
        %v4637 = vlaneseq
        %v4638 = vshrl.u32 %v4637, 7
        %v4639 = vsub.s32 0, %v4638
        %v4640 = vrot.slane %v4501, %v4639
        %v4642 = vadd.f32 %v4572, %v4640
        %v4643 = vadd.f32 %v4573, %v4640
        %v4644 = vadd.f32 %v4574, %v4640
        %v4645 = vadd.f32 %v4575, %v4640
        %v4646 = vadd.f32 %v4576, %v4640
        %v4647 = vadd.f32 %v4577, %v4640
        %v4648 = vadd.f32 %v4578, %v4640
        %v4649 = vadd.f32 %v4579, %v4640
        %v4650 = vadd.f32 %v4580, %v4640
        %v4651 = vadd.f32 %v4581, %v4640
        %v4652 = vadd.f32 %v4582, %v4640
        %v4653 = vadd.f32 %v4583, %v4640
        %v4654 = vadd.f32 %v4584, %v4640
        %v4655 = vadd.f32 %v4585, %v4640
        %v4656 = vadd.f32 %v4586, %v4640
        %v4657 = vadd.f32 %v4587, %v4640
        %v4658 = vadd.f32 %v4588, %v4640
        %v4659 = vadd.f32 %v4589, %v4640
        %v4660 = vadd.f32 %v4590, %v4640
        %v4661 = vadd.f32 %v4591, %v4640
        %v4662 = vadd.f32 %v4592, %v4640
        %v4663 = vadd.f32 %v4593, %v4640
        %v4664 = vadd.f32 %v4594, %v4640
        %v4665 = vadd.f32 %v4595, %v4640
        %v4666 = vadd.f32 %v4596, %v4640
        %v4667 = vadd.f32 %v4597, %v4640
        %v4668 = vadd.f32 %v4598, %v4640
        %v4669 = vadd.f32 %v4599, %v4640
        %v4670 = vadd.f32 %v4600, %v4640
        %v4671 = vadd.f32 %v4601, %v4640
        %v4672 = vadd.f32 %v4602, %v4640
        %v4673 = vadd.f32 %v4603, %v4640
        %v4674 = vadd.f32 %v4604, %v4640
        %v4675 = vadd.f32 %v4605, %v4640
        %v4676 = vadd.f32 %v4606, %v4640
        %v4677 = vadd.f32 %v4607, %v4640
        %v4678 = vadd.f32 %v4608, %v4640
        %v4679 = vadd.f32 %v4609, %v4640
        %v4680 = vadd.f32 %v4610, %v4640
        %v4681 = vadd.f32 %v4611, %v4640
        %v4682 = vadd.f32 %v4612, %v4640
        %v4683 = vadd.f32 %v4613, %v4640
        %v4684 = vadd.f32 %v4614, %v4640
        %v4685 = vadd.f32 %v4615, %v4640
        %v4686 = vadd.f32 %v4616, %v4640
        %v4687 = vadd.f32 %v4617, %v4640
        %v4688 = vadd.f32 %v4618, %v4640
        %v4689 = vadd.f32 %v4619, %v4640
        %v4690 = vadd.f32 %v4620, %v4640
        %v4691 = vadd.f32 %v4621, %v4640
        %v4692 = vadd.f32 %v4622, %v4640
        %v4693 = vadd.f32 %v4623, %v4640
        %v4694 = vadd.f32 %v4624, %v4640
        %v4695 = vadd.f32 %v4625, %v4640
        %v4696 = vadd.f32 %v4626, %v4640
        %v4697 = vadd.f32 %v4627, %v4640
        %v4698 = vadd.f32 %v4628, %v4640
        %v4699 = vadd.f32 %v4629, %v4640
        %v4700 = vadd.f32 %v4630, %v4640
        %v4701 = vadd.f32 %v4631, %v4640
        %v4702 = vadd.f32 %v4632, %v4640
        %v4703 = vadd.f32 %v4633, %v4640
        %v4704 = vadd.f32 %v4634, %v4640
        %v4705 = vadd.f32 %v4635, %v4640
        %vm4706 = vcmp.ge.f32.partialorder %v4642, 0.0
        %vm4707 = vcmp.ge.f32.partialorder %v4643, 0.0
        %vm4708 = vcmp.ge.f32.partialorder %v4644, 0.0
        %vm4709 = vcmp.ge.f32.partialorder %v4645, 0.0
        %vm4710 = vcmp.ge.f32.partialorder %v4646, 0.0
        %vm4711 = vcmp.ge.f32.partialorder %v4647, 0.0
        %vm4712 = vcmp.ge.f32.partialorder %v4648, 0.0
        %vm4713 = vcmp.ge.f32.partialorder %v4649, 0.0
        %vm4714 = vcmp.ge.f32.partialorder %v4650, 0.0
        %vm4715 = vcmp.ge.f32.partialorder %v4651, 0.0
        %vm4716 = vcmp.ge.f32.partialorder %v4652, 0.0
        %vm4717 = vcmp.ge.f32.partialorder %v4653, 0.0
        %vm4718 = vcmp.ge.f32.partialorder %v4654, 0.0
        %vm4719 = vcmp.ge.f32.partialorder %v4655, 0.0
        %vm4720 = vcmp.ge.f32.partialorder %v4656, 0.0
        %vm4721 = vcmp.ge.f32.partialorder %v4657, 0.0
        %vm4722 = vcmp.ge.f32.partialorder %v4658, 0.0
        %vm4723 = vcmp.ge.f32.partialorder %v4659, 0.0
        %vm4724 = vcmp.ge.f32.partialorder %v4660, 0.0
        %vm4725 = vcmp.ge.f32.partialorder %v4661, 0.0
        %vm4726 = vcmp.ge.f32.partialorder %v4662, 0.0
        %vm4727 = vcmp.ge.f32.partialorder %v4663, 0.0
        %vm4728 = vcmp.ge.f32.partialorder %v4664, 0.0
        %vm4729 = vcmp.ge.f32.partialorder %v4665, 0.0
        %vm4730 = vcmp.ge.f32.partialorder %v4666, 0.0
        %vm4731 = vcmp.ge.f32.partialorder %v4667, 0.0
        %vm4732 = vcmp.ge.f32.partialorder %v4668, 0.0
        %vm4733 = vcmp.ge.f32.partialorder %v4669, 0.0
        %vm4734 = vcmp.ge.f32.partialorder %v4670, 0.0
        %vm4735 = vcmp.ge.f32.partialorder %v4671, 0.0
        %vm4736 = vcmp.ge.f32.partialorder %v4672, 0.0
        %vm4737 = vcmp.ge.f32.partialorder %v4673, 0.0
        %vm4738 = vcmp.ge.f32.partialorder %v4674, 0.0
        %vm4739 = vcmp.ge.f32.partialorder %v4675, 0.0
        %vm4740 = vcmp.ge.f32.partialorder %v4676, 0.0
        %vm4741 = vcmp.ge.f32.partialorder %v4677, 0.0
        %vm4742 = vcmp.ge.f32.partialorder %v4678, 0.0
        %vm4743 = vcmp.ge.f32.partialorder %v4679, 0.0
        %vm4744 = vcmp.ge.f32.partialorder %v4680, 0.0
        %vm4745 = vcmp.ge.f32.partialorder %v4681, 0.0
        %vm4746 = vcmp.ge.f32.partialorder %v4682, 0.0
        %vm4747 = vcmp.ge.f32.partialorder %v4683, 0.0
        %vm4748 = vcmp.ge.f32.partialorder %v4684, 0.0
        %vm4749 = vcmp.ge.f32.partialorder %v4685, 0.0
        %vm4750 = vcmp.ge.f32.partialorder %v4686, 0.0
        %vm4751 = vcmp.ge.f32.partialorder %v4687, 0.0
        %vm4752 = vcmp.ge.f32.partialorder %v4688, 0.0
        %vm4753 = vcmp.ge.f32.partialorder %v4689, 0.0
        %vm4754 = vcmp.ge.f32.partialorder %v4690, 0.0
        %vm4755 = vcmp.ge.f32.partialorder %v4691, 0.0
        %vm4756 = vcmp.ge.f32.partialorder %v4692, 0.0
        %vm4757 = vcmp.ge.f32.partialorder %v4693, 0.0
        %vm4758 = vcmp.ge.f32.partialorder %v4694, 0.0
        %vm4759 = vcmp.ge.f32.partialorder %v4695, 0.0
        %vm4760 = vcmp.ge.f32.partialorder %v4696, 0.0
        %vm4761 = vcmp.ge.f32.partialorder %v4697, 0.0
        %vm4762 = vcmp.ge.f32.partialorder %v4698, 0.0
        %vm4763 = vcmp.ge.f32.partialorder %v4699, 0.0
        %vm4764 = vcmp.ge.f32.partialorder %v4700, 0.0
        %vm4765 = vcmp.ge.f32.partialorder %v4701, 0.0
        %vm4766 = vcmp.ge.f32.partialorder %v4702, 0.0
        %vm4767 = vcmp.ge.f32.partialorder %v4703, 0.0
        %vm4768 = vcmp.ge.f32.partialorder %v4704, 0.0
        %vm4769 = vcmp.ge.f32.partialorder %v4705, 0.0
        %v4770 = vmul.f32 %v4642, 0.2
        %v4771 = vmul.f32 %v4643, 0.2
        %v4772 = vmul.f32 %v4644, 0.2
        %v4773 = vmul.f32 %v4645, 0.2
        %v4774 = vmul.f32 %v4646, 0.2
        %v4775 = vmul.f32 %v4647, 0.2
        %v4776 = vmul.f32 %v4648, 0.2
        %v4777 = vmul.f32 %v4649, 0.2
        %v4778 = vmul.f32 %v4650, 0.2
        %v4779 = vmul.f32 %v4651, 0.2
        %v4780 = vmul.f32 %v4652, 0.2
        %v4781 = vmul.f32 %v4653, 0.2
        %v4782 = vmul.f32 %v4654, 0.2
        %v4783 = vmul.f32 %v4655, 0.2
        %v4784 = vmul.f32 %v4656, 0.2
        %v4785 = vmul.f32 %v4657, 0.2
        %v4786 = vmul.f32 %v4658, 0.2
        %v4787 = vmul.f32 %v4659, 0.2
        %v4788 = vmul.f32 %v4660, 0.2
        %v4789 = vmul.f32 %v4661, 0.2
        %v4790 = vmul.f32 %v4662, 0.2
        %v4791 = vmul.f32 %v4663, 0.2
        %v4792 = vmul.f32 %v4664, 0.2
        %v4793 = vmul.f32 %v4665, 0.2
        %v4794 = vmul.f32 %v4666, 0.2
        %v4795 = vmul.f32 %v4667, 0.2
        %v4796 = vmul.f32 %v4668, 0.2
        %v4797 = vmul.f32 %v4669, 0.2
        %v4798 = vmul.f32 %v4670, 0.2
        %v4799 = vmul.f32 %v4671, 0.2
        %v4800 = vmul.f32 %v4672, 0.2
        %v4801 = vmul.f32 %v4673, 0.2
        %v4802 = vmul.f32 %v4674, 0.2
        %v4803 = vmul.f32 %v4675, 0.2
        %v4804 = vmul.f32 %v4676, 0.2
        %v4805 = vmul.f32 %v4677, 0.2
        %v4806 = vmul.f32 %v4678, 0.2
        %v4807 = vmul.f32 %v4679, 0.2
        %v4808 = vmul.f32 %v4680, 0.2
        %v4809 = vmul.f32 %v4681, 0.2
        %v4810 = vmul.f32 %v4682, 0.2
        %v4811 = vmul.f32 %v4683, 0.2
        %v4812 = vmul.f32 %v4684, 0.2
        %v4813 = vmul.f32 %v4685, 0.2
        %v4814 = vmul.f32 %v4686, 0.2
        %v4815 = vmul.f32 %v4687, 0.2
        %v4816 = vmul.f32 %v4688, 0.2
        %v4817 = vmul.f32 %v4689, 0.2
        %v4818 = vmul.f32 %v4690, 0.2
        %v4819 = vmul.f32 %v4691, 0.2
        %v4820 = vmul.f32 %v4692, 0.2
        %v4821 = vmul.f32 %v4693, 0.2
        %v4822 = vmul.f32 %v4694, 0.2
        %v4823 = vmul.f32 %v4695, 0.2
        %v4824 = vmul.f32 %v4696, 0.2
        %v4825 = vmul.f32 %v4697, 0.2
        %v4826 = vmul.f32 %v4698, 0.2
        %v4827 = vmul.f32 %v4699, 0.2
        %v4828 = vmul.f32 %v4700, 0.2
        %v4829 = vmul.f32 %v4701, 0.2
        %v4830 = vmul.f32 %v4702, 0.2
        %v4831 = vmul.f32 %v4703, 0.2
        %v4832 = vmul.f32 %v4704, 0.2
        %v4833 = vmul.f32 %v4705, 0.2
        %v4834 = vsel %vm4706, %v4642, %v4770
        %v4835 = vsel %vm4707, %v4643, %v4771
        %v4836 = vsel %vm4708, %v4644, %v4772
        %v4837 = vsel %vm4709, %v4645, %v4773
        %v4838 = vsel %vm4710, %v4646, %v4774
        %v4839 = vsel %vm4711, %v4647, %v4775
        %v4840 = vsel %vm4712, %v4648, %v4776
        %v4841 = vsel %vm4713, %v4649, %v4777
        %v4842 = vsel %vm4714, %v4650, %v4778
        %v4843 = vsel %vm4715, %v4651, %v4779
        %v4844 = vsel %vm4716, %v4652, %v4780
        %v4845 = vsel %vm4717, %v4653, %v4781
        %v4846 = vsel %vm4718, %v4654, %v4782
        %v4847 = vsel %vm4719, %v4655, %v4783
        %v4848 = vsel %vm4720, %v4656, %v4784
        %v4849 = vsel %vm4721, %v4657, %v4785
        %v4850 = vsel %vm4722, %v4658, %v4786
        %v4851 = vsel %vm4723, %v4659, %v4787
        %v4852 = vsel %vm4724, %v4660, %v4788
        %v4853 = vsel %vm4725, %v4661, %v4789
        %v4854 = vsel %vm4726, %v4662, %v4790
        %v4855 = vsel %vm4727, %v4663, %v4791
        %v4856 = vsel %vm4728, %v4664, %v4792
        %v4857 = vsel %vm4729, %v4665, %v4793
        %v4858 = vsel %vm4730, %v4666, %v4794
        %v4859 = vsel %vm4731, %v4667, %v4795
        %v4860 = vsel %vm4732, %v4668, %v4796
        %v4861 = vsel %vm4733, %v4669, %v4797
        %v4862 = vsel %vm4734, %v4670, %v4798
        %v4863 = vsel %vm4735, %v4671, %v4799
        %v4864 = vsel %vm4736, %v4672, %v4800
        %v4865 = vsel %vm4737, %v4673, %v4801
        %v4866 = vsel %vm4738, %v4674, %v4802
        %v4867 = vsel %vm4739, %v4675, %v4803
        %v4868 = vsel %vm4740, %v4676, %v4804
        %v4869 = vsel %vm4741, %v4677, %v4805
        %v4870 = vsel %vm4742, %v4678, %v4806
        %v4871 = vsel %vm4743, %v4679, %v4807
        %v4872 = vsel %vm4744, %v4680, %v4808
        %v4873 = vsel %vm4745, %v4681, %v4809
        %v4874 = vsel %vm4746, %v4682, %v4810
        %v4875 = vsel %vm4747, %v4683, %v4811
        %v4876 = vsel %vm4748, %v4684, %v4812
        %v4877 = vsel %vm4749, %v4685, %v4813
        %v4878 = vsel %vm4750, %v4686, %v4814
        %v4879 = vsel %vm4751, %v4687, %v4815
        %v4880 = vsel %vm4752, %v4688, %v4816
        %v4881 = vsel %vm4753, %v4689, %v4817
        %v4882 = vsel %vm4754, %v4690, %v4818
        %v4883 = vsel %vm4755, %v4691, %v4819
        %v4884 = vsel %vm4756, %v4692, %v4820
        %v4885 = vsel %vm4757, %v4693, %v4821
        %v4886 = vsel %vm4758, %v4694, %v4822
        %v4887 = vsel %vm4759, %v4695, %v4823
        %v4888 = vsel %vm4760, %v4696, %v4824
        %v4889 = vsel %vm4761, %v4697, %v4825
        %v4890 = vsel %vm4762, %v4698, %v4826
        %v4891 = vsel %vm4763, %v4699, %v4827
        %v4892 = vsel %vm4764, %v4700, %v4828
        %v4893 = vsel %vm4765, %v4701, %v4829
        %v4894 = vsel %vm4766, %v4702, %v4830
        %v4895 = vsel %vm4767, %v4703, %v4831
        %v4896 = vsel %vm4768, %v4704, %v4832
        %v4897 = vsel %vm4769, %v4705, %v4833
        %vm4898 = vcmask 64512
        %4899 = vst.msk [vmem:[%s7] sm:$0xff] %vm4898, %v4834
        %4900 = vst.msk [vmem:[%s7 + $0x8] sm:$0xff] %vm4898, %v4835
        %4901 = vst.msk [vmem:[%s7 + $0x10] sm:$0xff] %vm4898, %v4836
        %4902 = vst.msk [vmem:[%s7 + $0x18] sm:$0xff] %vm4898, %v4837
        %4903 = vst.msk [vmem:[%s7 + $0x20] sm:$0xff] %vm4898, %v4838
        %4904 = vst.msk [vmem:[%s7 + $0x28] sm:$0xff] %vm4898, %v4839
        %4905 = vst.msk [vmem:[%s7 + $0x30] sm:$0xff] %vm4898, %v4840
        %4906 = vst.msk [vmem:[%s7 + $0x38] sm:$0xff] %vm4898, %v4841
        %4907 = vst.msk [vmem:[%s7 + $0x40] sm:$0xff] %vm4898, %v4842
        %4908 = vst.msk [vmem:[%s7 + $0x48] sm:$0xff] %vm4898, %v4843
        %4909 = vst.msk [vmem:[%s7 + $0x50] sm:$0xff] %vm4898, %v4844
        %4910 = vst.msk [vmem:[%s7 + $0x58] sm:$0xff] %vm4898, %v4845
        %4911 = vst.msk [vmem:[%s7 + $0x60] sm:$0xff] %vm4898, %v4846
        %4912 = vst.msk [vmem:[%s7 + $0x68] sm:$0xff] %vm4898, %v4847
        %4913 = vst.msk [vmem:[%s7 + $0x70] sm:$0xff] %vm4898, %v4848
        %4914 = vst.msk [vmem:[%s7 + $0x78] sm:$0xff] %vm4898, %v4849
        %4915 = vst.msk [vmem:[%s7 + $0x80] sm:$0xff] %vm4898, %v4850
        %4916 = vst.msk [vmem:[%s7 + $0x88] sm:$0xff] %vm4898, %v4851
        %4917 = vst.msk [vmem:[%s7 + $0x90] sm:$0xff] %vm4898, %v4852
        %4918 = vst.msk [vmem:[%s7 + $0x98] sm:$0xff] %vm4898, %v4853
        %4919 = vst.msk [vmem:[%s7 + $0xa0] sm:$0xff] %vm4898, %v4854
        %4920 = vst.msk [vmem:[%s7 + $0xa8] sm:$0xff] %vm4898, %v4855
        %4921 = vst.msk [vmem:[%s7 + $0xb0] sm:$0xff] %vm4898, %v4856
        %4922 = vst.msk [vmem:[%s7 + $0xb8] sm:$0xff] %vm4898, %v4857
        %4923 = vst.msk [vmem:[%s7 + $0xc0] sm:$0xff] %vm4898, %v4858
        %4924 = vst.msk [vmem:[%s7 + $0xc8] sm:$0xff] %vm4898, %v4859
        %4925 = vst.msk [vmem:[%s7 + $0xd0] sm:$0xff] %vm4898, %v4860
        %4926 = vst.msk [vmem:[%s7 + $0xd8] sm:$0xff] %vm4898, %v4861
        %4927 = vst.msk [vmem:[%s7 + $0xe0] sm:$0xff] %vm4898, %v4862
        %4928 = vst.msk [vmem:[%s7 + $0xe8] sm:$0xff] %vm4898, %v4863
        %4929 = vst.msk [vmem:[%s7 + $0xf0] sm:$0xff] %vm4898, %v4864
        %4930 = vst.msk [vmem:[%s7 + $0xf8] sm:$0xff] %vm4898, %v4865
        %4931 = vst.msk [vmem:[%s7 + $0x100] sm:$0xff] %vm4898, %v4866
        %4932 = vst.msk [vmem:[%s7 + $0x108] sm:$0xff] %vm4898, %v4867
        %4933 = vst.msk [vmem:[%s7 + $0x110] sm:$0xff] %vm4898, %v4868
        %4934 = vst.msk [vmem:[%s7 + $0x118] sm:$0xff] %vm4898, %v4869
        %4935 = vst.msk [vmem:[%s7 + $0x120] sm:$0xff] %vm4898, %v4870
        %4936 = vst.msk [vmem:[%s7 + $0x128] sm:$0xff] %vm4898, %v4871
        %4937 = vst.msk [vmem:[%s7 + $0x130] sm:$0xff] %vm4898, %v4872
        %4938 = vst.msk [vmem:[%s7 + $0x138] sm:$0xff] %vm4898, %v4873
        %4939 = vst.msk [vmem:[%s7 + $0x140] sm:$0xff] %vm4898, %v4874
        %4940 = vst.msk [vmem:[%s7 + $0x148] sm:$0xff] %vm4898, %v4875
        %4941 = vst.msk [vmem:[%s7 + $0x150] sm:$0xff] %vm4898, %v4876
        %4942 = vst.msk [vmem:[%s7 + $0x158] sm:$0xff] %vm4898, %v4877
        %4943 = vst.msk [vmem:[%s7 + $0x160] sm:$0xff] %vm4898, %v4878
        %4944 = vst.msk [vmem:[%s7 + $0x168] sm:$0xff] %vm4898, %v4879
        %4945 = vst.msk [vmem:[%s7 + $0x170] sm:$0xff] %vm4898, %v4880
        %4946 = vst.msk [vmem:[%s7 + $0x178] sm:$0xff] %vm4898, %v4881
        %4947 = vst.msk [vmem:[%s7 + $0x180] sm:$0xff] %vm4898, %v4882
        %4948 = vst.msk [vmem:[%s7 + $0x188] sm:$0xff] %vm4898, %v4883
        %4949 = vst.msk [vmem:[%s7 + $0x190] sm:$0xff] %vm4898, %v4884
        %4950 = vst.msk [vmem:[%s7 + $0x198] sm:$0xff] %vm4898, %v4885
        %4951 = vst.msk [vmem:[%s7 + $0x1a0] sm:$0xff] %vm4898, %v4886
        %4952 = vst.msk [vmem:[%s7 + $0x1a8] sm:$0xff] %vm4898, %v4887
        %4953 = vst.msk [vmem:[%s7 + $0x1b0] sm:$0xff] %vm4898, %v4888
        %4954 = vst.msk [vmem:[%s7 + $0x1b8] sm:$0xff] %vm4898, %v4889
        %4955 = vst.msk [vmem:[%s7 + $0x1c0] sm:$0xff] %vm4898, %v4890
        %4956 = vst.msk [vmem:[%s7 + $0x1c8] sm:$0xff] %vm4898, %v4891
        %4957 = vst.msk [vmem:[%s7 + $0x1d0] sm:$0xff] %vm4898, %v4892
        %4958 = vst.msk [vmem:[%s7 + $0x1d8] sm:$0xff] %vm4898, %v4893
        %4959 = vst.msk [vmem:[%s7 + $0x1e0] sm:$0xff] %vm4898, %v4894
        %4960 = vst.msk [vmem:[%s7 + $0x1e8] sm:$0xff] %vm4898, %v4895
        %4961 = vst.msk [vmem:[%s7 + $0x1f0] sm:$0xff] %vm4898, %v4896
        %4962 = vst.msk [vmem:[%s7 + $0x1f8] sm:$0xff] %vm4898, %v4897
      $region68: #{tpu_custom_call.1} parent=47 // pred_fallthru
        _
      // Predicated region
      $region69: #{tpu_custom_call.1} parent=47 // pred_check
        %p4963 = pneg %p201
      $region70: #{tpu_custom_call.1} parent=47 // pred_check_branch
        %4965 = sbr.rel (%p4963) target = $region72
      $region71: #{tpu_custom_call.1} parent=47 // pred_region
        _
      $region72: #{tpu_custom_call.1} parent=47 // pred_fallthru
        _
      // Predicated region
      $region73: #{tpu_custom_call.1} parent=47 // pred_check
        %p4966 = pneg %p201
      $region74: #{tpu_custom_call.1} parent=47 // pred_check_branch
        %4968 = sbr.rel (%p4966) target = $region76
      $region75: #{tpu_custom_call.1} parent=47 // pred_region
        _
      $region76: #{tpu_custom_call.1} parent=47 // pred_fallthru
        _
    $region48: #{tpu_custom_call.1} parent=5 // pred_fallthru
      _
    %p4969 = scmp.le.s32.totalorder 2, %s13
    // Predicated region
    $region77: #{tpu_custom_call.1} parent=5 // pred_check
      %p4970 = pneg %p4969
    $region78: #{tpu_custom_call.1} parent=5 // pred_check_branch
      %4972 = sbr.rel (%p4970) target = $region80
    $region79: #{tpu_custom_call.1} parent=5 // pred_region
      %s4973 = ssub.s32 %s13, 2
    $region80: #{tpu_custom_call.1} parent=5 // pred_fallthru
      _
  $region6: #{tpu_custom_call.1} parent=0 // loop_footer
    %s17 = sadd.s32 1, %s13
  $region7: #{tpu_custom_call.1} parent=0 // loop_footer_branch
    %12 = sbr.rel target = $region3
  $region8: #{tpu_custom_call.1} parent=0 // loop_exit
    _

</llo_original>
